<compile_context>
chip_gen: v5e
topology: v5e:2x2
jax: 0.10.0
libtpu: 0.0.40
codegen_flags: <defaults>
</compile_context>

<pallas_src>
import functools
import math

import jax
import jax.numpy as jnp
from jax.experimental import pallas as pl
from jax.experimental.pallas import tpu as pltpu

EPS = 1e-5
SLOPE = 0.01  # nn.LeakyReLU default negative_slope


def _leaky(h):
    return jnp.where(h >= 0, h, SLOPE * h)


def _write_stats(st_ref, y):
    """Per-tile partial BN statistics: row 0 = sum, row 1 = sum of squares."""
    st_ref[0:1, :] = jnp.sum(y, axis=0, keepdims=True)
    st_ref[1:2, :] = jnp.sum(y * y, axis=0, keepdims=True)


# --------------------------------- kernels -----------------------------------

def _conv1_stats_kernel(x_ref, w_ref, y_ref, st_ref):
    """1x1 conv (row-tiled matmul) + BN1 partial stats."""
    y = jnp.dot(x_ref[...], w_ref[...], preferred_element_type=jnp.float32)
    y_ref[...] = y.astype(y_ref.dtype)
    _write_stats(st_ref, y)


def _conv3_stats_kernel(y1_ref, scale_ref, bias_ref, w3_ref, y2_ref, st_ref,
                        pad_ref, *, stride, bo):
    """BN1+LeakyReLU fused with the 3x3 conv for one row-band of one image.

    The full (H, W, cmid) activation block stays resident in VMEM across the
    band axis (its block index only depends on the image index).  Each step
    normalizes just the rows it needs (band + 1-row halo), writes them into a
    band-sized padded scratch (only border/halo is ever zero-filled), and
    contracts the 9 im2col taps with w3 in one K = 9*cmid MXU matmul.
    """
    H, W, cmid = y1_ref.shape
    f32 = jnp.float32
    wo = W // stride
    bi_rows = bo * stride                      # input rows owned by this band
    b = pl.program_id(1)
    nb = pl.num_programs(1)
    r0 = b * bi_rows

    scale = scale_ref[...].astype(f32)
    bias = bias_ref[...].astype(f32)

    def norm(rows):
        return _leaky(rows.astype(f32) * scale + bias).astype(pad_ref.dtype)

    # Interior rows of the band (always valid) — written exactly once per step.
    pad_ref[1:bi_rows + 1, 1:W + 1, :] = norm(y1_ref[pl.ds(r0, bi_rows), :, :])

    # 1-px left/right border and the two halo rows.
    zero_col = jnp.zeros((bi_rows + 2, 1, cmid), pad_ref.dtype)
    pad_ref[:, 0:1, :] = zero_col
    pad_ref[:, W + 1:W + 2, :] = zero_col
    zero_row = jnp.zeros((1, W, cmid), pad_ref.dtype)

    @pl.when(b == 0)
    def _():
        pad_ref[0:1, 1:W + 1, :] = zero_row

    @pl.when(b > 0)
    def _():
        pad_ref[0:1, 1:W + 1, :] = norm(y1_ref[pl.ds(r0 - 1, 1), :, :])

    @pl.when(b == nb - 1)
    def _():
        pad_ref[bi_rows + 1:bi_rows + 2, 1:W + 1, :] = zero_row

    @pl.when(b < nb - 1)
    def _():
        pad_ref[bi_rows + 1:bi_rows + 2, 1:W + 1, :] = norm(
            y1_ref[pl.ds(r0 + bi_rows, 1), :, :])

    hp = pad_ref[...]
    taps = []
    for dy in range(3):
        for dx in range(3):
            # stride-aware taps: slice at the conv stride instead of
            # materializing full-resolution windows and discarding rows.
            win = hp[dy:dy + bi_rows:stride, dx:dx + W:stride, :]  # (bo, wo, cmid)
            taps.append(win.reshape(bo * wo, cmid))
    patches = jnp.concatenate(taps, axis=-1)                       # (bo*wo, 9*cmid)
    y2 = jnp.dot(patches, w3_ref[...], preferred_element_type=jnp.float32)
    y2_ref[...] = y2.reshape(bo, wo, cmid).astype(y2_ref.dtype)
    _write_stats(st_ref, y2)


def _masked_bn_act(y_ref, scale_ref, bias_ref, valid_rows):
    """BN + LeakyReLU of a row tile, zeroing rows past the true row count."""
    h = _leaky(y_ref[...].astype(jnp.float32) * scale_ref[...] + bias_ref[...])
    if valid_rows is not None:
        tm = y_ref.shape[0]
        row = pl.program_id(0) * tm + jax.lax.broadcasted_iota(jnp.int32, (tm, 1), 0)
        h = jnp.where(row < valid_rows, h, 0.0)
    return h


def _conv2_stats_kernel(y2_ref, scale_ref, bias_ref, w2_ref, y3_ref, st_ref,
                        *, valid_rows=None):
    """BN2+LeakyReLU fused with the expanding 1x1 conv + BN3 partial stats."""
    h = _masked_bn_act(y2_ref, scale_ref, bias_ref, valid_rows)
    y3 = jnp.dot(h.astype(w2_ref.dtype), w2_ref[...],
                 preferred_element_type=jnp.float32)
    y3_ref[...] = y3.astype(y3_ref.dtype)
    _write_stats(st_ref, y3)


def _conv2_sc_stats_kernel(y2_ref, scale_ref, bias_ref, w2_ref, xs_ref, wsc_ref,
                           y3_ref, st3_ref, ysc_ref, stsc_ref, *, valid_rows=None):
    """Same as above, plus the projection-shortcut 1x1 conv + its BN stats."""
    h = _masked_bn_act(y2_ref, scale_ref, bias_ref, valid_rows)
    y3 = jnp.dot(h.astype(w2_ref.dtype), w2_ref[...],
                 preferred_element_type=jnp.float32)
    y3_ref[...] = y3.astype(y3_ref.dtype)
    _write_stats(st3_ref, y3)

    ysc = jnp.dot(xs_ref[...], wsc_ref[...], preferred_element_type=jnp.float32)
    ysc_ref[...] = ysc.astype(ysc_ref.dtype)
    _write_stats(stsc_ref, ysc)


def _finalize_sc_kernel(y3_ref, s3_ref, b3_ref, ysc_ref, ssc_ref, bsc_ref, out_ref):
    r = y3_ref[...].astype(jnp.float32) * s3_ref[...] + b3_ref[...]
    s = ysc_ref[...].astype(jnp.float32) * ssc_ref[...] + bsc_ref[...]
    out_ref[...] = _leaky(r + s).astype(out_ref.dtype)


def _finalize_id_kernel(y3_ref, s3_ref, b3_ref, x_ref, out_ref):
    r = y3_ref[...].astype(jnp.float32) * s3_ref[...] + b3_ref[...]
    out_ref[...] = _leaky(r + x_ref[...].astype(jnp.float32)).astype(out_ref.dtype)


# ----------------------------- host-side helpers ------------------------------

def _fold_bn(stats, count, gamma, beta):
    """Reduce per-tile partials and fold BN into one per-channel (scale, bias)."""
    s = jnp.sum(stats[:, 0, :], axis=0)
    q = jnp.sum(stats[:, 1, :], axis=0)
    mean = s / count
    var = jnp.maximum(q / count - mean * mean, 0.0)   # clamp single-pass variance
    scale = gamma.reshape(-1).astype(jnp.float32) * jax.lax.rsqrt(var + EPS)
    bias = beta.reshape(-1).astype(jnp.float32) - mean * scale
    return scale.reshape(1, -1), bias.reshape(1, -1)


@functools.lru_cache(maxsize=1)
def _vmem_budget():
    """Usable scoped-VMEM budget for this generation (~45 MiB v7x, ~90 MiB v5e/v6e)."""
    cap = 128 << 20
    try:
        cap = int(getattr(pltpu.get_tpu_info(), "vmem_capacity_bytes", cap))
    except Exception:
        pass
    return int(min(cap * 0.7, 100 << 20))


def _cparams(sem, step_bytes):
    """Dimension semantics + a VMEM limit sized from the real per-step footprint
    (including in-kernel temporaries), with headroom for double-buffering."""
    limit = int(min(_vmem_budget(), max(16 << 20, int(2.5 * step_bytes) + (4 << 20))))
    return pltpu.CompilerParams(dimension_semantics=sem, vmem_limit_bytes=limit)


def _round_up(x, m):
    return (x + m - 1) // m * m


def _tile_rows(m, bytes_per_row, budget):
    """Generation-aware row tile: biggest MXU-friendly tile whose double-buffered
    in+out footprint fits comfortably in VMEM.  Returns (tile, padded_m, grid)."""
    bytes_per_row = max(1, bytes_per_row)
    cap = (budget // 3) // (2 * bytes_per_row)
    cap = max(256, min(int(cap), 4096))
    cap -= cap % 256
    m8 = _round_up(m, 8)
    if m8 <= cap:
        return m8, m8, 1
    # prefer an exact divisor (multiple of 8) to avoid padded rows
    for t in range(cap, max(cap // 4, 8) - 1, -8):
        if m % t == 0:
            return t, m, m // t
    mp = _round_up(m, cap)
    return cap, mp, mp // cap


def _pad_rows(a, mp):
    if a.shape[0] == mp:
        return a
    return jnp.pad(a, ((0, mp - a.shape[0]), (0, 0)))


def _pick_band(ho, out_row_bytes, budget):
    """Largest divisor of ho whose per-band im2col working set stays small."""
    target = max(1, (budget // 6) // max(1, out_row_bytes))
    bo = 1
    for d in range(1, ho + 1):
        if ho % d == 0 and d <= target:
            bo = d
    return bo


# --------------------------------- wrapper ------------------------------------

def bottleneck_forward(x_nchw, params, *, stride, has_shortcut):
    """BottleNeck forward. NCHW in / NCHW out (PyTorch interface); all heavy
    compute runs in tiled Pallas kernels operating on NHWC data."""
    x = jnp.transpose(x_nchw, (0, 2, 3, 1))                      # NHWC
    N, H, W, cin = x.shape
    cmid = params["w1"].shape[-1]
    cout = params["w2"].shape[-1]
    if stride > 1:
        # TODO(synk): odd spatial dims with stride>1 unsupported (ResNet uses even dims).
        assert H % stride == 0 and W % stride == 0
    ho, wo = H // stride, W // stride
    M1, M2 = N * H * W, N * ho * wo
    f32 = jnp.float32
    cdt = x.dtype                            # storage/MXU dtype (bf16 nets stay bf16)
    cb = jnp.dtype(cdt).itemsize
    budget = _vmem_budget()

    # Weights in the compute dtype: native bf16 MXU operands when the net is bf16.
    w1 = params["w1"].astype(cdt)
    w2 = params["w2"].astype(cdt)
    w3 = params["w3"].astype(cdt).reshape(9 * cmid, cmid)

    x_flat = x.reshape(M1, cin)

    # --- K1: 1x1 conv + BN1 partial stats (row-tiled) -------------------------
    TM1, M1p, g1 = _tile_rows(M1, (cin + 2 * cmid) * cb + cmid * 4, budget)
    step_b1 = (TM1 * (cin + cmid) * cb + TM1 * cmid * 4
               + cin * cmid * cb + 2 * cmid * 4)
    y1, st1 = pl.pallas_call(
        _conv1_stats_kernel,
        grid=(g1,),
        in_specs=[pl.BlockSpec((TM1, cin), lambda i: (i, 0)),
                  pl.BlockSpec((cin, cmid), lambda i: (0, 0))],
        out_specs=(pl.BlockSpec((TM1, cmid), lambda i: (i, 0)),
                   pl.BlockSpec((None, 2, cmid), lambda i: (i, 0, 0))),
        out_shape=(jax.ShapeDtypeStruct((M1p, cmid), cdt),
                   jax.ShapeDtypeStruct((g1, 2, cmid), f32)),
        compiler_params=_cparams(("parallel",), step_b1),
    )(_pad_rows(x_flat, M1p), w1)
    scale1, bias1 = _fold_bn(st1, M1, params["g1"], params["b1"])
    if M1p != M1:
        y1 = y1[:M1]

    # --- K2: BN1+LeakyReLU -> 3x3 conv (im2col) + BN2 stats (image x row-band) -
    y1_img = y1.reshape(N, H, W, cmid)
    out_row_bytes = (wo * cmid * 10 * cb + wo * cmid * 4
                     + stride * (W + 2) * cmid * cb)
    bo = _pick_band(ho, out_row_bytes, budget)
    GB = ho // bo
    bi_rows = bo * stride
    k2_temps = (bo * wo * 9 * cmid * cb + bo * wo * cmid * 4
                + (bi_rows + 2) * (W + 2) * cmid * cb)
    k2_blocks = (H * W * cmid * cb + bo * wo * cmid * cb
                 + 9 * cmid * cmid * cb + 4 * cmid * 4)
    y2, st2 = pl.pallas_call(
        functools.partial(_conv3_stats_kernel, stride=stride, bo=bo),
        grid=(N, GB),
        in_specs=[pl.BlockSpec((None, H, W, cmid), lambda n, b: (n, 0, 0, 0)),
                  pl.BlockSpec((1, cmid), lambda n, b: (0, 0)),
                  pl.BlockSpec((1, cmid), lambda n, b: (0, 0)),
                  pl.BlockSpec((9 * cmid, cmid), lambda n, b: (0, 0))],
        out_specs=(pl.BlockSpec((None, bo, wo, cmid), lambda n, b: (n, b, 0, 0)),
                   pl.BlockSpec((None, 2, cmid), lambda n, b: (n * GB + b, 0, 0))),
        out_shape=(jax.ShapeDtypeStruct((N, ho, wo, cmid), cdt),
                   jax.ShapeDtypeStruct((N * GB, 2, cmid), f32)),
        scratch_shapes=[pltpu.VMEM((bi_rows + 2, W + 2, cmid), cdt)],
        compiler_params=_cparams(("parallel", "arbitrary"), k2_blocks + k2_temps),
    )(y1_img, scale1, bias1, w3)
    scale2, bias2 = _fold_bn(st2, M2, params["g2"], params["b2"])

    # --- K3: BN2+LeakyReLU -> expanding 1x1 conv (+ shortcut conv) + stats ----
    y2_flat = y2.reshape(M2, cmid)
    xs = (x[:, ::stride, ::stride, :].reshape(M2, cin) if stride > 1 else x_flat)

    row_b3 = (cmid + 2 * cout + (cin if has_shortcut else 0)) * cb + 2 * cout * 4
    TM2, M2p, g2 = _tile_rows(M2, row_b3, budget)
    valid = M2 if M2p != M2 else None
    y2p = _pad_rows(y2_flat, M2p)

    # K4 lane-folding: fold rows into the lane axis when cout < 128 so the
    # memory-bound finalize stage does lane-dense (128-wide) loads/stores.
    f = 1
    if cout < 128 and 128 % cout == 0 and M2 % (128 // cout) == 0:
        f = 128 // cout
    M2f, cw = M2 // f, f * cout
    fold = lambda a: a.reshape(M2f, cw)
    tilef = (lambda s: jnp.tile(s, (1, f))) if f > 1 else (lambda s: s)
    TM4, M4p, g4 = _tile_rows(M2f, 4 * cw * cb + 4 * cw * 4, budget)
    step_b4 = 4 * TM4 * cw * cb + 4 * cw * 4 + 2 * TM4 * cw * 4

    if has_shortcut:
        wsc = params["wsc"].astype(cdt)
        step_b3 = (TM2 * (cmid + cin) * cb + 2 * TM2 * cout * cb
                   + (cmid + cin) * cout * cb + 4 * cout * 4 + 2 * TM2 * cout * 4)
        y3, st3, ysc, stsc = pl.pallas_call(
            functools.partial(_conv2_sc_stats_kernel, valid_rows=valid),
            grid=(g2,),
            in_specs=[pl.BlockSpec((TM2, cmid), lambda i: (i, 0)),
                      pl.BlockSpec((1, cmid), lambda i: (0, 0)),
                      pl.BlockSpec((1, cmid), lambda i: (0, 0)),
                      pl.BlockSpec((cmid, cout), lambda i: (0, 0)),
                      pl.BlockSpec((TM2, cin), lambda i: (i, 0)),
                      pl.BlockSpec((cin, cout), lambda i: (0, 0))],
            out_specs=(pl.BlockSpec((TM2, cout), lambda i: (i, 0)),
                       pl.BlockSpec((None, 2, cout), lambda i: (i, 0, 0)),
                       pl.BlockSpec((TM2, cout), lambda i: (i, 0)),
                       pl.BlockSpec((None, 2, cout), lambda i: (i, 0, 0))),
            out_shape=(jax.ShapeDtypeStruct((M2p, cout), cdt),
                       jax.ShapeDtypeStruct((g2, 2, cout), f32),
                       jax.ShapeDtypeStruct((M2p, cout), cdt),
                       jax.ShapeDtypeStruct((g2, 2, cout), f32)),
            compiler_params=_cparams(("parallel",), step_b3),
        )(y2p, scale2, bias2, w2, _pad_rows(xs, M2p), wsc)
        scale3, bias3 = _fold_bn(st3, M2, params["g3"], params["b3"])
        scsc, bsc = _fold_bn(stsc, M2, params["gsc"], params["bsc"])
        if M2p != M2:
            y3, ysc = y3[:M2], ysc[:M2]

        # --- K4: normalize both branches, add, LeakyReLU (lane-folded) --------
        out_flat = pl.pallas_call(
            _finalize_sc_kernel,
            grid=(g4,),
            in_specs=[pl.BlockSpec((TM4, cw), lambda i: (i, 0)),
                      pl.BlockSpec((1, cw), lambda i: (0, 0)),
                      pl.BlockSpec((1, cw), lambda i: (0, 0)),
                      pl.BlockSpec((TM4, cw), lambda i: (i, 0)),
                      pl.BlockSpec((1, cw), lambda i: (0, 0)),
                      pl.BlockSpec((1, cw), lambda i: (0, 0))],
            out_specs=pl.BlockSpec((TM4, cw), lambda i: (i, 0)),
            out_shape=jax.ShapeDtypeStruct((M4p, cw), x.dtype),
            compiler_params=_cparams(("parallel",), step_b4),
        )(_pad_rows(fold(y3), M4p), tilef(scale3), tilef(bias3),
          _pad_rows(fold(ysc), M4p), tilef(scsc), tilef(bsc))
    else:
        step_b3 = (TM2 * cmid * cb + TM2 * cout * cb + cmid * cout * cb
                   + 2 * cout * 4 + TM2 * cout * 4)
        y3, st3 = pl.pallas_call(
            functools.partial(_conv2_stats_kernel, valid_rows=valid),
            grid=(g2,),
            in_specs=[pl.BlockSpec((TM2, cmid), lambda i: (i, 0)),
                      pl.BlockSpec((1, cmid), lambda i: (0, 0)),
                      pl.BlockSpec((1, cmid), lambda i: (0, 0)),
                      pl.BlockSpec((cmid, cout), lambda i: (0, 0))],
            out_specs=(pl.BlockSpec((TM2, cout), lambda i: (i, 0)),
                       pl.BlockSpec((None, 2, cout), lambda i: (i, 0, 0))),
            out_shape=(jax.ShapeDtypeStruct((M2p, cout), cdt),
                       jax.ShapeDtypeStruct((g2, 2, cout), f32)),
            compiler_params=_cparams(("parallel",), step_b3),
        )(y2p, scale2, bias2, w2)
        scale3, bias3 = _fold_bn(st3, M2, params["g3"], params["b3"])
        if M2p != M2:
            y3 = y3[:M2]

        out_flat = pl.pallas_call(
            _finalize_id_kernel,
            grid=(g4,),
            in_specs=[pl.BlockSpec((TM4, cw), lambda i: (i, 0)),
                      pl.BlockSpec((1, cw), lambda i: (0, 0)),
                      pl.BlockSpec((1, cw), lambda i: (0, 0)),
                      pl.BlockSpec((TM4, cw), lambda i: (i, 0))],
            out_specs=pl.BlockSpec((TM4, cw), lambda i: (i, 0)),
            out_shape=jax.ShapeDtypeStruct((M4p, cw), x.dtype),
            compiler_params=_cparams(("parallel",), step_b4),
        )(_pad_rows(fold(y3), M4p), tilef(scale3), tilef(bias3),
          _pad_rows(fold(xs), M4p))

    if M4p != M2f:
        out_flat = out_flat[:M2f]
    out = out_flat.reshape(N, ho, wo, cout)
    return jnp.transpose(out, (0, 3, 1, 2))                      # NCHW


# ---------------- pure-JAX reference (for correctness check) ------------------
def _ref_forward(x_nhwc, p, *, stride, has_shortcut):
    def conv(h, w, s, pad):
        return jax.lax.conv_general_dilated(
            h, w, (s, s), pad, dimension_numbers=("NHWC", "HWIO", "NHWC"))

    def bn(h, g, b):
        m = h.mean((0, 1, 2))
        v = ((h - m) ** 2).mean((0, 1, 2))
        return (h - m) / jnp.sqrt(v + EPS) * g.reshape(-1) + b.reshape(-1)

    def lr(h):
        return jnp.where(h >= 0, h, SLOPE * h)

    h = conv(x_nhwc, p["w1"][None, None], 1, [(0, 0), (0, 0)])
    h = lr(bn(h, p["g1"], p["b1"]))
    h = conv(h, p["w3"], stride, [(1, 1), (1, 1)])
    h = lr(bn(h, p["g2"], p["b2"]))
    h = conv(h, p["w2"][None, None], 1, [(0, 0), (0, 0)])
    h = bn(h, p["g3"], p["b3"])
    if has_shortcut:
        s = conv(x_nhwc, p["wsc"][None, None], stride, [(0, 0), (0, 0)])
        s = bn(s, p["gsc"], p["bsc"])
    else:
        s = x_nhwc
    return lr(h + s)


if __name__ == "__main__":
    key = jax.random.PRNGKey(0)
    in_channels, out_channels, stride = 4, 8, 1
    expansion = 2
    cmid = out_channels
    cout = out_channels * expansion
    has_shortcut = (stride != 1) or (in_channels != cout)

    N, H, W = 2, 16, 16
    ks = jax.random.split(key, 5)
    params = {
        # conv weights stored as (Cin, Cout) for 1x1 and HWIO for the 3x3
        "w1": 0.1 * jax.random.normal(ks[0], (in_channels, cmid), jnp.float32),
        "g1": jnp.ones((cmid,), jnp.float32), "b1": jnp.zeros((cmid,), jnp.float32),
        "w3": 0.1 * jax.random.normal(ks[1], (3, 3, cmid, cmid), jnp.float32),
        "g2": jnp.ones((cmid,), jnp.float32), "b2": jnp.zeros((cmid,), jnp.float32),
        "w2": 0.1 * jax.random.normal(ks[2], (cmid, cout), jnp.float32),
        "g3": jnp.ones((cout,), jnp.float32), "b3": jnp.zeros((cout,), jnp.float32),
        "wsc": 0.1 * jax.random.normal(ks[3], (in_channels, cout), jnp.float32),
        "gsc": jnp.ones((cout,), jnp.float32), "bsc": jnp.zeros((cout,), jnp.float32),
    }
    x = jax.random.normal(ks[4], (N, in_channels, H, W), jnp.float32)

    fwd = jax.jit(functools.partial(bottleneck_forward,
                                    stride=stride, has_shortcut=has_shortcut))
    y = jax.block_until_ready(fwd(x, params))

    y_ref = _ref_forward(jnp.transpose(x, (0, 2, 3, 1)), params,
                         stride=stride, has_shortcut=has_shortcut)
    y_ref = jnp.transpose(y_ref, (0, 3, 1, 2))
    err = float(jnp.max(jnp.abs(y - y_ref)))
    assert err < 1e-3, f"mismatch vs reference: {err}"

    print("KERNEL_OK")
</pallas_src>

<mosaic_0001>
module attributes {stable_mosaic.version = 11 : i64} {
  func.func @_conv3_stats_kernel(%arg0: i32, %arg1: i32, %arg2: memref<1x16x16x8xf32, #tpu.memory_space<vmem>>, %arg3: memref<1x8xf32, #tpu.memory_space<vmem>>, %arg4: memref<1x8xf32, #tpu.memory_space<vmem>>, %arg5: memref<72x8xf32, #tpu.memory_space<vmem>>, %arg6: memref<1x16x16x8xf32, #tpu.memory_space<vmem>>, %arg7: memref<1x2x8xf32, #tpu.memory_space<vmem>>, %arg8: memref<18x18x8xf32, #tpu.memory_space<vmem>>) attributes {dimension_semantics = [#tpu.dimension_semantics<parallel>, #tpu.dimension_semantics<arbitrary>], iteration_bounds = array<i64: 2, 1>, scalar_prefetch = 0 : i64, scratch_operands = 1 : i64, tpu.core_type = #tpu.core_type<tc>, window_params = [{transform_indices = @transform_0, window_bounds = array<i64: 1, 16, 16, 8>}, {pipeline_mode = #tpu.pipeline_mode<synchronous>, transform_indices = @transform_1, window_bounds = array<i64: 1, 8>}, {pipeline_mode = #tpu.pipeline_mode<synchronous>, transform_indices = @transform_2, window_bounds = array<i64: 1, 8>}, {pipeline_mode = #tpu.pipeline_mode<synchronous>, transform_indices = @transform_3, window_bounds = array<i64: 72, 8>}, {transform_indices = @transform_4, window_bounds = array<i64: 1, 16, 16, 8>}, {transform_indices = @transform_5, window_bounds = array<i64: 1, 2, 8>}]} {
    %c16_i32 = arith.constant 16 : i32
    %0 = arith.muli %arg1, %c16_i32 : i32
    %c0 = arith.constant 0 : index
    %c0_0 = arith.constant 0 : index
    %1 = vector.load %arg3[%c0, %c0_0] : memref<1x8xf32, #tpu.memory_space<vmem>>, vector<1x8xf32>
    %c0_1 = arith.constant 0 : index
    %c0_2 = arith.constant 0 : index
    %2 = vector.load %arg4[%c0_1, %c0_2] : memref<1x8xf32, #tpu.memory_space<vmem>>, vector<1x8xf32>
    %c0_3 = arith.constant 0 : index
    %3 = arith.index_cast %0 : i32 to index
    %c0_4 = arith.constant 0 : index
    %c0_5 = arith.constant 0 : index
    %4 = vector.load %arg2[%c0_3, %3, %c0_4, %c0_5] : memref<1x16x16x8xf32, #tpu.memory_space<vmem>>, vector<1x16x16x8xf32>
    %5 = vector.shape_cast %4 : vector<1x16x16x8xf32> to vector<16x16x8xf32>
    %6 = vector.shape_cast %1 : vector<1x8xf32> to vector<1x1x8xf32>
    %7 = vector.broadcast %6 : vector<1x1x8xf32> to vector<16x16x8xf32>
    %8 = arith.mulf %5, %7 : vector<16x16x8xf32>
    %9 = vector.shape_cast %2 : vector<1x8xf32> to vector<1x1x8xf32>
    %10 = vector.broadcast %9 : vector<1x1x8xf32> to vector<16x16x8xf32>
    %11 = arith.addf %8, %10 : vector<16x16x8xf32>
    %cst = arith.constant 0.000000e+00 : f32
    %12 = vector.broadcast %cst : f32 to vector<16x16x8xf32>
    %13 = arith.cmpf oge, %11, %12 : vector<16x16x8xf32>
    %cst_6 = arith.constant 0.00999999977 : f32
    %14 = vector.broadcast %cst_6 : f32 to vector<16x16x8xf32>
    %15 = arith.mulf %14, %11 : vector<16x16x8xf32>
    %16 = arith.select %13, %11, %15 : vector<16x16x8xi1>, vector<16x16x8xf32>
    %c1 = arith.constant 1 : index
    %c1_7 = arith.constant 1 : index
    %c0_8 = arith.constant 0 : index
    %17 = vector.load %arg8[%c1, %c1_7, %c0_8] : memref<18x18x8xf32, #tpu.memory_space<vmem>>, vector<16x16x8xf32>
    tpu.vector_store %arg8[%c1, %c1_7, %c0_8], %16 {strides = array<i32>} : memref<18x18x8xf32, #tpu.memory_space<vmem>>, vector<16x16x8xf32>,
    %cst_9 = arith.constant 0.000000e+00 : f32
    %18 = vector.broadcast %cst_9 : f32 to vector<18x1x8xf32>
    %c0_10 = arith.constant 0 : index
    %c0_11 = arith.constant 0 : index
    %c0_12 = arith.constant 0 : index
    %19 = vector.load %arg8[%c0_10, %c0_11, %c0_12] : memref<18x18x8xf32, #tpu.memory_space<vmem>>, vector<18x1x8xf32>
    tpu.vector_store %arg8[%c0_10, %c0_11, %c0_12], %18 {strides = array<i32>} : memref<18x18x8xf32, #tpu.memory_space<vmem>>, vector<18x1x8xf32>,
    %c0_13 = arith.constant 0 : index
    %c17 = arith.constant 17 : index
    %c0_14 = arith.constant 0 : index
    %20 = vector.load %arg8[%c0_13, %c17, %c0_14] : memref<18x18x8xf32, #tpu.memory_space<vmem>>, vector<18x1x8xf32>
    tpu.vector_store %arg8[%c0_13, %c17, %c0_14], %18 {strides = array<i32>} : memref<18x18x8xf32, #tpu.memory_space<vmem>>, vector<18x1x8xf32>,
    %cst_15 = arith.constant 0.000000e+00 : f32
    %21 = vector.broadcast %cst_15 : f32 to vector<1x16x8xf32>
    %c0_i32 = arith.constant 0 : i32
    %22 = arith.cmpi eq, %arg1, %c0_i32 : i32
    %23 = arith.extui %22 : i1 to i32
    %c0_i32_16 = arith.constant 0 : i32
    %24 = arith.cmpi ne, %23, %c0_i32_16 : i32
    scf.if %24 {
      %c0_41 = arith.constant 0 : index
      %c1_42 = arith.constant 1 : index
      %c0_43 = arith.constant 0 : index
      %71 = vector.load %arg8[%c0_41, %c1_42, %c0_43] : memref<18x18x8xf32, #tpu.memory_space<vmem>>, vector<1x16x8xf32>
      tpu.vector_store %arg8[%c0_41, %c1_42, %c0_43], %21 {strides = array<i32>} : memref<18x18x8xf32, #tpu.memory_space<vmem>>, vector<1x16x8xf32>,
    } else {
    }
    %c0_i32_17 = arith.constant 0 : i32
    %25 = arith.cmpi sgt, %arg1, %c0_i32_17 : i32
    %26 = arith.extui %25 : i1 to i32
    %c0_i32_18 = arith.constant 0 : i32
    %27 = arith.cmpi ne, %26, %c0_i32_18 : i32
    scf.if %27 {
      %c1_i32 = arith.constant 1 : i32
      %71 = arith.subi %0, %c1_i32 : i32
      %c0_41 = arith.constant 0 : index
      %72 = arith.index_cast %71 : i32 to index
      %c0_42 = arith.constant 0 : index
      %c0_43 = arith.constant 0 : index
      %73 = vector.load %arg2[%c0_41, %72, %c0_42, %c0_43] : memref<1x16x16x8xf32, #tpu.memory_space<vmem>>, vector<1x1x16x8xf32>
      %74 = vector.shape_cast %73 : vector<1x1x16x8xf32> to vector<1x16x8xf32>
      %75 = vector.shape_cast %1 : vector<1x8xf32> to vector<1x1x8xf32>
      %76 = vector.broadcast %75 : vector<1x1x8xf32> to vector<1x16x8xf32>
      %77 = arith.mulf %74, %76 : vector<1x16x8xf32>
      %78 = vector.shape_cast %2 : vector<1x8xf32> to vector<1x1x8xf32>
      %79 = vector.broadcast %78 : vector<1x1x8xf32> to vector<1x16x8xf32>
      %80 = arith.addf %77, %79 : vector<1x16x8xf32>
      %cst_44 = arith.constant 0.000000e+00 : f32
      %81 = vector.broadcast %cst_44 : f32 to vector<1x16x8xf32>
      %82 = arith.cmpf oge, %80, %81 : vector<1x16x8xf32>
      %cst_45 = arith.constant 0.00999999977 : f32
      %83 = vector.broadcast %cst_45 : f32 to vector<1x16x8xf32>
      %84 = arith.mulf %83, %80 : vector<1x16x8xf32>
      %85 = arith.select %82, %80, %84 : vector<1x16x8xi1>, vector<1x16x8xf32>
      %c0_46 = arith.constant 0 : index
      %c1_47 = arith.constant 1 : index
      %c0_48 = arith.constant 0 : index
      %86 = vector.load %arg8[%c0_46, %c1_47, %c0_48] : memref<18x18x8xf32, #tpu.memory_space<vmem>>, vector<1x16x8xf32>
      tpu.vector_store %arg8[%c0_46, %c1_47, %c0_48], %85 {strides = array<i32>} : memref<18x18x8xf32, #tpu.memory_space<vmem>>, vector<1x16x8xf32>,
    } else {
    }
    %c0_i32_19 = arith.constant 0 : i32
    %28 = arith.cmpi eq, %arg1, %c0_i32_19 : i32
    %29 = arith.extui %28 : i1 to i32
    %c0_i32_20 = arith.constant 0 : i32
    %30 = arith.cmpi ne, %29, %c0_i32_20 : i32
    scf.if %30 {
      %c17_41 = arith.constant 17 : index
      %c1_42 = arith.constant 1 : index
      %c0_43 = arith.constant 0 : index
      %71 = vector.load %arg8[%c17_41, %c1_42, %c0_43] : memref<18x18x8xf32, #tpu.memory_space<vmem>>, vector<1x16x8xf32>
      tpu.vector_store %arg8[%c17_41, %c1_42, %c0_43], %21 {strides = array<i32>} : memref<18x18x8xf32, #tpu.memory_space<vmem>>, vector<1x16x8xf32>,
    } else {
    }
    %c0_i32_21 = arith.constant 0 : i32
    %31 = arith.cmpi slt, %arg1, %c0_i32_21 : i32
    %32 = arith.extui %31 : i1 to i32
    %c0_i32_22 = arith.constant 0 : i32
    %33 = arith.cmpi ne, %32, %c0_i32_22 : i32
    scf.if %33 {
      %c16_i32_41 = arith.constant 16 : i32
      %71 = arith.addi %0, %c16_i32_41 : i32
      %c0_42 = arith.constant 0 : index
      %72 = arith.index_cast %71 : i32 to index
      %c0_43 = arith.constant 0 : index
      %c0_44 = arith.constant 0 : index
      %73 = vector.load %arg2[%c0_42, %72, %c0_43, %c0_44] : memref<1x16x16x8xf32, #tpu.memory_space<vmem>>, vector<1x1x16x8xf32>
      %74 = vector.shape_cast %73 : vector<1x1x16x8xf32> to vector<1x16x8xf32>
      %75 = vector.shape_cast %1 : vector<1x8xf32> to vector<1x1x8xf32>
      %76 = vector.broadcast %75 : vector<1x1x8xf32> to vector<1x16x8xf32>
      %77 = arith.mulf %74, %76 : vector<1x16x8xf32>
      %78 = vector.shape_cast %2 : vector<1x8xf32> to vector<1x1x8xf32>
      %79 = vector.broadcast %78 : vector<1x1x8xf32> to vector<1x16x8xf32>
      %80 = arith.addf %77, %79 : vector<1x16x8xf32>
      %cst_45 = arith.constant 0.000000e+00 : f32
      %81 = vector.broadcast %cst_45 : f32 to vector<1x16x8xf32>
      %82 = arith.cmpf oge, %80, %81 : vector<1x16x8xf32>
      %cst_46 = arith.constant 0.00999999977 : f32
      %83 = vector.broadcast %cst_46 : f32 to vector<1x16x8xf32>
      %84 = arith.mulf %83, %80 : vector<1x16x8xf32>
      %85 = arith.select %82, %80, %84 : vector<1x16x8xi1>, vector<1x16x8xf32>
      %c17_47 = arith.constant 17 : index
      %c1_48 = arith.constant 1 : index
      %c0_49 = arith.constant 0 : index
      %86 = vector.load %arg8[%c17_47, %c1_48, %c0_49] : memref<18x18x8xf32, #tpu.memory_space<vmem>>, vector<1x16x8xf32>
      tpu.vector_store %arg8[%c17_47, %c1_48, %c0_49], %85 {strides = array<i32>} : memref<18x18x8xf32, #tpu.memory_space<vmem>>, vector<1x16x8xf32>,
    } else {
    }
    %c0_23 = arith.constant 0 : index
    %c0_24 = arith.constant 0 : index
    %c0_25 = arith.constant 0 : index
    %34 = vector.load %arg8[%c0_23, %c0_24, %c0_25] : memref<18x18x8xf32, #tpu.memory_space<vmem>>, vector<18x18x8xf32>
    %35 = vector.extract_strided_slice %34 {offsets = [0, 0, 0], sizes = [16, 16, 8], strides = [1, 1, 1]} : vector<18x18x8xf32> to vector<16x16x8xf32>
    %36 = vector.shape_cast %35 : vector<16x16x8xf32> to vector<256x8xf32>
    %37 = vector.extract_strided_slice %34 {offsets = [0, 1, 0], sizes = [16, 16, 8], strides = [1, 1, 1]} : vector<18x18x8xf32> to vector<16x16x8xf32>
    %38 = vector.shape_cast %37 : vector<16x16x8xf32> to vector<256x8xf32>
    %39 = vector.extract_strided_slice %34 {offsets = [0, 2, 0], sizes = [16, 16, 8], strides = [1, 1, 1]} : vector<18x18x8xf32> to vector<16x16x8xf32>
    %40 = vector.shape_cast %39 : vector<16x16x8xf32> to vector<256x8xf32>
    %41 = vector.extract_strided_slice %34 {offsets = [1, 0, 0], sizes = [16, 16, 8], strides = [1, 1, 1]} : vector<18x18x8xf32> to vector<16x16x8xf32>
    %42 = vector.shape_cast %41 : vector<16x16x8xf32> to vector<256x8xf32>
    %43 = vector.extract_strided_slice %34 {offsets = [1, 1, 0], sizes = [16, 16, 8], strides = [1, 1, 1]} : vector<18x18x8xf32> to vector<16x16x8xf32>
    %44 = vector.shape_cast %43 : vector<16x16x8xf32> to vector<256x8xf32>
    %45 = vector.extract_strided_slice %34 {offsets = [1, 2, 0], sizes = [16, 16, 8], strides = [1, 1, 1]} : vector<18x18x8xf32> to vector<16x16x8xf32>
    %46 = vector.shape_cast %45 : vector<16x16x8xf32> to vector<256x8xf32>
    %47 = vector.extract_strided_slice %34 {offsets = [2, 0, 0], sizes = [16, 16, 8], strides = [1, 1, 1]} : vector<18x18x8xf32> to vector<16x16x8xf32>
    %48 = vector.shape_cast %47 : vector<16x16x8xf32> to vector<256x8xf32>
    %49 = vector.extract_strided_slice %34 {offsets = [2, 1, 0], sizes = [16, 16, 8], strides = [1, 1, 1]} : vector<18x18x8xf32> to vector<16x16x8xf32>
    %50 = vector.shape_cast %49 : vector<16x16x8xf32> to vector<256x8xf32>
    %51 = vector.extract_strided_slice %34 {offsets = [2, 2, 0], sizes = [16, 16, 8], strides = [1, 1, 1]} : vector<18x18x8xf32> to vector<16x16x8xf32>
    %52 = vector.shape_cast %51 : vector<16x16x8xf32> to vector<256x8xf32>
    %53 = tpu.concatenate %36, %38, %40, %42, %44, %46, %48, %50, %52 in 1 : vector<256x8xf32>, vector<256x8xf32>, vector<256x8xf32>, vector<256x8xf32>, vector<256x8xf32>, vector<256x8xf32>, vector<256x8xf32>, vector<256x8xf32>, vector<256x8xf32> -> vector<256x72xf32>
    %c0_26 = arith.constant 0 : index
    %c0_27 = arith.constant 0 : index
    %54 = vector.load %arg5[%c0_26, %c0_27] : memref<72x8xf32, #tpu.memory_space<vmem>>, vector<72x8xf32>
    %cst_28 = arith.constant dense<0.000000e+00> : vector<256x8xf32>
    %55 = tpu.matmul %53, %54, %cst_28 {dimension_numbers = #tpu.dot_dimension_numbers<[1], [0], [0], [1], [0, 0, 1, 1], [], []>} : vector<256x72xf32>, vector<72x8xf32>, vector<256x8xf32> -> vector<256x8xf32>
    %56 = vector.shape_cast %55 : vector<256x8xf32> to vector<16x16x8xf32>
    %c0_29 = arith.constant 0 : index
    %c0_30 = arith.constant 0 : index
    %c0_31 = arith.constant 0 : index
    %c0_32 = arith.constant 0 : index
    %57 = vector.load %arg6[%c0_29, %c0_30, %c0_31, %c0_32] : memref<1x16x16x8xf32, #tpu.memory_space<vmem>>, vector<1x16x16x8xf32>
    %58 = vector.shape_cast %57 : vector<1x16x16x8xf32> to vector<16x16x8xf32>
    %59 = vector.shape_cast %56 : vector<16x16x8xf32> to vector<1x16x16x8xf32>
    tpu.vector_store %arg6[%c0_29, %c0_30, %c0_31, %c0_32], %59 {strides = array<i32>} : memref<1x16x16x8xf32, #tpu.memory_space<vmem>>, vector<1x16x16x8xf32>,
    %cst_33 = arith.constant dense<0.000000e+00> : vector<8xf32>
    %60 = vector.multi_reduction <add>, %55, %cst_33 [0] : vector<256x8xf32> to vector<8xf32>
    %61 = vector.shape_cast %60 : vector<8xf32> to vector<1x8xf32>
    %c0_34 = arith.constant 0 : index
    %c0_35 = arith.constant 0 : index
    %c0_36 = arith.constant 0 : index
    %62 = vector.load %arg7[%c0_34, %c0_35, %c0_36] : memref<1x2x8xf32, #tpu.memory_space<vmem>>, vector<1x1x8xf32>
    %63 = vector.shape_cast %62 : vector<1x1x8xf32> to vector<1x8xf32>
    %64 = vector.shape_cast %61 : vector<1x8xf32> to vector<1x1x8xf32>
    tpu.vector_store %arg7[%c0_34, %c0_35, %c0_36], %64 {strides = array<i32>} : memref<1x2x8xf32, #tpu.memory_space<vmem>>, vector<1x1x8xf32>,
    %65 = arith.mulf %55, %55 : vector<256x8xf32>
    %cst_37 = arith.constant dense<0.000000e+00> : vector<8xf32>
    %66 = vector.multi_reduction <add>, %65, %cst_37 [0] : vector<256x8xf32> to vector<8xf32>
    %67 = vector.shape_cast %66 : vector<8xf32> to vector<1x8xf32>
    %c0_38 = arith.constant 0 : index
    %c1_39 = arith.constant 1 : index
    %c0_40 = arith.constant 0 : index
    %68 = vector.load %arg7[%c0_38, %c1_39, %c0_40] : memref<1x2x8xf32, #tpu.memory_space<vmem>>, vector<1x1x8xf32>
    %69 = vector.shape_cast %68 : vector<1x1x8xf32> to vector<1x8xf32>
    %70 = vector.shape_cast %67 : vector<1x8xf32> to vector<1x1x8xf32>
    tpu.vector_store %arg7[%c0_38, %c1_39, %c0_40], %70 {strides = array<i32>} : memref<1x2x8xf32, #tpu.memory_space<vmem>>, vector<1x1x8xf32>,
    return
  }
  func.func @transform_0(%arg0: i32, %arg1: i32) -> (i32, i32, i32, i32) {
    %c0_i32 = arith.constant 0 : i32
    %c0_i32_0 = arith.constant 0 : i32
    %c0_i32_1 = arith.constant 0 : i32
    %c0_i32_2 = arith.constant 0 : i32
    return %arg0, %c0_i32, %c0_i32_0, %c0_i32_1 : i32, i32, i32, i32
  }
  func.func @transform_1(%arg0: i32, %arg1: i32) -> (i32, i32) {
    %c0_i32 = arith.constant 0 : i32
    %c0_i32_0 = arith.constant 0 : i32
    %c0_i32_1 = arith.constant 0 : i32
    return %c0_i32, %c0_i32_0 : i32, i32
  }
  func.func @transform_2(%arg0: i32, %arg1: i32) -> (i32, i32) {
    %c0_i32 = arith.constant 0 : i32
    %c0_i32_0 = arith.constant 0 : i32
    %c0_i32_1 = arith.constant 0 : i32
    return %c0_i32, %c0_i32_0 : i32, i32
  }
  func.func @transform_3(%arg0: i32, %arg1: i32) -> (i32, i32) {
    %c0_i32 = arith.constant 0 : i32
    %c0_i32_0 = arith.constant 0 : i32
    %c0_i32_1 = arith.constant 0 : i32
    return %c0_i32, %c0_i32_0 : i32, i32
  }
  func.func @transform_4(%arg0: i32, %arg1: i32) -> (i32, i32, i32, i32) {
    %c0_i32 = arith.constant 0 : i32
    %c0_i32_0 = arith.constant 0 : i32
    %c0_i32_1 = arith.constant 0 : i32
    return %arg0, %arg1, %c0_i32, %c0_i32_0 : i32, i32, i32, i32
  }
  func.func @transform_5(%arg0: i32, %arg1: i32) -> (i32, i32, i32) {
    %c1_i32 = arith.constant 1 : i32
    %0 = arith.muli %arg0, %c1_i32 : i32
    %1 = arith.addi %0, %arg1 : i32
    %c0_i32 = arith.constant 0 : i32
    %c0_i32_0 = arith.constant 0 : i32
    %c0_i32_1 = arith.constant 0 : i32
    return %1, %c0_i32, %c0_i32_0 : i32, i32, i32
  }
}

module attributes {stable_mosaic.version = 11 : i64} {
  func.func @_conv1_stats_kernel(%arg0: i32, %arg1: memref<512x4xf32, #tpu.memory_space<vmem>>, %arg2: memref<4x8xf32, #tpu.memory_space<vmem>>, %arg3: memref<512x8xf32, #tpu.memory_space<vmem>>, %arg4: memref<1x2x8xf32, #tpu.memory_space<vmem>>) attributes {dimension_semantics = [#tpu.dimension_semantics<parallel>], iteration_bounds = array<i64: 1>, scalar_prefetch = 0 : i64, scratch_operands = 0 : i64, tpu.core_type = #tpu.core_type<tc>, window_params = [{transform_indices = @transform_0, window_bounds = array<i64: 512, 4>}, {pipeline_mode = #tpu.pipeline_mode<synchronous>, transform_indices = @transform_1, window_bounds = array<i64: 4, 8>}, {transform_indices = @transform_2, window_bounds = array<i64: 512, 8>}, {transform_indices = @transform_3, window_bounds = array<i64: 1, 2, 8>}]} {
    %c0 = arith.constant 0 : index
    %c0_0 = arith.constant 0 : index
    %0 = vector.load %arg1[%c0, %c0_0] : memref<512x4xf32, #tpu.memory_space<vmem>>, vector<512x4xf32>
    %c0_1 = arith.constant 0 : index
    %c0_2 = arith.constant 0 : index
    %1 = vector.load %arg2[%c0_1, %c0_2] : memref<4x8xf32, #tpu.memory_space<vmem>>, vector<4x8xf32>
    %cst = arith.constant dense<0.000000e+00> : vector<512x8xf32>
    %2 = tpu.matmul %0, %1, %cst {dimension_numbers = #tpu.dot_dimension_numbers<[1], [0], [0], [1], [0, 0, 1, 1], [], []>} : vector<512x4xf32>, vector<4x8xf32>, vector<512x8xf32> -> vector<512x8xf32>
    %c0_3 = arith.constant 0 : index
    %c0_4 = arith.constant 0 : index
    %3 = vector.load %arg3[%c0_3, %c0_4] : memref<512x8xf32, #tpu.memory_space<vmem>>, vector<512x8xf32>
    tpu.vector_store %arg3[%c0_3, %c0_4], %2 {strides = array<i32>} : memref<512x8xf32, #tpu.memory_space<vmem>>, vector<512x8xf32>,
    %cst_5 = arith.constant dense<0.000000e+00> : vector<8xf32>
    %4 = vector.multi_reduction <add>, %2, %cst_5 [0] : vector<512x8xf32> to vector<8xf32>
    %5 = vector.shape_cast %4 : vector<8xf32> to vector<1x8xf32>
    %c0_6 = arith.constant 0 : index
    %c0_7 = arith.constant 0 : index
    %c0_8 = arith.constant 0 : index
    %6 = vector.load %arg4[%c0_6, %c0_7, %c0_8] : memref<1x2x8xf32, #tpu.memory_space<vmem>>, vector<1x1x8xf32>
    %7 = vector.shape_cast %6 : vector<1x1x8xf32> to vector<1x8xf32>
    %8 = vector.shape_cast %5 : vector<1x8xf32> to vector<1x1x8xf32>
    tpu.vector_store %arg4[%c0_6, %c0_7, %c0_8], %8 {strides = array<i32>} : memref<1x2x8xf32, #tpu.memory_space<vmem>>, vector<1x1x8xf32>,
    %9 = arith.mulf %2, %2 : vector<512x8xf32>
    %cst_9 = arith.constant dense<0.000000e+00> : vector<8xf32>
    %10 = vector.multi_reduction <add>, %9, %cst_9 [0] : vector<512x8xf32> to vector<8xf32>
    %11 = vector.shape_cast %10 : vector<8xf32> to vector<1x8xf32>
    %c0_10 = arith.constant 0 : index
    %c1 = arith.constant 1 : index
    %c0_11 = arith.constant 0 : index
    %12 = vector.load %arg4[%c0_10, %c1, %c0_11] : memref<1x2x8xf32, #tpu.memory_space<vmem>>, vector<1x1x8xf32>
    %13 = vector.shape_cast %12 : vector<1x1x8xf32> to vector<1x8xf32>
    %14 = vector.shape_cast %11 : vector<1x8xf32> to vector<1x1x8xf32>
    tpu.vector_store %arg4[%c0_10, %c1, %c0_11], %14 {strides = array<i32>} : memref<1x2x8xf32, #tpu.memory_space<vmem>>, vector<1x1x8xf32>,
    return
  }
  func.func @transform_0(%arg0: i32) -> (i32, i32) {
    %c0_i32 = arith.constant 0 : i32
    %c0_i32_0 = arith.constant 0 : i32
    return %arg0, %c0_i32 : i32, i32
  }
  func.func @transform_1(%arg0: i32) -> (i32, i32) {
    %c0_i32 = arith.constant 0 : i32
    %c0_i32_0 = arith.constant 0 : i32
    %c0_i32_1 = arith.constant 0 : i32
    return %c0_i32, %c0_i32_0 : i32, i32
  }
  func.func @transform_2(%arg0: i32) -> (i32, i32) {
    %c0_i32 = arith.constant 0 : i32
    %c0_i32_0 = arith.constant 0 : i32
    return %arg0, %c0_i32 : i32, i32
  }
  func.func @transform_3(%arg0: i32) -> (i32, i32, i32) {
    %c0_i32 = arith.constant 0 : i32
    %c0_i32_0 = arith.constant 0 : i32
    %c0_i32_1 = arith.constant 0 : i32
    return %arg0, %c0_i32, %c0_i32_0 : i32, i32, i32
  }
}

module attributes {stable_mosaic.version = 11 : i64} {
  func.func @_conv2_sc_stats_kernel(%arg0: i32, %arg1: memref<512x8xf32, #tpu.memory_space<vmem>>, %arg2: memref<1x8xf32, #tpu.memory_space<vmem>>, %arg3: memref<1x8xf32, #tpu.memory_space<vmem>>, %arg4: memref<8x16xf32, #tpu.memory_space<vmem>>, %arg5: memref<512x4xf32, #tpu.memory_space<vmem>>, %arg6: memref<4x16xf32, #tpu.memory_space<vmem>>, %arg7: memref<512x16xf32, #tpu.memory_space<vmem>>, %arg8: memref<1x2x16xf32, #tpu.memory_space<vmem>>, %arg9: memref<512x16xf32, #tpu.memory_space<vmem>>, %arg10: memref<1x2x16xf32, #tpu.memory_space<vmem>>) attributes {dimension_semantics = [#tpu.dimension_semantics<parallel>], iteration_bounds = array<i64: 1>, scalar_prefetch = 0 : i64, scratch_operands = 0 : i64, tpu.core_type = #tpu.core_type<tc>, window_params = [{transform_indices = @transform_0, window_bounds = array<i64: 512, 8>}, {pipeline_mode = #tpu.pipeline_mode<synchronous>, transform_indices = @transform_1, window_bounds = array<i64: 1, 8>}, {pipeline_mode = #tpu.pipeline_mode<synchronous>, transform_indices = @transform_2, window_bounds = array<i64: 1, 8>}, {pipeline_mode = #tpu.pipeline_mode<synchronous>, transform_indices = @transform_3, window_bounds = array<i64: 8, 16>}, {transform_indices = @transform_4, window_bounds = array<i64: 512, 4>}, {pipeline_mode = #tpu.pipeline_mode<synchronous>, transform_indices = @transform_5, window_bounds = array<i64: 4, 16>}, {transform_indices = @transform_6, window_bounds = array<i64: 512, 16>}, {transform_indices = @transform_7, window_bounds = array<i64: 1, 2, 16>}, {transform_indices = @transform_8, window_bounds = array<i64: 512, 16>}, {transform_indices = @transform_9, window_bounds = array<i64: 1, 2, 16>}]} {
    %c0 = arith.constant 0 : index
    %c0_0 = arith.constant 0 : index
    %0 = vector.load %arg1[%c0, %c0_0] : memref<512x8xf32, #tpu.memory_space<vmem>>, vector<512x8xf32>
    %c0_1 = arith.constant 0 : index
    %c0_2 = arith.constant 0 : index
    %1 = vector.load %arg2[%c0_1, %c0_2] : memref<1x8xf32, #tpu.memory_space<vmem>>, vector<1x8xf32>
    %2 = vector.broadcast %1 : vector<1x8xf32> to vector<512x8xf32>
    %3 = arith.mulf %0, %2 : vector<512x8xf32>
    %c0_3 = arith.constant 0 : index
    %c0_4 = arith.constant 0 : index
    %4 = vector.load %arg3[%c0_3, %c0_4] : memref<1x8xf32, #tpu.memory_space<vmem>>, vector<1x8xf32>
    %5 = vector.broadcast %4 : vector<1x8xf32> to vector<512x8xf32>
    %6 = arith.addf %3, %5 : vector<512x8xf32>
    %cst = arith.constant 0.000000e+00 : f32
    %7 = vector.broadcast %cst : f32 to vector<512x8xf32>
    %8 = arith.cmpf oge, %6, %7 : vector<512x8xf32>
    %cst_5 = arith.constant 0.00999999977 : f32
    %9 = vector.broadcast %cst_5 : f32 to vector<512x8xf32>
    %10 = arith.mulf %9, %6 : vector<512x8xf32>
    %11 = arith.select %8, %6, %10 : vector<512x8xi1>, vector<512x8xf32>
    %c0_6 = arith.constant 0 : index
    %c0_7 = arith.constant 0 : index
    %12 = vector.load %arg4[%c0_6, %c0_7] : memref<8x16xf32, #tpu.memory_space<vmem>>, vector<8x16xf32>
    %cst_8 = arith.constant dense<0.000000e+00> : vector<512x16xf32>
    %13 = tpu.matmul %11, %12, %cst_8 {dimension_numbers = #tpu.dot_dimension_numbers<[1], [0], [0], [1], [0, 0, 1, 1], [], []>} : vector<512x8xf32>, vector<8x16xf32>, vector<512x16xf32> -> vector<512x16xf32>
    %c0_9 = arith.constant 0 : index
    %c0_10 = arith.constant 0 : index
    %14 = vector.load %arg7[%c0_9, %c0_10] : memref<512x16xf32, #tpu.memory_space<vmem>>, vector<512x16xf32>
    tpu.vector_store %arg7[%c0_9, %c0_10], %13 {strides = array<i32>} : memref<512x16xf32, #tpu.memory_space<vmem>>, vector<512x16xf32>,
    %cst_11 = arith.constant dense<0.000000e+00> : vector<16xf32>
    %15 = vector.multi_reduction <add>, %13, %cst_11 [0] : vector<512x16xf32> to vector<16xf32>
    %16 = vector.shape_cast %15 : vector<16xf32> to vector<1x16xf32>
    %c0_12 = arith.constant 0 : index
    %c0_13 = arith.constant 0 : index
    %c0_14 = arith.constant 0 : index
    %17 = vector.load %arg8[%c0_12, %c0_13, %c0_14] : memref<1x2x16xf32, #tpu.memory_space<vmem>>, vector<1x1x16xf32>
    %18 = vector.shape_cast %17 : vector<1x1x16xf32> to vector<1x16xf32>
    %19 = vector.shape_cast %16 : vector<1x16xf32> to vector<1x1x16xf32>
    tpu.vector_store %arg8[%c0_12, %c0_13, %c0_14], %19 {strides = array<i32>} : memref<1x2x16xf32, #tpu.memory_space<vmem>>, vector<1x1x16xf32>,
    %20 = arith.mulf %13, %13 : vector<512x16xf32>
    %cst_15 = arith.constant dense<0.000000e+00> : vector<16xf32>
    %21 = vector.multi_reduction <add>, %20, %cst_15 [0] : vector<512x16xf32> to vector<16xf32>
    %22 = vector.shape_cast %21 : vector<16xf32> to vector<1x16xf32>
    %c0_16 = arith.constant 0 : index
    %c1 = arith.constant 1 : index
    %c0_17 = arith.constant 0 : index
    %23 = vector.load %arg8[%c0_16, %c1, %c0_17] : memref<1x2x16xf32, #tpu.memory_space<vmem>>, vector<1x1x16xf32>
    %24 = vector.shape_cast %23 : vector<1x1x16xf32> to vector<1x16xf32>
    %25 = vector.shape_cast %22 : vector<1x16xf32> to vector<1x1x16xf32>
    tpu.vector_store %arg8[%c0_16, %c1, %c0_17], %25 {strides = array<i32>} : memref<1x2x16xf32, #tpu.memory_space<vmem>>, vector<1x1x16xf32>,
    %c0_18 = arith.constant 0 : index
    %c0_19 = arith.constant 0 : index
    %26 = vector.load %arg5[%c0_18, %c0_19] : memref<512x4xf32, #tpu.memory_space<vmem>>, vector<512x4xf32>
    %c0_20 = arith.constant 0 : index
    %c0_21 = arith.constant 0 : index
    %27 = vector.load %arg6[%c0_20, %c0_21] : memref<4x16xf32, #tpu.memory_space<vmem>>, vector<4x16xf32>
    %cst_22 = arith.constant dense<0.000000e+00> : vector<512x16xf32>
    %28 = tpu.matmul %26, %27, %cst_22 {dimension_numbers = #tpu.dot_dimension_numbers<[1], [0], [0], [1], [0, 0, 1, 1], [], []>} : vector<512x4xf32>, vector<4x16xf32>, vector<512x16xf32> -> vector<512x16xf32>
    %c0_23 = arith.constant 0 : index
    %c0_24 = arith.constant 0 : index
    %29 = vector.load %arg9[%c0_23, %c0_24] : memref<512x16xf32, #tpu.memory_space<vmem>>, vector<512x16xf32>
    tpu.vector_store %arg9[%c0_23, %c0_24], %28 {strides = array<i32>} : memref<512x16xf32, #tpu.memory_space<vmem>>, vector<512x16xf32>,
    %cst_25 = arith.constant dense<0.000000e+00> : vector<16xf32>
    %30 = vector.multi_reduction <add>, %28, %cst_25 [0] : vector<512x16xf32> to vector<16xf32>
    %31 = vector.shape_cast %30 : vector<16xf32> to vector<1x16xf32>
    %c0_26 = arith.constant 0 : index
    %c0_27 = arith.constant 0 : index
    %c0_28 = arith.constant 0 : index
    %32 = vector.load %arg10[%c0_26, %c0_27, %c0_28] : memref<1x2x16xf32, #tpu.memory_space<vmem>>, vector<1x1x16xf32>
    %33 = vector.shape_cast %32 : vector<1x1x16xf32> to vector<1x16xf32>
    %34 = vector.shape_cast %31 : vector<1x16xf32> to vector<1x1x16xf32>
    tpu.vector_store %arg10[%c0_26, %c0_27, %c0_28], %34 {strides = array<i32>} : memref<1x2x16xf32, #tpu.memory_space<vmem>>, vector<1x1x16xf32>,
    %35 = arith.mulf %28, %28 : vector<512x16xf32>
    %cst_29 = arith.constant dense<0.000000e+00> : vector<16xf32>
    %36 = vector.multi_reduction <add>, %35, %cst_29 [0] : vector<512x16xf32> to vector<16xf32>
    %37 = vector.shape_cast %36 : vector<16xf32> to vector<1x16xf32>
    %c0_30 = arith.constant 0 : index
    %c1_31 = arith.constant 1 : index
    %c0_32 = arith.constant 0 : index
    %38 = vector.load %arg10[%c0_30, %c1_31, %c0_32] : memref<1x2x16xf32, #tpu.memory_space<vmem>>, vector<1x1x16xf32>
    %39 = vector.shape_cast %38 : vector<1x1x16xf32> to vector<1x16xf32>
    %40 = vector.shape_cast %37 : vector<1x16xf32> to vector<1x1x16xf32>
    tpu.vector_store %arg10[%c0_30, %c1_31, %c0_32], %40 {strides = array<i32>} : memref<1x2x16xf32, #tpu.memory_space<vmem>>, vector<1x1x16xf32>,
    return
  }
  func.func @transform_0(%arg0: i32) -> (i32, i32) {
    %c0_i32 = arith.constant 0 : i32
    %c0_i32_0 = arith.constant 0 : i32
    return %arg0, %c0_i32 : i32, i32
  }
  func.func @transform_1(%arg0: i32) -> (i32, i32) {
    %c0_i32 = arith.constant 0 : i32
    %c0_i32_0 = arith.constant 0 : i32
    %c0_i32_1 = arith.constant 0 : i32
    return %c0_i32, %c0_i32_0 : i32, i32
  }
  func.func @transform_2(%arg0: i32) -> (i32, i32) {
    %c0_i32 = arith.constant 0 : i32
    %c0_i32_0 = arith.constant 0 : i32
    %c0_i32_1 = arith.constant 0 : i32
    return %c0_i32, %c0_i32_0 : i32, i32
  }
  func.func @transform_3(%arg0: i32) -> (i32, i32) {
    %c0_i32 = arith.constant 0 : i32
    %c0_i32_0 = arith.constant 0 : i32
    %c0_i32_1 = arith.constant 0 : i32
    return %c0_i32, %c0_i32_0 : i32, i32
  }
  func.func @transform_4(%arg0: i32) -> (i32, i32) {
    %c0_i32 = arith.constant 0 : i32
    %c0_i32_0 = arith.constant 0 : i32
    return %arg0, %c0_i32 : i32, i32
  }
  func.func @transform_5(%arg0: i32) -> (i32, i32) {
    %c0_i32 = arith.constant 0 : i32
    %c0_i32_0 = arith.constant 0 : i32
    %c0_i32_1 = arith.constant 0 : i32
    return %c0_i32, %c0_i32_0 : i32, i32
  }
  func.func @transform_6(%arg0: i32) -> (i32, i32) {
    %c0_i32 = arith.constant 0 : i32
    %c0_i32_0 = arith.constant 0 : i32
    return %arg0, %c0_i32 : i32, i32
  }
  func.func @transform_7(%arg0: i32) -> (i32, i32, i32) {
    %c0_i32 = arith.constant 0 : i32
    %c0_i32_0 = arith.constant 0 : i32
    %c0_i32_1 = arith.constant 0 : i32
    return %arg0, %c0_i32, %c0_i32_0 : i32, i32, i32
  }
  func.func @transform_8(%arg0: i32) -> (i32, i32) {
    %c0_i32 = arith.constant 0 : i32
    %c0_i32_0 = arith.constant 0 : i32
    return %arg0, %c0_i32 : i32, i32
  }
  func.func @transform_9(%arg0: i32) -> (i32, i32, i32) {
    %c0_i32 = arith.constant 0 : i32
    %c0_i32_0 = arith.constant 0 : i32
    %c0_i32_1 = arith.constant 0 : i32
    return %arg0, %c0_i32, %c0_i32_0 : i32, i32, i32
  }
}

module attributes {stable_mosaic.version = 11 : i64} {
  func.func @_finalize_sc_kernel(%arg0: i32, %arg1: memref<64x128xf32, #tpu.memory_space<vmem>>, %arg2: memref<1x128xf32, #tpu.memory_space<vmem>>, %arg3: memref<1x128xf32, #tpu.memory_space<vmem>>, %arg4: memref<64x128xf32, #tpu.memory_space<vmem>>, %arg5: memref<1x128xf32, #tpu.memory_space<vmem>>, %arg6: memref<1x128xf32, #tpu.memory_space<vmem>>, %arg7: memref<64x128xf32, #tpu.memory_space<vmem>>) attributes {dimension_semantics = [#tpu.dimension_semantics<parallel>], iteration_bounds = array<i64: 1>, scalar_prefetch = 0 : i64, scratch_operands = 0 : i64, tpu.core_type = #tpu.core_type<tc>, window_params = [{transform_indices = @transform_0, window_bounds = array<i64: 64, 128>}, {pipeline_mode = #tpu.pipeline_mode<synchronous>, transform_indices = @transform_1, window_bounds = array<i64: 1, 128>}, {pipeline_mode = #tpu.pipeline_mode<synchronous>, transform_indices = @transform_2, window_bounds = array<i64: 1, 128>}, {transform_indices = @transform_3, window_bounds = array<i64: 64, 128>}, {pipeline_mode = #tpu.pipeline_mode<synchronous>, transform_indices = @transform_4, window_bounds = array<i64: 1, 128>}, {pipeline_mode = #tpu.pipeline_mode<synchronous>, transform_indices = @transform_5, window_bounds = array<i64: 1, 128>}, {transform_indices = @transform_6, window_bounds = array<i64: 64, 128>}]} {
    %c0 = arith.constant 0 : index
    %c0_0 = arith.constant 0 : index
    %0 = vector.load %arg1[%c0, %c0_0] : memref<64x128xf32, #tpu.memory_space<vmem>>, vector<64x128xf32>
    %c0_1 = arith.constant 0 : index
    %c0_2 = arith.constant 0 : index
    %1 = vector.load %arg2[%c0_1, %c0_2] : memref<1x128xf32, #tpu.memory_space<vmem>>, vector<1x128xf32>
    %2 = vector.broadcast %1 : vector<1x128xf32> to vector<64x128xf32>
    %3 = arith.mulf %0, %2 : vector<64x128xf32>
    %c0_3 = arith.constant 0 : index
    %c0_4 = arith.constant 0 : index
    %4 = vector.load %arg3[%c0_3, %c0_4] : memref<1x128xf32, #tpu.memory_space<vmem>>, vector<1x128xf32>
    %5 = vector.broadcast %4 : vector<1x128xf32> to vector<64x128xf32>
    %6 = arith.addf %3, %5 : vector<64x128xf32>
    %c0_5 = arith.constant 0 : index
    %c0_6 = arith.constant 0 : index
    %7 = vector.load %arg4[%c0_5, %c0_6] : memref<64x128xf32, #tpu.memory_space<vmem>>, vector<64x128xf32>
    %c0_7 = arith.constant 0 : index
    %c0_8 = arith.constant 0 : index
    %8 = vector.load %arg5[%c0_7, %c0_8] : memref<1x128xf32, #tpu.memory_space<vmem>>, vector<1x128xf32>
    %9 = vector.broadcast %8 : vector<1x128xf32> to vector<64x128xf32>
    %10 = arith.mulf %7, %9 : vector<64x128xf32>
    %c0_9 = arith.constant 0 : index
    %c0_10 = arith.constant 0 : index
    %11 = vector.load %arg6[%c0_9, %c0_10] : memref<1x128xf32, #tpu.memory_space<vmem>>, vector<1x128xf32>
    %12 = vector.broadcast %11 : vector<1x128xf32> to vector<64x128xf32>
    %13 = arith.addf %10, %12 : vector<64x128xf32>
    %14 = arith.addf %6, %13 : vector<64x128xf32>
    %cst = arith.constant 0.000000e+00 : f32
    %15 = vector.broadcast %cst : f32 to vector<64x128xf32>
    %16 = arith.cmpf oge, %14, %15 : vector<64x128xf32>
    %cst_11 = arith.constant 0.00999999977 : f32
    %17 = vector.broadcast %cst_11 : f32 to vector<64x128xf32>
    %18 = arith.mulf %17, %14 : vector<64x128xf32>
    %19 = arith.select %16, %14, %18 : vector<64x128xi1>, vector<64x128xf32>
    %c0_12 = arith.constant 0 : index
    %c0_13 = arith.constant 0 : index
    %20 = vector.load %arg7[%c0_12, %c0_13] : memref<64x128xf32, #tpu.memory_space<vmem>>, vector<64x128xf32>
    tpu.vector_store %arg7[%c0_12, %c0_13], %19 {strides = array<i32>} : memref<64x128xf32, #tpu.memory_space<vmem>>, vector<64x128xf32>,
    return
  }
  func.func @transform_0(%arg0: i32) -> (i32, i32) {
    %c0_i32 = arith.constant 0 : i32
    %c0_i32_0 = arith.constant 0 : i32
    return %arg0, %c0_i32 : i32, i32
  }
  func.func @transform_1(%arg0: i32) -> (i32, i32) {
    %c0_i32 = arith.constant 0 : i32
    %c0_i32_0 = arith.constant 0 : i32
    %c0_i32_1 = arith.constant 0 : i32
    return %c0_i32, %c0_i32_0 : i32, i32
  }
  func.func @transform_2(%arg0: i32) -> (i32, i32) {
    %c0_i32 = arith.constant 0 : i32
    %c0_i32_0 = arith.constant 0 : i32
    %c0_i32_1 = arith.constant 0 : i32
    return %c0_i32, %c0_i32_0 : i32, i32
  }
  func.func @transform_3(%arg0: i32) -> (i32, i32) {
    %c0_i32 = arith.constant 0 : i32
    %c0_i32_0 = arith.constant 0 : i32
    return %arg0, %c0_i32 : i32, i32
  }
  func.func @transform_4(%arg0: i32) -> (i32, i32) {
    %c0_i32 = arith.constant 0 : i32
    %c0_i32_0 = arith.constant 0 : i32
    %c0_i32_1 = arith.constant 0 : i32
    return %c0_i32, %c0_i32_0 : i32, i32
  }
  func.func @transform_5(%arg0: i32) -> (i32, i32) {
    %c0_i32 = arith.constant 0 : i32
    %c0_i32_0 = arith.constant 0 : i32
    %c0_i32_1 = arith.constant 0 : i32
    return %c0_i32, %c0_i32_0 : i32, i32
  }
  func.func @transform_6(%arg0: i32) -> (i32, i32) {
    %c0_i32 = arith.constant 0 : i32
    %c0_i32_0 = arith.constant 0 : i32
    return %arg0, %c0_i32 : i32, i32
  }
}

</mosaic_0001>

<llo_original>
// kernel: bottleneck_forward.4
$region0: #{bottleneck_forward.4}
  #allocation0 [shape = 'u32[]', space=smem, size = 0x4, offset = 0x4, fixed_abs, tag = 'smem constant byte address 0x4 - core index']
  #allocation1 [shape = 'u32[72,128]{1,0:T(1,128)}', space=vmem, size = 0x9000, scoped, tag = 'internal scratch']
  %s0 = inlined_call_operand.vmem [shape: f32[512,4], index: 0, kind: input, shape index: {}]
  %s1 = inlined_call_operand.vmem [shape: f32[4,8], index: 1, kind: input, shape index: {}]
  %s2 = inlined_call_operand.vmem [shape: f32[512,8], index: 2, kind: output, shape index: {0}]
  %s3 = inlined_call_operand.vmem [shape: f32[1,2,8], index: 3, kind: output, shape index: {1}]
  %4 = xla_tuple %s2, %s3
  %s5 = sld [smem:[#allocation0]]
  $region26: #{bottleneck_forward.4} parent=0
    _
  %s7 = ssub.s32 1, %s5
  %s8 = scalar_select 0, %s7, %s5
  // Predicated region
  $region2: #{bottleneck_forward.4} parent=0 // pred_check
    _
  $region3: #{bottleneck_forward.4} parent=0 // pred_check_branch
    %10 = sbr.rel (0) target = $region5
  $region4: #{bottleneck_forward.4} parent=0 // pred_region
    _
  $region5: #{bottleneck_forward.4} parent=0 // pred_fallthru
    _
  // Predicated region
  $region6: #{bottleneck_forward.4} parent=0 // pred_check
    _
  $region7: #{bottleneck_forward.4} parent=0 // pred_check_branch
    %12 = sbr.rel (0) target = $region9
  $region8: #{bottleneck_forward.4} parent=0 // pred_region
    _
  $region9: #{bottleneck_forward.4} parent=0 // pred_fallthru
    _
  %v13 = vld [vmem:[%s0] sm:$0xff]
  %v14 = vld [vmem:[%s0 + $0x8] sm:$0xff]
  %v15 = vld [vmem:[%s0 + $0x10] sm:$0xff]
  %v16 = vld [vmem:[%s0 + $0x18] sm:$0xff]
  %v17 = vld [vmem:[%s0 + $0x20] sm:$0xff]
  %v18 = vld [vmem:[%s0 + $0x28] sm:$0xff]
  %v19 = vld [vmem:[%s0 + $0x30] sm:$0xff]
  %v20 = vld [vmem:[%s0 + $0x38] sm:$0xff]
  %v21 = vld [vmem:[%s0 + $0x40] sm:$0xff]
  %v22 = vld [vmem:[%s0 + $0x48] sm:$0xff]
  %v23 = vld [vmem:[%s0 + $0x50] sm:$0xff]
  %v24 = vld [vmem:[%s0 + $0x58] sm:$0xff]
  %v25 = vld [vmem:[%s0 + $0x60] sm:$0xff]
  %v26 = vld [vmem:[%s0 + $0x68] sm:$0xff]
  %v27 = vld [vmem:[%s0 + $0x70] sm:$0xff]
  %v28 = vld [vmem:[%s0 + $0x78] sm:$0xff]
  %v29 = vld [vmem:[%s0 + $0x80] sm:$0xff]
  %v30 = vld [vmem:[%s0 + $0x88] sm:$0xff]
  %v31 = vld [vmem:[%s0 + $0x90] sm:$0xff]
  %v32 = vld [vmem:[%s0 + $0x98] sm:$0xff]
  %v33 = vld [vmem:[%s0 + $0xa0] sm:$0xff]
  %v34 = vld [vmem:[%s0 + $0xa8] sm:$0xff]
  %v35 = vld [vmem:[%s0 + $0xb0] sm:$0xff]
  %v36 = vld [vmem:[%s0 + $0xb8] sm:$0xff]
  %v37 = vld [vmem:[%s0 + $0xc0] sm:$0xff]
  %v38 = vld [vmem:[%s0 + $0xc8] sm:$0xff]
  %v39 = vld [vmem:[%s0 + $0xd0] sm:$0xff]
  %v40 = vld [vmem:[%s0 + $0xd8] sm:$0xff]
  %v41 = vld [vmem:[%s0 + $0xe0] sm:$0xff]
  %v42 = vld [vmem:[%s0 + $0xe8] sm:$0xff]
  %v43 = vld [vmem:[%s0 + $0xf0] sm:$0xff]
  %v44 = vld [vmem:[%s0 + $0xf8] sm:$0xff]
  %v45 = vld [vmem:[%s0 + $0x100] sm:$0xff]
  %v46 = vld [vmem:[%s0 + $0x108] sm:$0xff]
  %v47 = vld [vmem:[%s0 + $0x110] sm:$0xff]
  %v48 = vld [vmem:[%s0 + $0x118] sm:$0xff]
  %v49 = vld [vmem:[%s0 + $0x120] sm:$0xff]
  %v50 = vld [vmem:[%s0 + $0x128] sm:$0xff]
  %v51 = vld [vmem:[%s0 + $0x130] sm:$0xff]
  %v52 = vld [vmem:[%s0 + $0x138] sm:$0xff]
  %v53 = vld [vmem:[%s0 + $0x140] sm:$0xff]
  %v54 = vld [vmem:[%s0 + $0x148] sm:$0xff]
  %v55 = vld [vmem:[%s0 + $0x150] sm:$0xff]
  %v56 = vld [vmem:[%s0 + $0x158] sm:$0xff]
  %v57 = vld [vmem:[%s0 + $0x160] sm:$0xff]
  %v58 = vld [vmem:[%s0 + $0x168] sm:$0xff]
  %v59 = vld [vmem:[%s0 + $0x170] sm:$0xff]
  %v60 = vld [vmem:[%s0 + $0x178] sm:$0xff]
  %v61 = vld [vmem:[%s0 + $0x180] sm:$0xff]
  %v62 = vld [vmem:[%s0 + $0x188] sm:$0xff]
  %v63 = vld [vmem:[%s0 + $0x190] sm:$0xff]
  %v64 = vld [vmem:[%s0 + $0x198] sm:$0xff]
  %v65 = vld [vmem:[%s0 + $0x1a0] sm:$0xff]
  %v66 = vld [vmem:[%s0 + $0x1a8] sm:$0xff]
  %v67 = vld [vmem:[%s0 + $0x1b0] sm:$0xff]
  %v68 = vld [vmem:[%s0 + $0x1b8] sm:$0xff]
  %v69 = vld [vmem:[%s0 + $0x1c0] sm:$0xff]
  %v70 = vld [vmem:[%s0 + $0x1c8] sm:$0xff]
  %v71 = vld [vmem:[%s0 + $0x1d0] sm:$0xff]
  %v72 = vld [vmem:[%s0 + $0x1d8] sm:$0xff]
  %v73 = vld [vmem:[%s0 + $0x1e0] sm:$0xff]
  %v74 = vld [vmem:[%s0 + $0x1e8] sm:$0xff]
  %v75 = vld [vmem:[%s0 + $0x1f0] sm:$0xff]
  %v76 = vld [vmem:[%s0 + $0x1f8] sm:$0xff]
  %v77 = vld [vmem:[%s1] sm:$0xf]
  %vm78 = vcmask 31744
  %v80 = vsel %vm78, %v13, 0
  %v83 = vsel %vm78, %v14, 0
  %v86 = vsel %vm78, %v15, 0
  %v89 = vsel %vm78, %v16, 0
  %v92 = vsel %vm78, %v17, 0
  %v95 = vsel %vm78, %v18, 0
  %v98 = vsel %vm78, %v19, 0
  %v101 = vsel %vm78, %v20, 0
  %v104 = vsel %vm78, %v21, 0
  %v107 = vsel %vm78, %v22, 0
  %v110 = vsel %vm78, %v23, 0
  %v113 = vsel %vm78, %v24, 0
  %v116 = vsel %vm78, %v25, 0
  %v119 = vsel %vm78, %v26, 0
  %v122 = vsel %vm78, %v27, 0
  %v125 = vsel %vm78, %v28, 0
  %v128 = vsel %vm78, %v29, 0
  %v131 = vsel %vm78, %v30, 0
  %v134 = vsel %vm78, %v31, 0
  %v137 = vsel %vm78, %v32, 0
  %v140 = vsel %vm78, %v33, 0
  %v143 = vsel %vm78, %v34, 0
  %v146 = vsel %vm78, %v35, 0
  %v149 = vsel %vm78, %v36, 0
  %v152 = vsel %vm78, %v37, 0
  %v155 = vsel %vm78, %v38, 0
  %v158 = vsel %vm78, %v39, 0
  %v161 = vsel %vm78, %v40, 0
  %v164 = vsel %vm78, %v41, 0
  %v167 = vsel %vm78, %v42, 0
  %v170 = vsel %vm78, %v43, 0
  %v173 = vsel %vm78, %v44, 0
  %v176 = vsel %vm78, %v45, 0
  %v179 = vsel %vm78, %v46, 0
  %v182 = vsel %vm78, %v47, 0
  %v185 = vsel %vm78, %v48, 0
  %v188 = vsel %vm78, %v49, 0
  %v191 = vsel %vm78, %v50, 0
  %v194 = vsel %vm78, %v51, 0
  %v197 = vsel %vm78, %v52, 0
  %v200 = vsel %vm78, %v53, 0
  %v203 = vsel %vm78, %v54, 0
  %v206 = vsel %vm78, %v55, 0
  %v209 = vsel %vm78, %v56, 0
  %v212 = vsel %vm78, %v57, 0
  %v215 = vsel %vm78, %v58, 0
  %v218 = vsel %vm78, %v59, 0
  %v221 = vsel %vm78, %v60, 0
  %v224 = vsel %vm78, %v61, 0
  %v227 = vsel %vm78, %v62, 0
  %v230 = vsel %vm78, %v63, 0
  %v233 = vsel %vm78, %v64, 0
  %v236 = vsel %vm78, %v65, 0
  %v239 = vsel %vm78, %v66, 0
  %v242 = vsel %vm78, %v67, 0
  %v245 = vsel %vm78, %v68, 0
  %v248 = vsel %vm78, %v69, 0
  %v251 = vsel %vm78, %v70, 0
  %v254 = vsel %vm78, %v71, 0
  %v257 = vsel %vm78, %v72, 0
  %v260 = vsel %vm78, %v73, 0
  %v263 = vsel %vm78, %v74, 0
  %v266 = vsel %vm78, %v75, 0
  %v269 = vsel %vm78, %v76, 0
  %vm271 = vcmask 1043456
  %v273 = vsel %vm271, %v77, 0
  %275 = vmatpush.msra.mxu0 0.0
  %276 = vmatpush.msra.mxu0 0.0
  %277 = vmatpush.msra.mxu0 0.0
  %278 = vmatpush.msra.mxu0 0.0
  %279 = vmatpush.msra.mxu0 0.0
  %280 = vmatpush.msra.mxu0 0.0
  %281 = vmatpush.msra.mxu0 0.0
  %282 = vmatpush.msra.mxu0 0.0
  %283 = vmatpush.msra.mxu0 0.0
  %284 = vmatpush.msra.mxu0 0.0
  %285 = vmatpush.msra.mxu0 0.0
  %286 = vmatpush.msra.mxu0 0.0
  %287 = vmatpush.msra.mxu0 0.0
  %288 = vmatpush.msra.mxu0 0.0
  %289 = vmatpush.msra.mxu0 0.0
  %290 = vmatpush.msra.mxu0 %v273
  %291 = vmatmul.f32.gmra.mxu0 %v80
  %v292 = vpop.f32.mrf.mxu0
  %v293 = vadd.f32 0.0, %v292
  %294 = vmatmul.f32.gmra.mxu0 %v83
  %v295 = vpop.f32.mrf.mxu0
  %v296 = vadd.f32 0.0, %v295
  %297 = vmatmul.f32.gmra.mxu0 %v86
  %v298 = vpop.f32.mrf.mxu0
  %v299 = vadd.f32 0.0, %v298
  %300 = vmatmul.f32.gmra.mxu0 %v89
  %v301 = vpop.f32.mrf.mxu0
  %v302 = vadd.f32 0.0, %v301
  %303 = vmatmul.f32.gmra.mxu0 %v92
  %v304 = vpop.f32.mrf.mxu0
  %v305 = vadd.f32 0.0, %v304
  %306 = vmatmul.f32.gmra.mxu0 %v95
  %v307 = vpop.f32.mrf.mxu0
  %v308 = vadd.f32 0.0, %v307
  %309 = vmatmul.f32.gmra.mxu0 %v98
  %v310 = vpop.f32.mrf.mxu0
  %v311 = vadd.f32 0.0, %v310
  %312 = vmatmul.f32.gmra.mxu0 %v101
  %v313 = vpop.f32.mrf.mxu0
  %v314 = vadd.f32 0.0, %v313
  %315 = vmatmul.f32.gmra.mxu0 %v104
  %v316 = vpop.f32.mrf.mxu0
  %v317 = vadd.f32 0.0, %v316
  %318 = vmatmul.f32.gmra.mxu0 %v107
  %v319 = vpop.f32.mrf.mxu0
  %v320 = vadd.f32 0.0, %v319
  %321 = vmatmul.f32.gmra.mxu0 %v110
  %v322 = vpop.f32.mrf.mxu0
  %v323 = vadd.f32 0.0, %v322
  %324 = vmatmul.f32.gmra.mxu0 %v113
  %v325 = vpop.f32.mrf.mxu0
  %v326 = vadd.f32 0.0, %v325
  %327 = vmatmul.f32.gmra.mxu0 %v116
  %v328 = vpop.f32.mrf.mxu0
  %v329 = vadd.f32 0.0, %v328
  %330 = vmatmul.f32.gmra.mxu0 %v119
  %v331 = vpop.f32.mrf.mxu0
  %v332 = vadd.f32 0.0, %v331
  %333 = vmatmul.f32.gmra.mxu0 %v122
  %v334 = vpop.f32.mrf.mxu0
  %v335 = vadd.f32 0.0, %v334
  %336 = vmatmul.f32.gmra.mxu0 %v125
  %v337 = vpop.f32.mrf.mxu0
  %v338 = vadd.f32 0.0, %v337
  %339 = vmatmul.f32.gmra.mxu0 %v128
  %v340 = vpop.f32.mrf.mxu0
  %v341 = vadd.f32 0.0, %v340
  %342 = vmatmul.f32.gmra.mxu0 %v131
  %v343 = vpop.f32.mrf.mxu0
  %v344 = vadd.f32 0.0, %v343
  %345 = vmatmul.f32.gmra.mxu0 %v134
  %v346 = vpop.f32.mrf.mxu0
  %v347 = vadd.f32 0.0, %v346
  %348 = vmatmul.f32.gmra.mxu0 %v137
  %v349 = vpop.f32.mrf.mxu0
  %v350 = vadd.f32 0.0, %v349
  %351 = vmatmul.f32.gmra.mxu0 %v140
  %v352 = vpop.f32.mrf.mxu0
  %v353 = vadd.f32 0.0, %v352
  %354 = vmatmul.f32.gmra.mxu0 %v143
  %v355 = vpop.f32.mrf.mxu0
  %v356 = vadd.f32 0.0, %v355
  %357 = vmatmul.f32.gmra.mxu0 %v146
  %v358 = vpop.f32.mrf.mxu0
  %v359 = vadd.f32 0.0, %v358
  %360 = vmatmul.f32.gmra.mxu0 %v149
  %v361 = vpop.f32.mrf.mxu0
  %v362 = vadd.f32 0.0, %v361
  %363 = vmatmul.f32.gmra.mxu0 %v152
  %v364 = vpop.f32.mrf.mxu0
  %v365 = vadd.f32 0.0, %v364
  %366 = vmatmul.f32.gmra.mxu0 %v155
  %v367 = vpop.f32.mrf.mxu0
  %v368 = vadd.f32 0.0, %v367
  %369 = vmatmul.f32.gmra.mxu0 %v158
  %v370 = vpop.f32.mrf.mxu0
  %v371 = vadd.f32 0.0, %v370
  %372 = vmatmul.f32.gmra.mxu0 %v161
  %v373 = vpop.f32.mrf.mxu0
  %v374 = vadd.f32 0.0, %v373
  %375 = vmatmul.f32.gmra.mxu0 %v164
  %v376 = vpop.f32.mrf.mxu0
  %v377 = vadd.f32 0.0, %v376
  %378 = vmatmul.f32.gmra.mxu0 %v167
  %v379 = vpop.f32.mrf.mxu0
  %v380 = vadd.f32 0.0, %v379
  %381 = vmatmul.f32.gmra.mxu0 %v170
  %v382 = vpop.f32.mrf.mxu0
  %v383 = vadd.f32 0.0, %v382
  %384 = vmatmul.f32.gmra.mxu0 %v173
  %v385 = vpop.f32.mrf.mxu0
  %v386 = vadd.f32 0.0, %v385
  %387 = vmatmul.f32.gmra.mxu0 %v176
  %v388 = vpop.f32.mrf.mxu0
  %v389 = vadd.f32 0.0, %v388
  %390 = vmatmul.f32.gmra.mxu0 %v179
  %v391 = vpop.f32.mrf.mxu0
  %v392 = vadd.f32 0.0, %v391
  %393 = vmatmul.f32.gmra.mxu0 %v182
  %v394 = vpop.f32.mrf.mxu0
  %v395 = vadd.f32 0.0, %v394
  %396 = vmatmul.f32.gmra.mxu0 %v185
  %v397 = vpop.f32.mrf.mxu0
  %v398 = vadd.f32 0.0, %v397
  %399 = vmatmul.f32.gmra.mxu0 %v188
  %v400 = vpop.f32.mrf.mxu0
  %v401 = vadd.f32 0.0, %v400
  %402 = vmatmul.f32.gmra.mxu0 %v191
  %v403 = vpop.f32.mrf.mxu0
  %v404 = vadd.f32 0.0, %v403
  %405 = vmatmul.f32.gmra.mxu0 %v194
  %v406 = vpop.f32.mrf.mxu0
  %v407 = vadd.f32 0.0, %v406
  %408 = vmatmul.f32.gmra.mxu0 %v197
  %v409 = vpop.f32.mrf.mxu0
  %v410 = vadd.f32 0.0, %v409
  %411 = vmatmul.f32.gmra.mxu0 %v200
  %v412 = vpop.f32.mrf.mxu0
  %v413 = vadd.f32 0.0, %v412
  %414 = vmatmul.f32.gmra.mxu0 %v203
  %v415 = vpop.f32.mrf.mxu0
  %v416 = vadd.f32 0.0, %v415
  %417 = vmatmul.f32.gmra.mxu0 %v206
  %v418 = vpop.f32.mrf.mxu0
  %v419 = vadd.f32 0.0, %v418
  %420 = vmatmul.f32.gmra.mxu0 %v209
  %v421 = vpop.f32.mrf.mxu0
  %v422 = vadd.f32 0.0, %v421
  %423 = vmatmul.f32.gmra.mxu0 %v212
  %v424 = vpop.f32.mrf.mxu0
  %v425 = vadd.f32 0.0, %v424
  %426 = vmatmul.f32.gmra.mxu0 %v215
  %v427 = vpop.f32.mrf.mxu0
  %v428 = vadd.f32 0.0, %v427
  %429 = vmatmul.f32.gmra.mxu0 %v218
  %v430 = vpop.f32.mrf.mxu0
  %v431 = vadd.f32 0.0, %v430
  %432 = vmatmul.f32.gmra.mxu0 %v221
  %v433 = vpop.f32.mrf.mxu0
  %v434 = vadd.f32 0.0, %v433
  %435 = vmatmul.f32.gmra.mxu0 %v224
  %v436 = vpop.f32.mrf.mxu0
  %v437 = vadd.f32 0.0, %v436
  %438 = vmatmul.f32.gmra.mxu0 %v227
  %v439 = vpop.f32.mrf.mxu0
  %v440 = vadd.f32 0.0, %v439
  %441 = vmatmul.f32.gmra.mxu0 %v230
  %v442 = vpop.f32.mrf.mxu0
  %v443 = vadd.f32 0.0, %v442
  %444 = vmatmul.f32.gmra.mxu0 %v233
  %v445 = vpop.f32.mrf.mxu0
  %v446 = vadd.f32 0.0, %v445
  %447 = vmatmul.f32.gmra.mxu0 %v236
  %v448 = vpop.f32.mrf.mxu0
  %v449 = vadd.f32 0.0, %v448
  %450 = vmatmul.f32.gmra.mxu0 %v239
  %v451 = vpop.f32.mrf.mxu0
  %v452 = vadd.f32 0.0, %v451
  %453 = vmatmul.f32.gmra.mxu0 %v242
  %v454 = vpop.f32.mrf.mxu0
  %v455 = vadd.f32 0.0, %v454
  %456 = vmatmul.f32.gmra.mxu0 %v245
  %v457 = vpop.f32.mrf.mxu0
  %v458 = vadd.f32 0.0, %v457
  %459 = vmatmul.f32.gmra.mxu0 %v248
  %v460 = vpop.f32.mrf.mxu0
  %v461 = vadd.f32 0.0, %v460
  %462 = vmatmul.f32.gmra.mxu0 %v251
  %v463 = vpop.f32.mrf.mxu0
  %v464 = vadd.f32 0.0, %v463
  %465 = vmatmul.f32.gmra.mxu0 %v254
  %v466 = vpop.f32.mrf.mxu0
  %v467 = vadd.f32 0.0, %v466
  %468 = vmatmul.f32.gmra.mxu0 %v257
  %v469 = vpop.f32.mrf.mxu0
  %v470 = vadd.f32 0.0, %v469
  %471 = vmatmul.f32.gmra.mxu0 %v260
  %v472 = vpop.f32.mrf.mxu0
  %v473 = vadd.f32 0.0, %v472
  %474 = vmatmul.f32.gmra.mxu0 %v263
  %v475 = vpop.f32.mrf.mxu0
  %v476 = vadd.f32 0.0, %v475
  %477 = vmatmul.f32.gmra.mxu0 %v266
  %v478 = vpop.f32.mrf.mxu0
  %v479 = vadd.f32 0.0, %v478
  %480 = vmatmul.f32.gmra.mxu0 %v269
  %v481 = vpop.f32.mrf.mxu0
  %v482 = vadd.f32 0.0, %v481
  %483 = vdwg.mxu0
  %vm484 = vcmask 64512
  %485 = vst.msk [vmem:[%s2] sm:$0xff] %vm484, %v293
  %486 = vst.msk [vmem:[%s2 + $0x8] sm:$0xff] %vm484, %v296
  %487 = vst.msk [vmem:[%s2 + $0x10] sm:$0xff] %vm484, %v299
  %488 = vst.msk [vmem:[%s2 + $0x18] sm:$0xff] %vm484, %v302
  %489 = vst.msk [vmem:[%s2 + $0x20] sm:$0xff] %vm484, %v305
  %490 = vst.msk [vmem:[%s2 + $0x28] sm:$0xff] %vm484, %v308
  %491 = vst.msk [vmem:[%s2 + $0x30] sm:$0xff] %vm484, %v311
  %492 = vst.msk [vmem:[%s2 + $0x38] sm:$0xff] %vm484, %v314
  %493 = vst.msk [vmem:[%s2 + $0x40] sm:$0xff] %vm484, %v317
  %494 = vst.msk [vmem:[%s2 + $0x48] sm:$0xff] %vm484, %v320
  %495 = vst.msk [vmem:[%s2 + $0x50] sm:$0xff] %vm484, %v323
  %496 = vst.msk [vmem:[%s2 + $0x58] sm:$0xff] %vm484, %v326
  %497 = vst.msk [vmem:[%s2 + $0x60] sm:$0xff] %vm484, %v329
  %498 = vst.msk [vmem:[%s2 + $0x68] sm:$0xff] %vm484, %v332
  %499 = vst.msk [vmem:[%s2 + $0x70] sm:$0xff] %vm484, %v335
  %500 = vst.msk [vmem:[%s2 + $0x78] sm:$0xff] %vm484, %v338
  %501 = vst.msk [vmem:[%s2 + $0x80] sm:$0xff] %vm484, %v341
  %502 = vst.msk [vmem:[%s2 + $0x88] sm:$0xff] %vm484, %v344
  %503 = vst.msk [vmem:[%s2 + $0x90] sm:$0xff] %vm484, %v347
  %504 = vst.msk [vmem:[%s2 + $0x98] sm:$0xff] %vm484, %v350
  %505 = vst.msk [vmem:[%s2 + $0xa0] sm:$0xff] %vm484, %v353
  %506 = vst.msk [vmem:[%s2 + $0xa8] sm:$0xff] %vm484, %v356
  %507 = vst.msk [vmem:[%s2 + $0xb0] sm:$0xff] %vm484, %v359
  %508 = vst.msk [vmem:[%s2 + $0xb8] sm:$0xff] %vm484, %v362
  %509 = vst.msk [vmem:[%s2 + $0xc0] sm:$0xff] %vm484, %v365
  %510 = vst.msk [vmem:[%s2 + $0xc8] sm:$0xff] %vm484, %v368
  %511 = vst.msk [vmem:[%s2 + $0xd0] sm:$0xff] %vm484, %v371
  %512 = vst.msk [vmem:[%s2 + $0xd8] sm:$0xff] %vm484, %v374
  %513 = vst.msk [vmem:[%s2 + $0xe0] sm:$0xff] %vm484, %v377
  %514 = vst.msk [vmem:[%s2 + $0xe8] sm:$0xff] %vm484, %v380
  %515 = vst.msk [vmem:[%s2 + $0xf0] sm:$0xff] %vm484, %v383
  %516 = vst.msk [vmem:[%s2 + $0xf8] sm:$0xff] %vm484, %v386
  %517 = vst.msk [vmem:[%s2 + $0x100] sm:$0xff] %vm484, %v389
  %518 = vst.msk [vmem:[%s2 + $0x108] sm:$0xff] %vm484, %v392
  %519 = vst.msk [vmem:[%s2 + $0x110] sm:$0xff] %vm484, %v395
  %520 = vst.msk [vmem:[%s2 + $0x118] sm:$0xff] %vm484, %v398
  %521 = vst.msk [vmem:[%s2 + $0x120] sm:$0xff] %vm484, %v401
  %522 = vst.msk [vmem:[%s2 + $0x128] sm:$0xff] %vm484, %v404
  %523 = vst.msk [vmem:[%s2 + $0x130] sm:$0xff] %vm484, %v407
  %524 = vst.msk [vmem:[%s2 + $0x138] sm:$0xff] %vm484, %v410
  %525 = vst.msk [vmem:[%s2 + $0x140] sm:$0xff] %vm484, %v413
  %526 = vst.msk [vmem:[%s2 + $0x148] sm:$0xff] %vm484, %v416
  %527 = vst.msk [vmem:[%s2 + $0x150] sm:$0xff] %vm484, %v419
  %528 = vst.msk [vmem:[%s2 + $0x158] sm:$0xff] %vm484, %v422
  %529 = vst.msk [vmem:[%s2 + $0x160] sm:$0xff] %vm484, %v425
  %530 = vst.msk [vmem:[%s2 + $0x168] sm:$0xff] %vm484, %v428
  %531 = vst.msk [vmem:[%s2 + $0x170] sm:$0xff] %vm484, %v431
  %532 = vst.msk [vmem:[%s2 + $0x178] sm:$0xff] %vm484, %v434
  %533 = vst.msk [vmem:[%s2 + $0x180] sm:$0xff] %vm484, %v437
  %534 = vst.msk [vmem:[%s2 + $0x188] sm:$0xff] %vm484, %v440
  %535 = vst.msk [vmem:[%s2 + $0x190] sm:$0xff] %vm484, %v443
  %536 = vst.msk [vmem:[%s2 + $0x198] sm:$0xff] %vm484, %v446
  %537 = vst.msk [vmem:[%s2 + $0x1a0] sm:$0xff] %vm484, %v449
  %538 = vst.msk [vmem:[%s2 + $0x1a8] sm:$0xff] %vm484, %v452
  %539 = vst.msk [vmem:[%s2 + $0x1b0] sm:$0xff] %vm484, %v455
  %540 = vst.msk [vmem:[%s2 + $0x1b8] sm:$0xff] %vm484, %v458
  %541 = vst.msk [vmem:[%s2 + $0x1c0] sm:$0xff] %vm484, %v461
  %542 = vst.msk [vmem:[%s2 + $0x1c8] sm:$0xff] %vm484, %v464
  %543 = vst.msk [vmem:[%s2 + $0x1d0] sm:$0xff] %vm484, %v467
  %544 = vst.msk [vmem:[%s2 + $0x1d8] sm:$0xff] %vm484, %v470
  %545 = vst.msk [vmem:[%s2 + $0x1e0] sm:$0xff] %vm484, %v473
  %546 = vst.msk [vmem:[%s2 + $0x1e8] sm:$0xff] %vm484, %v476
  %547 = vst.msk [vmem:[%s2 + $0x1f0] sm:$0xff] %vm484, %v479
  %548 = vst.msk [vmem:[%s2 + $0x1f8] sm:$0xff] %vm484, %v482
  %v549 = vsel %vm484, %v293, 0.0
  %v550 = vsel %vm484, %v296, 0.0
  %v551 = vadd.f32 %v549, %v550
  %v552 = vsel %vm484, %v299, 0.0
  %v553 = vadd.f32 %v551, %v552
  %v554 = vsel %vm484, %v302, 0.0
  %v555 = vadd.f32 %v553, %v554
  %v556 = vsel %vm484, %v305, 0.0
  %v557 = vadd.f32 %v555, %v556
  %v558 = vsel %vm484, %v308, 0.0
  %v559 = vadd.f32 %v557, %v558
  %v560 = vsel %vm484, %v311, 0.0
  %v561 = vadd.f32 %v559, %v560
  %v562 = vsel %vm484, %v314, 0.0
  %v563 = vadd.f32 %v561, %v562
  %v564 = vsel %vm484, %v317, 0.0
  %v565 = vadd.f32 %v563, %v564
  %v566 = vsel %vm484, %v320, 0.0
  %v567 = vadd.f32 %v565, %v566
  %v568 = vsel %vm484, %v323, 0.0
  %v569 = vadd.f32 %v567, %v568
  %v570 = vsel %vm484, %v326, 0.0
  %v571 = vadd.f32 %v569, %v570
  %v572 = vsel %vm484, %v329, 0.0
  %v573 = vadd.f32 %v571, %v572
  %v574 = vsel %vm484, %v332, 0.0
  %v575 = vadd.f32 %v573, %v574
  %v576 = vsel %vm484, %v335, 0.0
  %v577 = vadd.f32 %v575, %v576
  %v578 = vsel %vm484, %v338, 0.0
  %v579 = vadd.f32 %v577, %v578
  %v580 = vsel %vm484, %v341, 0.0
  %v581 = vadd.f32 %v579, %v580
  %v582 = vsel %vm484, %v344, 0.0
  %v583 = vadd.f32 %v581, %v582
  %v584 = vsel %vm484, %v347, 0.0
  %v585 = vadd.f32 %v583, %v584
  %v586 = vsel %vm484, %v350, 0.0
  %v587 = vadd.f32 %v585, %v586
  %v588 = vsel %vm484, %v353, 0.0
  %v589 = vadd.f32 %v587, %v588
  %v590 = vsel %vm484, %v356, 0.0
  %v591 = vadd.f32 %v589, %v590
  %v592 = vsel %vm484, %v359, 0.0
  %v593 = vadd.f32 %v591, %v592
  %v594 = vsel %vm484, %v362, 0.0
  %v595 = vadd.f32 %v593, %v594
  %v596 = vsel %vm484, %v365, 0.0
  %v597 = vadd.f32 %v595, %v596
  %v598 = vsel %vm484, %v368, 0.0
  %v599 = vadd.f32 %v597, %v598
  %v600 = vsel %vm484, %v371, 0.0
  %v601 = vadd.f32 %v599, %v600
  %v602 = vsel %vm484, %v374, 0.0
  %v603 = vadd.f32 %v601, %v602
  %v604 = vsel %vm484, %v377, 0.0
  %v605 = vadd.f32 %v603, %v604
  %v606 = vsel %vm484, %v380, 0.0
  %v607 = vadd.f32 %v605, %v606
  %v608 = vsel %vm484, %v383, 0.0
  %v609 = vadd.f32 %v607, %v608
  %v610 = vsel %vm484, %v386, 0.0
  %v611 = vadd.f32 %v609, %v610
  %v612 = vsel %vm484, %v389, 0.0
  %v613 = vadd.f32 %v611, %v612
  %v614 = vsel %vm484, %v392, 0.0
  %v615 = vadd.f32 %v613, %v614
  %v616 = vsel %vm484, %v395, 0.0
  %v617 = vadd.f32 %v615, %v616
  %v618 = vsel %vm484, %v398, 0.0
  %v619 = vadd.f32 %v617, %v618
  %v620 = vsel %vm484, %v401, 0.0
  %v621 = vadd.f32 %v619, %v620
  %v622 = vsel %vm484, %v404, 0.0
  %v623 = vadd.f32 %v621, %v622
  %v624 = vsel %vm484, %v407, 0.0
  %v625 = vadd.f32 %v623, %v624
  %v626 = vsel %vm484, %v410, 0.0
  %v627 = vadd.f32 %v625, %v626
  %v628 = vsel %vm484, %v413, 0.0
  %v629 = vadd.f32 %v627, %v628
  %v630 = vsel %vm484, %v416, 0.0
  %v631 = vadd.f32 %v629, %v630
  %v632 = vsel %vm484, %v419, 0.0
  %v633 = vadd.f32 %v631, %v632
  %v634 = vsel %vm484, %v422, 0.0
  %v635 = vadd.f32 %v633, %v634
  %v636 = vsel %vm484, %v425, 0.0
  %v637 = vadd.f32 %v635, %v636
  %v638 = vsel %vm484, %v428, 0.0
  %v639 = vadd.f32 %v637, %v638
  %v640 = vsel %vm484, %v431, 0.0
  %v641 = vadd.f32 %v639, %v640
  %v642 = vsel %vm484, %v434, 0.0
  %v643 = vadd.f32 %v641, %v642
  %v644 = vsel %vm484, %v437, 0.0
  %v645 = vadd.f32 %v643, %v644
  %v646 = vsel %vm484, %v440, 0.0
  %v647 = vadd.f32 %v645, %v646
  %v648 = vsel %vm484, %v443, 0.0
  %v649 = vadd.f32 %v647, %v648
  %v650 = vsel %vm484, %v446, 0.0
  %v651 = vadd.f32 %v649, %v650
  %v652 = vsel %vm484, %v449, 0.0
  %v653 = vadd.f32 %v651, %v652
  %v654 = vsel %vm484, %v452, 0.0
  %v655 = vadd.f32 %v653, %v654
  %v656 = vsel %vm484, %v455, 0.0
  %v657 = vadd.f32 %v655, %v656
  %v658 = vsel %vm484, %v458, 0.0
  %v659 = vadd.f32 %v657, %v658
  %v660 = vsel %vm484, %v461, 0.0
  %v661 = vadd.f32 %v659, %v660
  %v662 = vsel %vm484, %v464, 0.0
  %v663 = vadd.f32 %v661, %v662
  %v664 = vsel %vm484, %v467, 0.0
  %v665 = vadd.f32 %v663, %v664
  %v666 = vsel %vm484, %v470, 0.0
  %v667 = vadd.f32 %v665, %v666
  %v668 = vsel %vm484, %v473, 0.0
  %v669 = vadd.f32 %v667, %v668
  %v670 = vsel %vm484, %v476, 0.0
  %v671 = vadd.f32 %v669, %v670
  %v672 = vsel %vm484, %v479, 0.0
  %v673 = vadd.f32 %v671, %v672
  %v674 = vsel %vm484, %v482, 0.0
  %v675 = vadd.f32 %v673, %v674
  %v676 = vrot.slane %v675, 4
  %v677 = vadd.f32 %v675, %v676
  %v678 = vrot.slane %v677, 2
  %v679 = vadd.f32 %v677, %v678
  %v680 = vrot.slane %v679, 1
  %v681 = vadd.f32 %v679, %v680
  %vm682 = vcmask 57344
  %683 = vst.msk [vmem:[%s3] sm:$0x1] %vm682, %v681
  %v684 = vmul.f32 %v293, %v293
  %v685 = vmul.f32 %v296, %v296
  %v686 = vmul.f32 %v299, %v299
  %v687 = vmul.f32 %v302, %v302
  %v688 = vmul.f32 %v305, %v305
  %v689 = vmul.f32 %v308, %v308
  %v690 = vmul.f32 %v311, %v311
  %v691 = vmul.f32 %v314, %v314
  %v692 = vmul.f32 %v317, %v317
  %v693 = vmul.f32 %v320, %v320
  %v694 = vmul.f32 %v323, %v323
  %v695 = vmul.f32 %v326, %v326
  %v696 = vmul.f32 %v329, %v329
  %v697 = vmul.f32 %v332, %v332
  %v698 = vmul.f32 %v335, %v335
  %v699 = vmul.f32 %v338, %v338
  %v700 = vmul.f32 %v341, %v341
  %v701 = vmul.f32 %v344, %v344
  %v702 = vmul.f32 %v347, %v347
  %v703 = vmul.f32 %v350, %v350
  %v704 = vmul.f32 %v353, %v353
  %v705 = vmul.f32 %v356, %v356
  %v706 = vmul.f32 %v359, %v359
  %v707 = vmul.f32 %v362, %v362
  %v708 = vmul.f32 %v365, %v365
  %v709 = vmul.f32 %v368, %v368
  %v710 = vmul.f32 %v371, %v371
  %v711 = vmul.f32 %v374, %v374
  %v712 = vmul.f32 %v377, %v377
  %v713 = vmul.f32 %v380, %v380
  %v714 = vmul.f32 %v383, %v383
  %v715 = vmul.f32 %v386, %v386
  %v716 = vmul.f32 %v389, %v389
  %v717 = vmul.f32 %v392, %v392
  %v718 = vmul.f32 %v395, %v395
  %v719 = vmul.f32 %v398, %v398
  %v720 = vmul.f32 %v401, %v401
  %v721 = vmul.f32 %v404, %v404
  %v722 = vmul.f32 %v407, %v407
  %v723 = vmul.f32 %v410, %v410
  %v724 = vmul.f32 %v413, %v413
  %v725 = vmul.f32 %v416, %v416
  %v726 = vmul.f32 %v419, %v419
  %v727 = vmul.f32 %v422, %v422
  %v728 = vmul.f32 %v425, %v425
  %v729 = vmul.f32 %v428, %v428
  %v730 = vmul.f32 %v431, %v431
  %v731 = vmul.f32 %v434, %v434
  %v732 = vmul.f32 %v437, %v437
  %v733 = vmul.f32 %v440, %v440
  %v734 = vmul.f32 %v443, %v443
  %v735 = vmul.f32 %v446, %v446
  %v736 = vmul.f32 %v449, %v449
  %v737 = vmul.f32 %v452, %v452
  %v738 = vmul.f32 %v455, %v455
  %v739 = vmul.f32 %v458, %v458
  %v740 = vmul.f32 %v461, %v461
  %v741 = vmul.f32 %v464, %v464
  %v742 = vmul.f32 %v467, %v467
  %v743 = vmul.f32 %v470, %v470
  %v744 = vmul.f32 %v473, %v473
  %v745 = vmul.f32 %v476, %v476
  %v746 = vmul.f32 %v479, %v479
  %v747 = vmul.f32 %v482, %v482
  %v748 = vsel %vm484, %v684, 0.0
  %v749 = vsel %vm484, %v685, 0.0
  %v750 = vadd.f32 %v748, %v749
  %v751 = vsel %vm484, %v686, 0.0
  %v752 = vadd.f32 %v750, %v751
  %v753 = vsel %vm484, %v687, 0.0
  %v754 = vadd.f32 %v752, %v753
  %v755 = vsel %vm484, %v688, 0.0
  %v756 = vadd.f32 %v754, %v755
  %v757 = vsel %vm484, %v689, 0.0
  %v758 = vadd.f32 %v756, %v757
  %v759 = vsel %vm484, %v690, 0.0
  %v760 = vadd.f32 %v758, %v759
  %v761 = vsel %vm484, %v691, 0.0
  %v762 = vadd.f32 %v760, %v761
  %v763 = vsel %vm484, %v692, 0.0
  %v764 = vadd.f32 %v762, %v763
  %v765 = vsel %vm484, %v693, 0.0
  %v766 = vadd.f32 %v764, %v765
  %v767 = vsel %vm484, %v694, 0.0
  %v768 = vadd.f32 %v766, %v767
  %v769 = vsel %vm484, %v695, 0.0
  %v770 = vadd.f32 %v768, %v769
  %v771 = vsel %vm484, %v696, 0.0
  %v772 = vadd.f32 %v770, %v771
  %v773 = vsel %vm484, %v697, 0.0
  %v774 = vadd.f32 %v772, %v773
  %v775 = vsel %vm484, %v698, 0.0
  %v776 = vadd.f32 %v774, %v775
  %v777 = vsel %vm484, %v699, 0.0
  %v778 = vadd.f32 %v776, %v777
  %v779 = vsel %vm484, %v700, 0.0
  %v780 = vadd.f32 %v778, %v779
  %v781 = vsel %vm484, %v701, 0.0
  %v782 = vadd.f32 %v780, %v781
  %v783 = vsel %vm484, %v702, 0.0
  %v784 = vadd.f32 %v782, %v783
  %v785 = vsel %vm484, %v703, 0.0
  %v786 = vadd.f32 %v784, %v785
  %v787 = vsel %vm484, %v704, 0.0
  %v788 = vadd.f32 %v786, %v787
  %v789 = vsel %vm484, %v705, 0.0
  %v790 = vadd.f32 %v788, %v789
  %v791 = vsel %vm484, %v706, 0.0
  %v792 = vadd.f32 %v790, %v791
  %v793 = vsel %vm484, %v707, 0.0
  %v794 = vadd.f32 %v792, %v793
  %v795 = vsel %vm484, %v708, 0.0
  %v796 = vadd.f32 %v794, %v795
  %v797 = vsel %vm484, %v709, 0.0
  %v798 = vadd.f32 %v796, %v797
  %v799 = vsel %vm484, %v710, 0.0
  %v800 = vadd.f32 %v798, %v799
  %v801 = vsel %vm484, %v711, 0.0
  %v802 = vadd.f32 %v800, %v801
  %v803 = vsel %vm484, %v712, 0.0
  %v804 = vadd.f32 %v802, %v803
  %v805 = vsel %vm484, %v713, 0.0
  %v806 = vadd.f32 %v804, %v805
  %v807 = vsel %vm484, %v714, 0.0
  %v808 = vadd.f32 %v806, %v807
  %v809 = vsel %vm484, %v715, 0.0
  %v810 = vadd.f32 %v808, %v809
  %v811 = vsel %vm484, %v716, 0.0
  %v812 = vadd.f32 %v810, %v811
  %v813 = vsel %vm484, %v717, 0.0
  %v814 = vadd.f32 %v812, %v813
  %v815 = vsel %vm484, %v718, 0.0
  %v816 = vadd.f32 %v814, %v815
  %v817 = vsel %vm484, %v719, 0.0
  %v818 = vadd.f32 %v816, %v817
  %v819 = vsel %vm484, %v720, 0.0
  %v820 = vadd.f32 %v818, %v819
  %v821 = vsel %vm484, %v721, 0.0
  %v822 = vadd.f32 %v820, %v821
  %v823 = vsel %vm484, %v722, 0.0
  %v824 = vadd.f32 %v822, %v823
  %v825 = vsel %vm484, %v723, 0.0
  %v826 = vadd.f32 %v824, %v825
  %v827 = vsel %vm484, %v724, 0.0
  %v828 = vadd.f32 %v826, %v827
  %v829 = vsel %vm484, %v725, 0.0
  %v830 = vadd.f32 %v828, %v829
  %v831 = vsel %vm484, %v726, 0.0
  %v832 = vadd.f32 %v830, %v831
  %v833 = vsel %vm484, %v727, 0.0
  %v834 = vadd.f32 %v832, %v833
  %v835 = vsel %vm484, %v728, 0.0
  %v836 = vadd.f32 %v834, %v835
  %v837 = vsel %vm484, %v729, 0.0
  %v838 = vadd.f32 %v836, %v837
  %v839 = vsel %vm484, %v730, 0.0
  %v840 = vadd.f32 %v838, %v839
  %v841 = vsel %vm484, %v731, 0.0
  %v842 = vadd.f32 %v840, %v841
  %v843 = vsel %vm484, %v732, 0.0
  %v844 = vadd.f32 %v842, %v843
  %v845 = vsel %vm484, %v733, 0.0
  %v846 = vadd.f32 %v844, %v845
  %v847 = vsel %vm484, %v734, 0.0
  %v848 = vadd.f32 %v846, %v847
  %v849 = vsel %vm484, %v735, 0.0
  %v850 = vadd.f32 %v848, %v849
  %v851 = vsel %vm484, %v736, 0.0
  %v852 = vadd.f32 %v850, %v851
  %v853 = vsel %vm484, %v737, 0.0
  %v854 = vadd.f32 %v852, %v853
  %v855 = vsel %vm484, %v738, 0.0
  %v856 = vadd.f32 %v854, %v855
  %v857 = vsel %vm484, %v739, 0.0
  %v858 = vadd.f32 %v856, %v857
  %v859 = vsel %vm484, %v740, 0.0
  %v860 = vadd.f32 %v858, %v859
  %v861 = vsel %vm484, %v741, 0.0
  %v862 = vadd.f32 %v860, %v861
  %v863 = vsel %vm484, %v742, 0.0
  %v864 = vadd.f32 %v862, %v863
  %v865 = vsel %vm484, %v743, 0.0
  %v866 = vadd.f32 %v864, %v865
  %v867 = vsel %vm484, %v744, 0.0
  %v868 = vadd.f32 %v866, %v867
  %v869 = vsel %vm484, %v745, 0.0
  %v870 = vadd.f32 %v868, %v869
  %v871 = vsel %vm484, %v746, 0.0
  %v872 = vadd.f32 %v870, %v871
  %v873 = vsel %vm484, %v747, 0.0
  %v874 = vadd.f32 %v872, %v873
  %v875 = vrot.slane %v874, 4
  %v876 = vadd.f32 %v874, %v875
  %v877 = vrot.slane %v876, 2
  %v878 = vadd.f32 %v876, %v877
  %v879 = vrot.slane %v878, 1
  %v880 = vadd.f32 %v878, %v879
  %881 = vst.msk [vmem:[%s3 + $0x1] sm:$0x1] %vm682, %v880
  // Predicated region
  $region10: #{bottleneck_forward.4} parent=0 // pred_check
    _
  $region11: #{bottleneck_forward.4} parent=0 // pred_check_branch
    %883 = sbr.rel (0) target = $region13
  $region12: #{bottleneck_forward.4} parent=0 // pred_region
    _
  $region13: #{bottleneck_forward.4} parent=0 // pred_fallthru
    _
  // Predicated region
  $region14: #{bottleneck_forward.4} parent=0 // pred_check
    _
  $region15: #{bottleneck_forward.4} parent=0 // pred_check_branch
    %885 = sbr.rel (0) target = $region17
  $region16: #{bottleneck_forward.4} parent=0 // pred_region
    _
  $region17: #{bottleneck_forward.4} parent=0 // pred_fallthru
    _
  // Predicated region
  $region18: #{bottleneck_forward.4} parent=0 // pred_check
    _
  $region19: #{bottleneck_forward.4} parent=0 // pred_check_branch
    %887 = sbr.rel (0) target = $region21
  $region20: #{bottleneck_forward.4} parent=0 // pred_region
    _
  $region21: #{bottleneck_forward.4} parent=0 // pred_fallthru
    _
  // Predicated region
  $region22: #{bottleneck_forward.4} parent=0 // pred_check
    _
  $region23: #{bottleneck_forward.4} parent=0 // pred_check_branch
    %889 = sbr.rel (0) target = $region25
  $region24: #{bottleneck_forward.4} parent=0 // pred_region
    _
  $region25: #{bottleneck_forward.4} parent=0 // pred_fallthru
    _

// kernel: bottleneck_forward.7
$region0: #{bottleneck_forward.7}
  #allocation0 [shape = 'u32[]', space=smem, size = 0x4, offset = 0x4, fixed_abs, tag = 'smem constant byte address 0x4 - core index']
  #allocation1 [shape = 'u32[72,128]{1,0:T(1,128)}', space=vmem, size = 0x9000, scoped, tag = 'internal scratch']
  %s0 = inlined_call_operand.vmem [shape: f32[64,128], index: 0, kind: input, shape index: {}]
  %s1 = inlined_call_operand.vmem [shape: f32[1,128], index: 1, kind: input, shape index: {}]
  %s2 = inlined_call_operand.vmem [shape: f32[1,128], index: 2, kind: input, shape index: {}]
  %s3 = inlined_call_operand.vmem [shape: f32[64,128], index: 3, kind: input, shape index: {}]
  %s4 = inlined_call_operand.vmem [shape: f32[1,128], index: 4, kind: input, shape index: {}]
  %s5 = inlined_call_operand.vmem [shape: f32[1,128], index: 5, kind: input, shape index: {}]
  %s6 = inlined_call_operand.vmem [shape: f32[64,128], index: 6, kind: output, shape index: {}]
  %s7 = sld [smem:[#allocation0]]
  $region34: #{bottleneck_forward.7} parent=0
    _
  %s9 = ssub.s32 1, %s7
  %s10 = scalar_select 0, %s9, %s7
  // Predicated region
  $region2: #{bottleneck_forward.7} parent=0 // pred_check
    _
  $region3: #{bottleneck_forward.7} parent=0 // pred_check_branch
    %12 = sbr.rel (0) target = $region5
  $region4: #{bottleneck_forward.7} parent=0 // pred_region
    _
  $region5: #{bottleneck_forward.7} parent=0 // pred_fallthru
    _
  // Predicated region
  $region6: #{bottleneck_forward.7} parent=0 // pred_check
    _
  $region7: #{bottleneck_forward.7} parent=0 // pred_check_branch
    %14 = sbr.rel (0) target = $region9
  $region8: #{bottleneck_forward.7} parent=0 // pred_region
    _
  $region9: #{bottleneck_forward.7} parent=0 // pred_fallthru
    _
  // Predicated region
  $region10: #{bottleneck_forward.7} parent=0 // pred_check
    _
  $region11: #{bottleneck_forward.7} parent=0 // pred_check_branch
    %16 = sbr.rel (0) target = $region13
  $region12: #{bottleneck_forward.7} parent=0 // pred_region
    _
  $region13: #{bottleneck_forward.7} parent=0 // pred_fallthru
    _
  // Predicated region
  $region14: #{bottleneck_forward.7} parent=0 // pred_check
    _
  $region15: #{bottleneck_forward.7} parent=0 // pred_check_branch
    %18 = sbr.rel (0) target = $region17
  $region16: #{bottleneck_forward.7} parent=0 // pred_region
    _
  $region17: #{bottleneck_forward.7} parent=0 // pred_fallthru
    _
  // Predicated region
  $region18: #{bottleneck_forward.7} parent=0 // pred_check
    _
  $region19: #{bottleneck_forward.7} parent=0 // pred_check_branch
    %20 = sbr.rel (0) target = $region21
  $region20: #{bottleneck_forward.7} parent=0 // pred_region
    _
  $region21: #{bottleneck_forward.7} parent=0 // pred_fallthru
    _
  // Predicated region
  $region22: #{bottleneck_forward.7} parent=0 // pred_check
    _
  $region23: #{bottleneck_forward.7} parent=0 // pred_check_branch
    %22 = sbr.rel (0) target = $region25
  $region24: #{bottleneck_forward.7} parent=0 // pred_region
    _
  $region25: #{bottleneck_forward.7} parent=0 // pred_fallthru
    _
  %v23 = vld [vmem:[%s0] sm:$0xff]
  %v24 = vld [vmem:[%s0 + $0x8] sm:$0xff]
  %v25 = vld [vmem:[%s0 + $0x10] sm:$0xff]
  %v26 = vld [vmem:[%s0 + $0x18] sm:$0xff]
  %v27 = vld [vmem:[%s0 + $0x20] sm:$0xff]
  %v28 = vld [vmem:[%s0 + $0x28] sm:$0xff]
  %v29 = vld [vmem:[%s0 + $0x30] sm:$0xff]
  %v30 = vld [vmem:[%s0 + $0x38] sm:$0xff]
  %v31 = vld [vmem:[%s1] sm:$0x1]
  %v33 = vperm.slane %v31, 0
  %v35 = vmul.f32 %v23, %v33
  %v36 = vmul.f32 %v24, %v33
  %v37 = vmul.f32 %v25, %v33
  %v38 = vmul.f32 %v26, %v33
  %v39 = vmul.f32 %v27, %v33
  %v40 = vmul.f32 %v28, %v33
  %v41 = vmul.f32 %v29, %v33
  %v42 = vmul.f32 %v30, %v33
  %v43 = vld [vmem:[%s2] sm:$0x1]
  %v45 = vperm.slane %v43, 0
  %v47 = vadd.f32 %v35, %v45
  %v48 = vadd.f32 %v36, %v45
  %v49 = vadd.f32 %v37, %v45
  %v50 = vadd.f32 %v38, %v45
  %v51 = vadd.f32 %v39, %v45
  %v52 = vadd.f32 %v40, %v45
  %v53 = vadd.f32 %v41, %v45
  %v54 = vadd.f32 %v42, %v45
  %v55 = vld [vmem:[%s3] sm:$0xff]
  %v56 = vld [vmem:[%s3 + $0x8] sm:$0xff]
  %v57 = vld [vmem:[%s3 + $0x10] sm:$0xff]
  %v58 = vld [vmem:[%s3 + $0x18] sm:$0xff]
  %v59 = vld [vmem:[%s3 + $0x20] sm:$0xff]
  %v60 = vld [vmem:[%s3 + $0x28] sm:$0xff]
  %v61 = vld [vmem:[%s3 + $0x30] sm:$0xff]
  %v62 = vld [vmem:[%s3 + $0x38] sm:$0xff]
  %v63 = vld [vmem:[%s4] sm:$0x1]
  %v65 = vperm.slane %v63, 0
  %v67 = vmul.f32 %v55, %v65
  %v68 = vmul.f32 %v56, %v65
  %v69 = vmul.f32 %v57, %v65
  %v70 = vmul.f32 %v58, %v65
  %v71 = vmul.f32 %v59, %v65
  %v72 = vmul.f32 %v60, %v65
  %v73 = vmul.f32 %v61, %v65
  %v74 = vmul.f32 %v62, %v65
  %v75 = vld [vmem:[%s5] sm:$0x1]
  %v77 = vperm.slane %v75, 0
  %v79 = vadd.f32 %v67, %v77
  %v80 = vadd.f32 %v68, %v77
  %v81 = vadd.f32 %v69, %v77
  %v82 = vadd.f32 %v70, %v77
  %v83 = vadd.f32 %v71, %v77
  %v84 = vadd.f32 %v72, %v77
  %v85 = vadd.f32 %v73, %v77
  %v86 = vadd.f32 %v74, %v77
  %v87 = vadd.f32 %v47, %v79
  %v88 = vadd.f32 %v48, %v80
  %v89 = vadd.f32 %v49, %v81
  %v90 = vadd.f32 %v50, %v82
  %v91 = vadd.f32 %v51, %v83
  %v92 = vadd.f32 %v52, %v84
  %v93 = vadd.f32 %v53, %v85
  %v94 = vadd.f32 %v54, %v86
  %vm95 = vcmp.ge.f32.partialorder %v87, 0.0
  %vm96 = vcmp.ge.f32.partialorder %v88, 0.0
  %vm97 = vcmp.ge.f32.partialorder %v89, 0.0
  %vm98 = vcmp.ge.f32.partialorder %v90, 0.0
  %vm99 = vcmp.ge.f32.partialorder %v91, 0.0
  %vm100 = vcmp.ge.f32.partialorder %v92, 0.0
  %vm101 = vcmp.ge.f32.partialorder %v93, 0.0
  %vm102 = vcmp.ge.f32.partialorder %v94, 0.0
  %v103 = vmul.f32 %v87, 0.01
  %v104 = vmul.f32 %v88, 0.01
  %v105 = vmul.f32 %v89, 0.01
  %v106 = vmul.f32 %v90, 0.01
  %v107 = vmul.f32 %v91, 0.01
  %v108 = vmul.f32 %v92, 0.01
  %v109 = vmul.f32 %v93, 0.01
  %v110 = vmul.f32 %v94, 0.01
  %v111 = vsel %vm95, %v87, %v103
  %v112 = vsel %vm96, %v88, %v104
  %v113 = vsel %vm97, %v89, %v105
  %v114 = vsel %vm98, %v90, %v106
  %v115 = vsel %vm99, %v91, %v107
  %v116 = vsel %vm100, %v92, %v108
  %v117 = vsel %vm101, %v93, %v109
  %v118 = vsel %vm102, %v94, %v110
  %119 = vst [vmem:[%s6] sm:$0xff] %v111
  %120 = vst [vmem:[%s6 + $0x8] sm:$0xff] %v112
  %121 = vst [vmem:[%s6 + $0x10] sm:$0xff] %v113
  %122 = vst [vmem:[%s6 + $0x18] sm:$0xff] %v114
  %123 = vst [vmem:[%s6 + $0x20] sm:$0xff] %v115
  %124 = vst [vmem:[%s6 + $0x28] sm:$0xff] %v116
  %125 = vst [vmem:[%s6 + $0x30] sm:$0xff] %v117
  %126 = vst [vmem:[%s6 + $0x38] sm:$0xff] %v118
  // Predicated region
  $region26: #{bottleneck_forward.7} parent=0 // pred_check
    _
  $region27: #{bottleneck_forward.7} parent=0 // pred_check_branch
    %128 = sbr.rel (0) target = $region29
  $region28: #{bottleneck_forward.7} parent=0 // pred_region
    _
  $region29: #{bottleneck_forward.7} parent=0 // pred_fallthru
    _
  // Predicated region
  $region30: #{bottleneck_forward.7} parent=0 // pred_check
    _
  $region31: #{bottleneck_forward.7} parent=0 // pred_check_branch
    %130 = sbr.rel (0) target = $region33
  $region32: #{bottleneck_forward.7} parent=0 // pred_region
    _
  $region33: #{bottleneck_forward.7} parent=0 // pred_fallthru
    _

// kernel: bottleneck_forward.6
$region0: #{bottleneck_forward.6}
  #allocation0 [shape = 'u32[]', space=smem, size = 0x4, offset = 0x4, fixed_abs, tag = 'smem constant byte address 0x4 - core index']
  #allocation1 [shape = 'u32[72,128]{1,0:T(1,128)}', space=vmem, size = 0x9000, scoped, tag = 'internal scratch']
  %s0 = inlined_call_operand.vmem [shape: f32[512,8], index: 0, kind: input, shape index: {}]
  %s1 = inlined_call_operand.vmem [shape: f32[1,8], index: 1, kind: input, shape index: {}]
  %s2 = inlined_call_operand.vmem [shape: f32[1,8], index: 2, kind: input, shape index: {}]
  %s3 = inlined_call_operand.vmem [shape: f32[8,16], index: 3, kind: input, shape index: {}]
  %s4 = inlined_call_operand.vmem [shape: f32[512,4], index: 4, kind: input, shape index: {}]
  %s5 = inlined_call_operand.vmem [shape: f32[4,16], index: 5, kind: input, shape index: {}]
  %s6 = inlined_call_operand.vmem [shape: f32[512,16], index: 6, kind: output, shape index: {0}]
  %s7 = inlined_call_operand.vmem [shape: f32[1,2,16], index: 7, kind: output, shape index: {1}]
  %s8 = inlined_call_operand.vmem [shape: f32[512,16], index: 8, kind: output, shape index: {2}]
  %s9 = inlined_call_operand.vmem [shape: f32[1,2,16], index: 9, kind: output, shape index: {3}]
  %10 = xla_tuple %s6, %s7, %s8, %s9
  %s11 = sld [smem:[#allocation0]]
  $region58: #{bottleneck_forward.6} parent=0
    _
  %s13 = ssub.s32 1, %s11
  %s14 = scalar_select 0, %s13, %s11
  // Predicated region
  $region2: #{bottleneck_forward.6} parent=0 // pred_check
    _
  $region3: #{bottleneck_forward.6} parent=0 // pred_check_branch
    %16 = sbr.rel (0) target = $region5
  $region4: #{bottleneck_forward.6} parent=0 // pred_region
    _
  $region5: #{bottleneck_forward.6} parent=0 // pred_fallthru
    _
  // Predicated region
  $region6: #{bottleneck_forward.6} parent=0 // pred_check
    _
  $region7: #{bottleneck_forward.6} parent=0 // pred_check_branch
    %18 = sbr.rel (0) target = $region9
  $region8: #{bottleneck_forward.6} parent=0 // pred_region
    _
  $region9: #{bottleneck_forward.6} parent=0 // pred_fallthru
    _
  // Predicated region
  $region10: #{bottleneck_forward.6} parent=0 // pred_check
    _
  $region11: #{bottleneck_forward.6} parent=0 // pred_check_branch
    %20 = sbr.rel (0) target = $region13
  $region12: #{bottleneck_forward.6} parent=0 // pred_region
    _
  $region13: #{bottleneck_forward.6} parent=0 // pred_fallthru
    _
  // Predicated region
  $region14: #{bottleneck_forward.6} parent=0 // pred_check
    _
  $region15: #{bottleneck_forward.6} parent=0 // pred_check_branch
    %22 = sbr.rel (0) target = $region17
  $region16: #{bottleneck_forward.6} parent=0 // pred_region
    _
  $region17: #{bottleneck_forward.6} parent=0 // pred_fallthru
    _
  // Predicated region
  $region18: #{bottleneck_forward.6} parent=0 // pred_check
    _
  $region19: #{bottleneck_forward.6} parent=0 // pred_check_branch
    %24 = sbr.rel (0) target = $region21
  $region20: #{bottleneck_forward.6} parent=0 // pred_region
    _
  $region21: #{bottleneck_forward.6} parent=0 // pred_fallthru
    _
  // Predicated region
  $region22: #{bottleneck_forward.6} parent=0 // pred_check
    _
  $region23: #{bottleneck_forward.6} parent=0 // pred_check_branch
    %26 = sbr.rel (0) target = $region25
  $region24: #{bottleneck_forward.6} parent=0 // pred_region
    _
  $region25: #{bottleneck_forward.6} parent=0 // pred_fallthru
    _
  %v27 = vld [vmem:[%s0] sm:$0xff]
  %v28 = vld [vmem:[%s0 + $0x8] sm:$0xff]
  %v29 = vld [vmem:[%s0 + $0x10] sm:$0xff]
  %v30 = vld [vmem:[%s0 + $0x18] sm:$0xff]
  %v31 = vld [vmem:[%s0 + $0x20] sm:$0xff]
  %v32 = vld [vmem:[%s0 + $0x28] sm:$0xff]
  %v33 = vld [vmem:[%s0 + $0x30] sm:$0xff]
  %v34 = vld [vmem:[%s0 + $0x38] sm:$0xff]
  %v35 = vld [vmem:[%s0 + $0x40] sm:$0xff]
  %v36 = vld [vmem:[%s0 + $0x48] sm:$0xff]
  %v37 = vld [vmem:[%s0 + $0x50] sm:$0xff]
  %v38 = vld [vmem:[%s0 + $0x58] sm:$0xff]
  %v39 = vld [vmem:[%s0 + $0x60] sm:$0xff]
  %v40 = vld [vmem:[%s0 + $0x68] sm:$0xff]
  %v41 = vld [vmem:[%s0 + $0x70] sm:$0xff]
  %v42 = vld [vmem:[%s0 + $0x78] sm:$0xff]
  %v43 = vld [vmem:[%s0 + $0x80] sm:$0xff]
  %v44 = vld [vmem:[%s0 + $0x88] sm:$0xff]
  %v45 = vld [vmem:[%s0 + $0x90] sm:$0xff]
  %v46 = vld [vmem:[%s0 + $0x98] sm:$0xff]
  %v47 = vld [vmem:[%s0 + $0xa0] sm:$0xff]
  %v48 = vld [vmem:[%s0 + $0xa8] sm:$0xff]
  %v49 = vld [vmem:[%s0 + $0xb0] sm:$0xff]
  %v50 = vld [vmem:[%s0 + $0xb8] sm:$0xff]
  %v51 = vld [vmem:[%s0 + $0xc0] sm:$0xff]
  %v52 = vld [vmem:[%s0 + $0xc8] sm:$0xff]
  %v53 = vld [vmem:[%s0 + $0xd0] sm:$0xff]
  %v54 = vld [vmem:[%s0 + $0xd8] sm:$0xff]
  %v55 = vld [vmem:[%s0 + $0xe0] sm:$0xff]
  %v56 = vld [vmem:[%s0 + $0xe8] sm:$0xff]
  %v57 = vld [vmem:[%s0 + $0xf0] sm:$0xff]
  %v58 = vld [vmem:[%s0 + $0xf8] sm:$0xff]
  %v59 = vld [vmem:[%s0 + $0x100] sm:$0xff]
  %v60 = vld [vmem:[%s0 + $0x108] sm:$0xff]
  %v61 = vld [vmem:[%s0 + $0x110] sm:$0xff]
  %v62 = vld [vmem:[%s0 + $0x118] sm:$0xff]
  %v63 = vld [vmem:[%s0 + $0x120] sm:$0xff]
  %v64 = vld [vmem:[%s0 + $0x128] sm:$0xff]
  %v65 = vld [vmem:[%s0 + $0x130] sm:$0xff]
  %v66 = vld [vmem:[%s0 + $0x138] sm:$0xff]
  %v67 = vld [vmem:[%s0 + $0x140] sm:$0xff]
  %v68 = vld [vmem:[%s0 + $0x148] sm:$0xff]
  %v69 = vld [vmem:[%s0 + $0x150] sm:$0xff]
  %v70 = vld [vmem:[%s0 + $0x158] sm:$0xff]
  %v71 = vld [vmem:[%s0 + $0x160] sm:$0xff]
  %v72 = vld [vmem:[%s0 + $0x168] sm:$0xff]
  %v73 = vld [vmem:[%s0 + $0x170] sm:$0xff]
  %v74 = vld [vmem:[%s0 + $0x178] sm:$0xff]
  %v75 = vld [vmem:[%s0 + $0x180] sm:$0xff]
  %v76 = vld [vmem:[%s0 + $0x188] sm:$0xff]
  %v77 = vld [vmem:[%s0 + $0x190] sm:$0xff]
  %v78 = vld [vmem:[%s0 + $0x198] sm:$0xff]
  %v79 = vld [vmem:[%s0 + $0x1a0] sm:$0xff]
  %v80 = vld [vmem:[%s0 + $0x1a8] sm:$0xff]
  %v81 = vld [vmem:[%s0 + $0x1b0] sm:$0xff]
  %v82 = vld [vmem:[%s0 + $0x1b8] sm:$0xff]
  %v83 = vld [vmem:[%s0 + $0x1c0] sm:$0xff]
  %v84 = vld [vmem:[%s0 + $0x1c8] sm:$0xff]
  %v85 = vld [vmem:[%s0 + $0x1d0] sm:$0xff]
  %v86 = vld [vmem:[%s0 + $0x1d8] sm:$0xff]
  %v87 = vld [vmem:[%s0 + $0x1e0] sm:$0xff]
  %v88 = vld [vmem:[%s0 + $0x1e8] sm:$0xff]
  %v89 = vld [vmem:[%s0 + $0x1f0] sm:$0xff]
  %v90 = vld [vmem:[%s0 + $0x1f8] sm:$0xff]
  %v91 = vld [vmem:[%s1] sm:$0x1]
  %v93 = vperm.slane %v91, 0
  %v95 = vmul.f32 %v27, %v93
  %v96 = vmul.f32 %v28, %v93
  %v97 = vmul.f32 %v29, %v93
  %v98 = vmul.f32 %v30, %v93
  %v99 = vmul.f32 %v31, %v93
  %v100 = vmul.f32 %v32, %v93
  %v101 = vmul.f32 %v33, %v93
  %v102 = vmul.f32 %v34, %v93
  %v103 = vmul.f32 %v35, %v93
  %v104 = vmul.f32 %v36, %v93
  %v105 = vmul.f32 %v37, %v93
  %v106 = vmul.f32 %v38, %v93
  %v107 = vmul.f32 %v39, %v93
  %v108 = vmul.f32 %v40, %v93
  %v109 = vmul.f32 %v41, %v93
  %v110 = vmul.f32 %v42, %v93
  %v111 = vmul.f32 %v43, %v93
  %v112 = vmul.f32 %v44, %v93
  %v113 = vmul.f32 %v45, %v93
  %v114 = vmul.f32 %v46, %v93
  %v115 = vmul.f32 %v47, %v93
  %v116 = vmul.f32 %v48, %v93
  %v117 = vmul.f32 %v49, %v93
  %v118 = vmul.f32 %v50, %v93
  %v119 = vmul.f32 %v51, %v93
  %v120 = vmul.f32 %v52, %v93
  %v121 = vmul.f32 %v53, %v93
  %v122 = vmul.f32 %v54, %v93
  %v123 = vmul.f32 %v55, %v93
  %v124 = vmul.f32 %v56, %v93
  %v125 = vmul.f32 %v57, %v93
  %v126 = vmul.f32 %v58, %v93
  %v127 = vmul.f32 %v59, %v93
  %v128 = vmul.f32 %v60, %v93
  %v129 = vmul.f32 %v61, %v93
  %v130 = vmul.f32 %v62, %v93
  %v131 = vmul.f32 %v63, %v93
  %v132 = vmul.f32 %v64, %v93
  %v133 = vmul.f32 %v65, %v93
  %v134 = vmul.f32 %v66, %v93
  %v135 = vmul.f32 %v67, %v93
  %v136 = vmul.f32 %v68, %v93
  %v137 = vmul.f32 %v69, %v93
  %v138 = vmul.f32 %v70, %v93
  %v139 = vmul.f32 %v71, %v93
  %v140 = vmul.f32 %v72, %v93
  %v141 = vmul.f32 %v73, %v93
  %v142 = vmul.f32 %v74, %v93
  %v143 = vmul.f32 %v75, %v93
  %v144 = vmul.f32 %v76, %v93
  %v145 = vmul.f32 %v77, %v93
  %v146 = vmul.f32 %v78, %v93
  %v147 = vmul.f32 %v79, %v93
  %v148 = vmul.f32 %v80, %v93
  %v149 = vmul.f32 %v81, %v93
  %v150 = vmul.f32 %v82, %v93
  %v151 = vmul.f32 %v83, %v93
  %v152 = vmul.f32 %v84, %v93
  %v153 = vmul.f32 %v85, %v93
  %v154 = vmul.f32 %v86, %v93
  %v155 = vmul.f32 %v87, %v93
  %v156 = vmul.f32 %v88, %v93
  %v157 = vmul.f32 %v89, %v93
  %v158 = vmul.f32 %v90, %v93
  %v159 = vld [vmem:[%s2] sm:$0x1]
  %v161 = vperm.slane %v159, 0
  %v163 = vadd.f32 %v95, %v161
  %v164 = vadd.f32 %v96, %v161
  %v165 = vadd.f32 %v97, %v161
  %v166 = vadd.f32 %v98, %v161
  %v167 = vadd.f32 %v99, %v161
  %v168 = vadd.f32 %v100, %v161
  %v169 = vadd.f32 %v101, %v161
  %v170 = vadd.f32 %v102, %v161
  %v171 = vadd.f32 %v103, %v161
  %v172 = vadd.f32 %v104, %v161
  %v173 = vadd.f32 %v105, %v161
  %v174 = vadd.f32 %v106, %v161
  %v175 = vadd.f32 %v107, %v161
  %v176 = vadd.f32 %v108, %v161
  %v177 = vadd.f32 %v109, %v161
  %v178 = vadd.f32 %v110, %v161
  %v179 = vadd.f32 %v111, %v161
  %v180 = vadd.f32 %v112, %v161
  %v181 = vadd.f32 %v113, %v161
  %v182 = vadd.f32 %v114, %v161
  %v183 = vadd.f32 %v115, %v161
  %v184 = vadd.f32 %v116, %v161
  %v185 = vadd.f32 %v117, %v161
  %v186 = vadd.f32 %v118, %v161
  %v187 = vadd.f32 %v119, %v161
  %v188 = vadd.f32 %v120, %v161
  %v189 = vadd.f32 %v121, %v161
  %v190 = vadd.f32 %v122, %v161
  %v191 = vadd.f32 %v123, %v161
  %v192 = vadd.f32 %v124, %v161
  %v193 = vadd.f32 %v125, %v161
  %v194 = vadd.f32 %v126, %v161
  %v195 = vadd.f32 %v127, %v161
  %v196 = vadd.f32 %v128, %v161
  %v197 = vadd.f32 %v129, %v161
  %v198 = vadd.f32 %v130, %v161
  %v199 = vadd.f32 %v131, %v161
  %v200 = vadd.f32 %v132, %v161
  %v201 = vadd.f32 %v133, %v161
  %v202 = vadd.f32 %v134, %v161
  %v203 = vadd.f32 %v135, %v161
  %v204 = vadd.f32 %v136, %v161
  %v205 = vadd.f32 %v137, %v161
  %v206 = vadd.f32 %v138, %v161
  %v207 = vadd.f32 %v139, %v161
  %v208 = vadd.f32 %v140, %v161
  %v209 = vadd.f32 %v141, %v161
  %v210 = vadd.f32 %v142, %v161
  %v211 = vadd.f32 %v143, %v161
  %v212 = vadd.f32 %v144, %v161
  %v213 = vadd.f32 %v145, %v161
  %v214 = vadd.f32 %v146, %v161
  %v215 = vadd.f32 %v147, %v161
  %v216 = vadd.f32 %v148, %v161
  %v217 = vadd.f32 %v149, %v161
  %v218 = vadd.f32 %v150, %v161
  %v219 = vadd.f32 %v151, %v161
  %v220 = vadd.f32 %v152, %v161
  %v221 = vadd.f32 %v153, %v161
  %v222 = vadd.f32 %v154, %v161
  %v223 = vadd.f32 %v155, %v161
  %v224 = vadd.f32 %v156, %v161
  %v225 = vadd.f32 %v157, %v161
  %v226 = vadd.f32 %v158, %v161
  %vm227 = vcmp.ge.f32.partialorder %v163, 0.0
  %vm228 = vcmp.ge.f32.partialorder %v164, 0.0
  %vm229 = vcmp.ge.f32.partialorder %v165, 0.0
  %vm230 = vcmp.ge.f32.partialorder %v166, 0.0
  %vm231 = vcmp.ge.f32.partialorder %v167, 0.0
  %vm232 = vcmp.ge.f32.partialorder %v168, 0.0
  %vm233 = vcmp.ge.f32.partialorder %v169, 0.0
  %vm234 = vcmp.ge.f32.partialorder %v170, 0.0
  %vm235 = vcmp.ge.f32.partialorder %v171, 0.0
  %vm236 = vcmp.ge.f32.partialorder %v172, 0.0
  %vm237 = vcmp.ge.f32.partialorder %v173, 0.0
  %vm238 = vcmp.ge.f32.partialorder %v174, 0.0
  %vm239 = vcmp.ge.f32.partialorder %v175, 0.0
  %vm240 = vcmp.ge.f32.partialorder %v176, 0.0
  %vm241 = vcmp.ge.f32.partialorder %v177, 0.0
  %vm242 = vcmp.ge.f32.partialorder %v178, 0.0
  %vm243 = vcmp.ge.f32.partialorder %v179, 0.0
  %vm244 = vcmp.ge.f32.partialorder %v180, 0.0
  %vm245 = vcmp.ge.f32.partialorder %v181, 0.0
  %vm246 = vcmp.ge.f32.partialorder %v182, 0.0
  %vm247 = vcmp.ge.f32.partialorder %v183, 0.0
  %vm248 = vcmp.ge.f32.partialorder %v184, 0.0
  %vm249 = vcmp.ge.f32.partialorder %v185, 0.0
  %vm250 = vcmp.ge.f32.partialorder %v186, 0.0
  %vm251 = vcmp.ge.f32.partialorder %v187, 0.0
  %vm252 = vcmp.ge.f32.partialorder %v188, 0.0
  %vm253 = vcmp.ge.f32.partialorder %v189, 0.0
  %vm254 = vcmp.ge.f32.partialorder %v190, 0.0
  %vm255 = vcmp.ge.f32.partialorder %v191, 0.0
  %vm256 = vcmp.ge.f32.partialorder %v192, 0.0
  %vm257 = vcmp.ge.f32.partialorder %v193, 0.0
  %vm258 = vcmp.ge.f32.partialorder %v194, 0.0
  %vm259 = vcmp.ge.f32.partialorder %v195, 0.0
  %vm260 = vcmp.ge.f32.partialorder %v196, 0.0
  %vm261 = vcmp.ge.f32.partialorder %v197, 0.0
  %vm262 = vcmp.ge.f32.partialorder %v198, 0.0
  %vm263 = vcmp.ge.f32.partialorder %v199, 0.0
  %vm264 = vcmp.ge.f32.partialorder %v200, 0.0
  %vm265 = vcmp.ge.f32.partialorder %v201, 0.0
  %vm266 = vcmp.ge.f32.partialorder %v202, 0.0
  %vm267 = vcmp.ge.f32.partialorder %v203, 0.0
  %vm268 = vcmp.ge.f32.partialorder %v204, 0.0
  %vm269 = vcmp.ge.f32.partialorder %v205, 0.0
  %vm270 = vcmp.ge.f32.partialorder %v206, 0.0
  %vm271 = vcmp.ge.f32.partialorder %v207, 0.0
  %vm272 = vcmp.ge.f32.partialorder %v208, 0.0
  %vm273 = vcmp.ge.f32.partialorder %v209, 0.0
  %vm274 = vcmp.ge.f32.partialorder %v210, 0.0
  %vm275 = vcmp.ge.f32.partialorder %v211, 0.0
  %vm276 = vcmp.ge.f32.partialorder %v212, 0.0
  %vm277 = vcmp.ge.f32.partialorder %v213, 0.0
  %vm278 = vcmp.ge.f32.partialorder %v214, 0.0
  %vm279 = vcmp.ge.f32.partialorder %v215, 0.0
  %vm280 = vcmp.ge.f32.partialorder %v216, 0.0
  %vm281 = vcmp.ge.f32.partialorder %v217, 0.0
  %vm282 = vcmp.ge.f32.partialorder %v218, 0.0
  %vm283 = vcmp.ge.f32.partialorder %v219, 0.0
  %vm284 = vcmp.ge.f32.partialorder %v220, 0.0
  %vm285 = vcmp.ge.f32.partialorder %v221, 0.0
  %vm286 = vcmp.ge.f32.partialorder %v222, 0.0
  %vm287 = vcmp.ge.f32.partialorder %v223, 0.0
  %vm288 = vcmp.ge.f32.partialorder %v224, 0.0
  %vm289 = vcmp.ge.f32.partialorder %v225, 0.0
  %vm290 = vcmp.ge.f32.partialorder %v226, 0.0
  %v291 = vmul.f32 %v163, 0.01
  %v292 = vmul.f32 %v164, 0.01
  %v293 = vmul.f32 %v165, 0.01
  %v294 = vmul.f32 %v166, 0.01
  %v295 = vmul.f32 %v167, 0.01
  %v296 = vmul.f32 %v168, 0.01
  %v297 = vmul.f32 %v169, 0.01
  %v298 = vmul.f32 %v170, 0.01
  %v299 = vmul.f32 %v171, 0.01
  %v300 = vmul.f32 %v172, 0.01
  %v301 = vmul.f32 %v173, 0.01
  %v302 = vmul.f32 %v174, 0.01
  %v303 = vmul.f32 %v175, 0.01
  %v304 = vmul.f32 %v176, 0.01
  %v305 = vmul.f32 %v177, 0.01
  %v306 = vmul.f32 %v178, 0.01
  %v307 = vmul.f32 %v179, 0.01
  %v308 = vmul.f32 %v180, 0.01
  %v309 = vmul.f32 %v181, 0.01
  %v310 = vmul.f32 %v182, 0.01
  %v311 = vmul.f32 %v183, 0.01
  %v312 = vmul.f32 %v184, 0.01
  %v313 = vmul.f32 %v185, 0.01
  %v314 = vmul.f32 %v186, 0.01
  %v315 = vmul.f32 %v187, 0.01
  %v316 = vmul.f32 %v188, 0.01
  %v317 = vmul.f32 %v189, 0.01
  %v318 = vmul.f32 %v190, 0.01
  %v319 = vmul.f32 %v191, 0.01
  %v320 = vmul.f32 %v192, 0.01
  %v321 = vmul.f32 %v193, 0.01
  %v322 = vmul.f32 %v194, 0.01
  %v323 = vmul.f32 %v195, 0.01
  %v324 = vmul.f32 %v196, 0.01
  %v325 = vmul.f32 %v197, 0.01
  %v326 = vmul.f32 %v198, 0.01
  %v327 = vmul.f32 %v199, 0.01
  %v328 = vmul.f32 %v200, 0.01
  %v329 = vmul.f32 %v201, 0.01
  %v330 = vmul.f32 %v202, 0.01
  %v331 = vmul.f32 %v203, 0.01
  %v332 = vmul.f32 %v204, 0.01
  %v333 = vmul.f32 %v205, 0.01
  %v334 = vmul.f32 %v206, 0.01
  %v335 = vmul.f32 %v207, 0.01
  %v336 = vmul.f32 %v208, 0.01
  %v337 = vmul.f32 %v209, 0.01
  %v338 = vmul.f32 %v210, 0.01
  %v339 = vmul.f32 %v211, 0.01
  %v340 = vmul.f32 %v212, 0.01
  %v341 = vmul.f32 %v213, 0.01
  %v342 = vmul.f32 %v214, 0.01
  %v343 = vmul.f32 %v215, 0.01
  %v344 = vmul.f32 %v216, 0.01
  %v345 = vmul.f32 %v217, 0.01
  %v346 = vmul.f32 %v218, 0.01
  %v347 = vmul.f32 %v219, 0.01
  %v348 = vmul.f32 %v220, 0.01
  %v349 = vmul.f32 %v221, 0.01
  %v350 = vmul.f32 %v222, 0.01
  %v351 = vmul.f32 %v223, 0.01
  %v352 = vmul.f32 %v224, 0.01
  %v353 = vmul.f32 %v225, 0.01
  %v354 = vmul.f32 %v226, 0.01
  %v355 = vsel %vm227, %v163, %v291
  %v356 = vsel %vm228, %v164, %v292
  %v357 = vsel %vm229, %v165, %v293
  %v358 = vsel %vm230, %v166, %v294
  %v359 = vsel %vm231, %v167, %v295
  %v360 = vsel %vm232, %v168, %v296
  %v361 = vsel %vm233, %v169, %v297
  %v362 = vsel %vm234, %v170, %v298
  %v363 = vsel %vm235, %v171, %v299
  %v364 = vsel %vm236, %v172, %v300
  %v365 = vsel %vm237, %v173, %v301
  %v366 = vsel %vm238, %v174, %v302
  %v367 = vsel %vm239, %v175, %v303
  %v368 = vsel %vm240, %v176, %v304
  %v369 = vsel %vm241, %v177, %v305
  %v370 = vsel %vm242, %v178, %v306
  %v371 = vsel %vm243, %v179, %v307
  %v372 = vsel %vm244, %v180, %v308
  %v373 = vsel %vm245, %v181, %v309
  %v374 = vsel %vm246, %v182, %v310
  %v375 = vsel %vm247, %v183, %v311
  %v376 = vsel %vm248, %v184, %v312
  %v377 = vsel %vm249, %v185, %v313
  %v378 = vsel %vm250, %v186, %v314
  %v379 = vsel %vm251, %v187, %v315
  %v380 = vsel %vm252, %v188, %v316
  %v381 = vsel %vm253, %v189, %v317
  %v382 = vsel %vm254, %v190, %v318
  %v383 = vsel %vm255, %v191, %v319
  %v384 = vsel %vm256, %v192, %v320
  %v385 = vsel %vm257, %v193, %v321
  %v386 = vsel %vm258, %v194, %v322
  %v387 = vsel %vm259, %v195, %v323
  %v388 = vsel %vm260, %v196, %v324
  %v389 = vsel %vm261, %v197, %v325
  %v390 = vsel %vm262, %v198, %v326
  %v391 = vsel %vm263, %v199, %v327
  %v392 = vsel %vm264, %v200, %v328
  %v393 = vsel %vm265, %v201, %v329
  %v394 = vsel %vm266, %v202, %v330
  %v395 = vsel %vm267, %v203, %v331
  %v396 = vsel %vm268, %v204, %v332
  %v397 = vsel %vm269, %v205, %v333
  %v398 = vsel %vm270, %v206, %v334
  %v399 = vsel %vm271, %v207, %v335
  %v400 = vsel %vm272, %v208, %v336
  %v401 = vsel %vm273, %v209, %v337
  %v402 = vsel %vm274, %v210, %v338
  %v403 = vsel %vm275, %v211, %v339
  %v404 = vsel %vm276, %v212, %v340
  %v405 = vsel %vm277, %v213, %v341
  %v406 = vsel %vm278, %v214, %v342
  %v407 = vsel %vm279, %v215, %v343
  %v408 = vsel %vm280, %v216, %v344
  %v409 = vsel %vm281, %v217, %v345
  %v410 = vsel %vm282, %v218, %v346
  %v411 = vsel %vm283, %v219, %v347
  %v412 = vsel %vm284, %v220, %v348
  %v413 = vsel %vm285, %v221, %v349
  %v414 = vsel %vm286, %v222, %v350
  %v415 = vsel %vm287, %v223, %v351
  %v416 = vsel %vm288, %v224, %v352
  %v417 = vsel %vm289, %v225, %v353
  %v418 = vsel %vm290, %v226, %v354
  %v419 = vld [vmem:[%s3] sm:$0xff]
  %vm420 = vcmask 64512
  %v422 = vsel %vm420, %v355, 0
  %v425 = vsel %vm420, %v356, 0
  %v428 = vsel %vm420, %v357, 0
  %v431 = vsel %vm420, %v358, 0
  %v434 = vsel %vm420, %v359, 0
  %v437 = vsel %vm420, %v360, 0
  %v440 = vsel %vm420, %v361, 0
  %v443 = vsel %vm420, %v362, 0
  %v446 = vsel %vm420, %v363, 0
  %v449 = vsel %vm420, %v364, 0
  %v452 = vsel %vm420, %v365, 0
  %v455 = vsel %vm420, %v366, 0
  %v458 = vsel %vm420, %v367, 0
  %v461 = vsel %vm420, %v368, 0
  %v464 = vsel %vm420, %v369, 0
  %v467 = vsel %vm420, %v370, 0
  %v470 = vsel %vm420, %v371, 0
  %v473 = vsel %vm420, %v372, 0
  %v476 = vsel %vm420, %v373, 0
  %v479 = vsel %vm420, %v374, 0
  %v482 = vsel %vm420, %v375, 0
  %v485 = vsel %vm420, %v376, 0
  %v488 = vsel %vm420, %v377, 0
  %v491 = vsel %vm420, %v378, 0
  %v494 = vsel %vm420, %v379, 0
  %v497 = vsel %vm420, %v380, 0
  %v500 = vsel %vm420, %v381, 0
  %v503 = vsel %vm420, %v382, 0
  %v506 = vsel %vm420, %v383, 0
  %v509 = vsel %vm420, %v384, 0
  %v512 = vsel %vm420, %v385, 0
  %v515 = vsel %vm420, %v386, 0
  %v518 = vsel %vm420, %v387, 0
  %v521 = vsel %vm420, %v388, 0
  %v524 = vsel %vm420, %v389, 0
  %v527 = vsel %vm420, %v390, 0
  %v530 = vsel %vm420, %v391, 0
  %v533 = vsel %vm420, %v392, 0
  %v536 = vsel %vm420, %v393, 0
  %v539 = vsel %vm420, %v394, 0
  %v542 = vsel %vm420, %v395, 0
  %v545 = vsel %vm420, %v396, 0
  %v548 = vsel %vm420, %v397, 0
  %v551 = vsel %vm420, %v398, 0
  %v554 = vsel %vm420, %v399, 0
  %v557 = vsel %vm420, %v400, 0
  %v560 = vsel %vm420, %v401, 0
  %v563 = vsel %vm420, %v402, 0
  %v566 = vsel %vm420, %v403, 0
  %v569 = vsel %vm420, %v404, 0
  %v572 = vsel %vm420, %v405, 0
  %v575 = vsel %vm420, %v406, 0
  %v578 = vsel %vm420, %v407, 0
  %v581 = vsel %vm420, %v408, 0
  %v584 = vsel %vm420, %v409, 0
  %v587 = vsel %vm420, %v410, 0
  %v590 = vsel %vm420, %v411, 0
  %v593 = vsel %vm420, %v412, 0
  %v596 = vsel %vm420, %v413, 0
  %v599 = vsel %vm420, %v414, 0
  %v602 = vsel %vm420, %v415, 0
  %v605 = vsel %vm420, %v416, 0
  %v608 = vsel %vm420, %v417, 0
  %v611 = vsel %vm420, %v418, 0
  %613 = vmatpush.msra.mxu0 0.0
  %614 = vmatpush.msra.mxu0 0.0
  %615 = vmatpush.msra.mxu0 0.0
  %616 = vmatpush.msra.mxu0 0.0
  %617 = vmatpush.msra.mxu0 0.0
  %618 = vmatpush.msra.mxu0 0.0
  %619 = vmatpush.msra.mxu0 0.0
  %620 = vmatpush.msra.mxu0 0.0
  %621 = vmatpush.msra.mxu0 0.0
  %622 = vmatpush.msra.mxu0 0.0
  %623 = vmatpush.msra.mxu0 0.0
  %624 = vmatpush.msra.mxu0 0.0
  %625 = vmatpush.msra.mxu0 0.0
  %626 = vmatpush.msra.mxu0 0.0
  %627 = vmatpush.msra.mxu0 0.0
  %628 = vmatpush.msra.mxu0 %v419
  %629 = vmatmul.f32.gmra.mxu0 %v422
  %v630 = vpop.f32.mrf.mxu0
  %v631 = vadd.f32 0.0, %v630
  %632 = vmatmul.f32.gmra.mxu0 %v425
  %v633 = vpop.f32.mrf.mxu0
  %v634 = vadd.f32 0.0, %v633
  %635 = vmatmul.f32.gmra.mxu0 %v428
  %v636 = vpop.f32.mrf.mxu0
  %v637 = vadd.f32 0.0, %v636
  %638 = vmatmul.f32.gmra.mxu0 %v431
  %v639 = vpop.f32.mrf.mxu0
  %v640 = vadd.f32 0.0, %v639
  %641 = vmatmul.f32.gmra.mxu0 %v434
  %v642 = vpop.f32.mrf.mxu0
  %v643 = vadd.f32 0.0, %v642
  %644 = vmatmul.f32.gmra.mxu0 %v437
  %v645 = vpop.f32.mrf.mxu0
  %v646 = vadd.f32 0.0, %v645
  %647 = vmatmul.f32.gmra.mxu0 %v440
  %v648 = vpop.f32.mrf.mxu0
  %v649 = vadd.f32 0.0, %v648
  %650 = vmatmul.f32.gmra.mxu0 %v443
  %v651 = vpop.f32.mrf.mxu0
  %v652 = vadd.f32 0.0, %v651
  %653 = vmatmul.f32.gmra.mxu0 %v446
  %v654 = vpop.f32.mrf.mxu0
  %v655 = vadd.f32 0.0, %v654
  %656 = vmatmul.f32.gmra.mxu0 %v449
  %v657 = vpop.f32.mrf.mxu0
  %v658 = vadd.f32 0.0, %v657
  %659 = vmatmul.f32.gmra.mxu0 %v452
  %v660 = vpop.f32.mrf.mxu0
  %v661 = vadd.f32 0.0, %v660
  %662 = vmatmul.f32.gmra.mxu0 %v455
  %v663 = vpop.f32.mrf.mxu0
  %v664 = vadd.f32 0.0, %v663
  %665 = vmatmul.f32.gmra.mxu0 %v458
  %v666 = vpop.f32.mrf.mxu0
  %v667 = vadd.f32 0.0, %v666
  %668 = vmatmul.f32.gmra.mxu0 %v461
  %v669 = vpop.f32.mrf.mxu0
  %v670 = vadd.f32 0.0, %v669
  %671 = vmatmul.f32.gmra.mxu0 %v464
  %v672 = vpop.f32.mrf.mxu0
  %v673 = vadd.f32 0.0, %v672
  %674 = vmatmul.f32.gmra.mxu0 %v467
  %v675 = vpop.f32.mrf.mxu0
  %v676 = vadd.f32 0.0, %v675
  %677 = vmatmul.f32.gmra.mxu0 %v470
  %v678 = vpop.f32.mrf.mxu0
  %v679 = vadd.f32 0.0, %v678
  %680 = vmatmul.f32.gmra.mxu0 %v473
  %v681 = vpop.f32.mrf.mxu0
  %v682 = vadd.f32 0.0, %v681
  %683 = vmatmul.f32.gmra.mxu0 %v476
  %v684 = vpop.f32.mrf.mxu0
  %v685 = vadd.f32 0.0, %v684
  %686 = vmatmul.f32.gmra.mxu0 %v479
  %v687 = vpop.f32.mrf.mxu0
  %v688 = vadd.f32 0.0, %v687
  %689 = vmatmul.f32.gmra.mxu0 %v482
  %v690 = vpop.f32.mrf.mxu0
  %v691 = vadd.f32 0.0, %v690
  %692 = vmatmul.f32.gmra.mxu0 %v485
  %v693 = vpop.f32.mrf.mxu0
  %v694 = vadd.f32 0.0, %v693
  %695 = vmatmul.f32.gmra.mxu0 %v488
  %v696 = vpop.f32.mrf.mxu0
  %v697 = vadd.f32 0.0, %v696
  %698 = vmatmul.f32.gmra.mxu0 %v491
  %v699 = vpop.f32.mrf.mxu0
  %v700 = vadd.f32 0.0, %v699
  %701 = vmatmul.f32.gmra.mxu0 %v494
  %v702 = vpop.f32.mrf.mxu0
  %v703 = vadd.f32 0.0, %v702
  %704 = vmatmul.f32.gmra.mxu0 %v497
  %v705 = vpop.f32.mrf.mxu0
  %v706 = vadd.f32 0.0, %v705
  %707 = vmatmul.f32.gmra.mxu0 %v500
  %v708 = vpop.f32.mrf.mxu0
  %v709 = vadd.f32 0.0, %v708
  %710 = vmatmul.f32.gmra.mxu0 %v503
  %v711 = vpop.f32.mrf.mxu0
  %v712 = vadd.f32 0.0, %v711
  %713 = vmatmul.f32.gmra.mxu0 %v506
  %v714 = vpop.f32.mrf.mxu0
  %v715 = vadd.f32 0.0, %v714
  %716 = vmatmul.f32.gmra.mxu0 %v509
  %v717 = vpop.f32.mrf.mxu0
  %v718 = vadd.f32 0.0, %v717
  %719 = vmatmul.f32.gmra.mxu0 %v512
  %v720 = vpop.f32.mrf.mxu0
  %v721 = vadd.f32 0.0, %v720
  %722 = vmatmul.f32.gmra.mxu0 %v515
  %v723 = vpop.f32.mrf.mxu0
  %v724 = vadd.f32 0.0, %v723
  %725 = vmatmul.f32.gmra.mxu0 %v518
  %v726 = vpop.f32.mrf.mxu0
  %v727 = vadd.f32 0.0, %v726
  %728 = vmatmul.f32.gmra.mxu0 %v521
  %v729 = vpop.f32.mrf.mxu0
  %v730 = vadd.f32 0.0, %v729
  %731 = vmatmul.f32.gmra.mxu0 %v524
  %v732 = vpop.f32.mrf.mxu0
  %v733 = vadd.f32 0.0, %v732
  %734 = vmatmul.f32.gmra.mxu0 %v527
  %v735 = vpop.f32.mrf.mxu0
  %v736 = vadd.f32 0.0, %v735
  %737 = vmatmul.f32.gmra.mxu0 %v530
  %v738 = vpop.f32.mrf.mxu0
  %v739 = vadd.f32 0.0, %v738
  %740 = vmatmul.f32.gmra.mxu0 %v533
  %v741 = vpop.f32.mrf.mxu0
  %v742 = vadd.f32 0.0, %v741
  %743 = vmatmul.f32.gmra.mxu0 %v536
  %v744 = vpop.f32.mrf.mxu0
  %v745 = vadd.f32 0.0, %v744
  %746 = vmatmul.f32.gmra.mxu0 %v539
  %v747 = vpop.f32.mrf.mxu0
  %v748 = vadd.f32 0.0, %v747
  %749 = vmatmul.f32.gmra.mxu0 %v542
  %v750 = vpop.f32.mrf.mxu0
  %v751 = vadd.f32 0.0, %v750
  %752 = vmatmul.f32.gmra.mxu0 %v545
  %v753 = vpop.f32.mrf.mxu0
  %v754 = vadd.f32 0.0, %v753
  %755 = vmatmul.f32.gmra.mxu0 %v548
  %v756 = vpop.f32.mrf.mxu0
  %v757 = vadd.f32 0.0, %v756
  %758 = vmatmul.f32.gmra.mxu0 %v551
  %v759 = vpop.f32.mrf.mxu0
  %v760 = vadd.f32 0.0, %v759
  %761 = vmatmul.f32.gmra.mxu0 %v554
  %v762 = vpop.f32.mrf.mxu0
  %v763 = vadd.f32 0.0, %v762
  %764 = vmatmul.f32.gmra.mxu0 %v557
  %v765 = vpop.f32.mrf.mxu0
  %v766 = vadd.f32 0.0, %v765
  %767 = vmatmul.f32.gmra.mxu0 %v560
  %v768 = vpop.f32.mrf.mxu0
  %v769 = vadd.f32 0.0, %v768
  %770 = vmatmul.f32.gmra.mxu0 %v563
  %v771 = vpop.f32.mrf.mxu0
  %v772 = vadd.f32 0.0, %v771
  %773 = vmatmul.f32.gmra.mxu0 %v566
  %v774 = vpop.f32.mrf.mxu0
  %v775 = vadd.f32 0.0, %v774
  %776 = vmatmul.f32.gmra.mxu0 %v569
  %v777 = vpop.f32.mrf.mxu0
  %v778 = vadd.f32 0.0, %v777
  %779 = vmatmul.f32.gmra.mxu0 %v572
  %v780 = vpop.f32.mrf.mxu0
  %v781 = vadd.f32 0.0, %v780
  %782 = vmatmul.f32.gmra.mxu0 %v575
  %v783 = vpop.f32.mrf.mxu0
  %v784 = vadd.f32 0.0, %v783
  %785 = vmatmul.f32.gmra.mxu0 %v578
  %v786 = vpop.f32.mrf.mxu0
  %v787 = vadd.f32 0.0, %v786
  %788 = vmatmul.f32.gmra.mxu0 %v581
  %v789 = vpop.f32.mrf.mxu0
  %v790 = vadd.f32 0.0, %v789
  %791 = vmatmul.f32.gmra.mxu0 %v584
  %v792 = vpop.f32.mrf.mxu0
  %v793 = vadd.f32 0.0, %v792
  %794 = vmatmul.f32.gmra.mxu0 %v587
  %v795 = vpop.f32.mrf.mxu0
  %v796 = vadd.f32 0.0, %v795
  %797 = vmatmul.f32.gmra.mxu0 %v590
  %v798 = vpop.f32.mrf.mxu0
  %v799 = vadd.f32 0.0, %v798
  %800 = vmatmul.f32.gmra.mxu0 %v593
  %v801 = vpop.f32.mrf.mxu0
  %v802 = vadd.f32 0.0, %v801
  %803 = vmatmul.f32.gmra.mxu0 %v596
  %v804 = vpop.f32.mrf.mxu0
  %v805 = vadd.f32 0.0, %v804
  %806 = vmatmul.f32.gmra.mxu0 %v599
  %v807 = vpop.f32.mrf.mxu0
  %v808 = vadd.f32 0.0, %v807
  %809 = vmatmul.f32.gmra.mxu0 %v602
  %v810 = vpop.f32.mrf.mxu0
  %v811 = vadd.f32 0.0, %v810
  %812 = vmatmul.f32.gmra.mxu0 %v605
  %v813 = vpop.f32.mrf.mxu0
  %v814 = vadd.f32 0.0, %v813
  %815 = vmatmul.f32.gmra.mxu0 %v608
  %v816 = vpop.f32.mrf.mxu0
  %v817 = vadd.f32 0.0, %v816
  %818 = vmatmul.f32.gmra.mxu0 %v611
  %v819 = vpop.f32.mrf.mxu0
  %v820 = vadd.f32 0.0, %v819
  %821 = vdwg.mxu0
  %vm822 = vcmask 130048
  %823 = vst.msk [vmem:[%s6] sm:$0xff] %vm822, %v631
  %824 = vst.msk [vmem:[%s6 + $0x8] sm:$0xff] %vm822, %v634
  %825 = vst.msk [vmem:[%s6 + $0x10] sm:$0xff] %vm822, %v637
  %826 = vst.msk [vmem:[%s6 + $0x18] sm:$0xff] %vm822, %v640
  %827 = vst.msk [vmem:[%s6 + $0x20] sm:$0xff] %vm822, %v643
  %828 = vst.msk [vmem:[%s6 + $0x28] sm:$0xff] %vm822, %v646
  %829 = vst.msk [vmem:[%s6 + $0x30] sm:$0xff] %vm822, %v649
  %830 = vst.msk [vmem:[%s6 + $0x38] sm:$0xff] %vm822, %v652
  %831 = vst.msk [vmem:[%s6 + $0x40] sm:$0xff] %vm822, %v655
  %832 = vst.msk [vmem:[%s6 + $0x48] sm:$0xff] %vm822, %v658
  %833 = vst.msk [vmem:[%s6 + $0x50] sm:$0xff] %vm822, %v661
  %834 = vst.msk [vmem:[%s6 + $0x58] sm:$0xff] %vm822, %v664
  %835 = vst.msk [vmem:[%s6 + $0x60] sm:$0xff] %vm822, %v667
  %836 = vst.msk [vmem:[%s6 + $0x68] sm:$0xff] %vm822, %v670
  %837 = vst.msk [vmem:[%s6 + $0x70] sm:$0xff] %vm822, %v673
  %838 = vst.msk [vmem:[%s6 + $0x78] sm:$0xff] %vm822, %v676
  %839 = vst.msk [vmem:[%s6 + $0x80] sm:$0xff] %vm822, %v679
  %840 = vst.msk [vmem:[%s6 + $0x88] sm:$0xff] %vm822, %v682
  %841 = vst.msk [vmem:[%s6 + $0x90] sm:$0xff] %vm822, %v685
  %842 = vst.msk [vmem:[%s6 + $0x98] sm:$0xff] %vm822, %v688
  %843 = vst.msk [vmem:[%s6 + $0xa0] sm:$0xff] %vm822, %v691
  %844 = vst.msk [vmem:[%s6 + $0xa8] sm:$0xff] %vm822, %v694
  %845 = vst.msk [vmem:[%s6 + $0xb0] sm:$0xff] %vm822, %v697
  %846 = vst.msk [vmem:[%s6 + $0xb8] sm:$0xff] %vm822, %v700
  %847 = vst.msk [vmem:[%s6 + $0xc0] sm:$0xff] %vm822, %v703
  %848 = vst.msk [vmem:[%s6 + $0xc8] sm:$0xff] %vm822, %v706
  %849 = vst.msk [vmem:[%s6 + $0xd0] sm:$0xff] %vm822, %v709
  %850 = vst.msk [vmem:[%s6 + $0xd8] sm:$0xff] %vm822, %v712
  %851 = vst.msk [vmem:[%s6 + $0xe0] sm:$0xff] %vm822, %v715
  %852 = vst.msk [vmem:[%s6 + $0xe8] sm:$0xff] %vm822, %v718
  %853 = vst.msk [vmem:[%s6 + $0xf0] sm:$0xff] %vm822, %v721
  %854 = vst.msk [vmem:[%s6 + $0xf8] sm:$0xff] %vm822, %v724
  %855 = vst.msk [vmem:[%s6 + $0x100] sm:$0xff] %vm822, %v727
  %856 = vst.msk [vmem:[%s6 + $0x108] sm:$0xff] %vm822, %v730
  %857 = vst.msk [vmem:[%s6 + $0x110] sm:$0xff] %vm822, %v733
  %858 = vst.msk [vmem:[%s6 + $0x118] sm:$0xff] %vm822, %v736
  %859 = vst.msk [vmem:[%s6 + $0x120] sm:$0xff] %vm822, %v739
  %860 = vst.msk [vmem:[%s6 + $0x128] sm:$0xff] %vm822, %v742
  %861 = vst.msk [vmem:[%s6 + $0x130] sm:$0xff] %vm822, %v745
  %862 = vst.msk [vmem:[%s6 + $0x138] sm:$0xff] %vm822, %v748
  %863 = vst.msk [vmem:[%s6 + $0x140] sm:$0xff] %vm822, %v751
  %864 = vst.msk [vmem:[%s6 + $0x148] sm:$0xff] %vm822, %v754
  %865 = vst.msk [vmem:[%s6 + $0x150] sm:$0xff] %vm822, %v757
  %866 = vst.msk [vmem:[%s6 + $0x158] sm:$0xff] %vm822, %v760
  %867 = vst.msk [vmem:[%s6 + $0x160] sm:$0xff] %vm822, %v763
  %868 = vst.msk [vmem:[%s6 + $0x168] sm:$0xff] %vm822, %v766
  %869 = vst.msk [vmem:[%s6 + $0x170] sm:$0xff] %vm822, %v769
  %870 = vst.msk [vmem:[%s6 + $0x178] sm:$0xff] %vm822, %v772
  %871 = vst.msk [vmem:[%s6 + $0x180] sm:$0xff] %vm822, %v775
  %872 = vst.msk [vmem:[%s6 + $0x188] sm:$0xff] %vm822, %v778
  %873 = vst.msk [vmem:[%s6 + $0x190] sm:$0xff] %vm822, %v781
  %874 = vst.msk [vmem:[%s6 + $0x198] sm:$0xff] %vm822, %v784
  %875 = vst.msk [vmem:[%s6 + $0x1a0] sm:$0xff] %vm822, %v787
  %876 = vst.msk [vmem:[%s6 + $0x1a8] sm:$0xff] %vm822, %v790
  %877 = vst.msk [vmem:[%s6 + $0x1b0] sm:$0xff] %vm822, %v793
  %878 = vst.msk [vmem:[%s6 + $0x1b8] sm:$0xff] %vm822, %v796
  %879 = vst.msk [vmem:[%s6 + $0x1c0] sm:$0xff] %vm822, %v799
  %880 = vst.msk [vmem:[%s6 + $0x1c8] sm:$0xff] %vm822, %v802
  %881 = vst.msk [vmem:[%s6 + $0x1d0] sm:$0xff] %vm822, %v805
  %882 = vst.msk [vmem:[%s6 + $0x1d8] sm:$0xff] %vm822, %v808
  %883 = vst.msk [vmem:[%s6 + $0x1e0] sm:$0xff] %vm822, %v811
  %884 = vst.msk [vmem:[%s6 + $0x1e8] sm:$0xff] %vm822, %v814
  %885 = vst.msk [vmem:[%s6 + $0x1f0] sm:$0xff] %vm822, %v817
  %886 = vst.msk [vmem:[%s6 + $0x1f8] sm:$0xff] %vm822, %v820
  %v887 = vsel %vm822, %v631, 0.0
  %v888 = vsel %vm822, %v634, 0.0
  %v889 = vadd.f32 %v887, %v888
  %v890 = vsel %vm822, %v637, 0.0
  %v891 = vadd.f32 %v889, %v890
  %v892 = vsel %vm822, %v640, 0.0
  %v893 = vadd.f32 %v891, %v892
  %v894 = vsel %vm822, %v643, 0.0
  %v895 = vadd.f32 %v893, %v894
  %v896 = vsel %vm822, %v646, 0.0
  %v897 = vadd.f32 %v895, %v896
  %v898 = vsel %vm822, %v649, 0.0
  %v899 = vadd.f32 %v897, %v898
  %v900 = vsel %vm822, %v652, 0.0
  %v901 = vadd.f32 %v899, %v900
  %v902 = vsel %vm822, %v655, 0.0
  %v903 = vadd.f32 %v901, %v902
  %v904 = vsel %vm822, %v658, 0.0
  %v905 = vadd.f32 %v903, %v904
  %v906 = vsel %vm822, %v661, 0.0
  %v907 = vadd.f32 %v905, %v906
  %v908 = vsel %vm822, %v664, 0.0
  %v909 = vadd.f32 %v907, %v908
  %v910 = vsel %vm822, %v667, 0.0
  %v911 = vadd.f32 %v909, %v910
  %v912 = vsel %vm822, %v670, 0.0
  %v913 = vadd.f32 %v911, %v912
  %v914 = vsel %vm822, %v673, 0.0
  %v915 = vadd.f32 %v913, %v914
  %v916 = vsel %vm822, %v676, 0.0
  %v917 = vadd.f32 %v915, %v916
  %v918 = vsel %vm822, %v679, 0.0
  %v919 = vadd.f32 %v917, %v918
  %v920 = vsel %vm822, %v682, 0.0
  %v921 = vadd.f32 %v919, %v920
  %v922 = vsel %vm822, %v685, 0.0
  %v923 = vadd.f32 %v921, %v922
  %v924 = vsel %vm822, %v688, 0.0
  %v925 = vadd.f32 %v923, %v924
  %v926 = vsel %vm822, %v691, 0.0
  %v927 = vadd.f32 %v925, %v926
  %v928 = vsel %vm822, %v694, 0.0
  %v929 = vadd.f32 %v927, %v928
  %v930 = vsel %vm822, %v697, 0.0
  %v931 = vadd.f32 %v929, %v930
  %v932 = vsel %vm822, %v700, 0.0
  %v933 = vadd.f32 %v931, %v932
  %v934 = vsel %vm822, %v703, 0.0
  %v935 = vadd.f32 %v933, %v934
  %v936 = vsel %vm822, %v706, 0.0
  %v937 = vadd.f32 %v935, %v936
  %v938 = vsel %vm822, %v709, 0.0
  %v939 = vadd.f32 %v937, %v938
  %v940 = vsel %vm822, %v712, 0.0
  %v941 = vadd.f32 %v939, %v940
  %v942 = vsel %vm822, %v715, 0.0
  %v943 = vadd.f32 %v941, %v942
  %v944 = vsel %vm822, %v718, 0.0
  %v945 = vadd.f32 %v943, %v944
  %v946 = vsel %vm822, %v721, 0.0
  %v947 = vadd.f32 %v945, %v946
  %v948 = vsel %vm822, %v724, 0.0
  %v949 = vadd.f32 %v947, %v948
  %v950 = vsel %vm822, %v727, 0.0
  %v951 = vadd.f32 %v949, %v950
  %v952 = vsel %vm822, %v730, 0.0
  %v953 = vadd.f32 %v951, %v952
  %v954 = vsel %vm822, %v733, 0.0
  %v955 = vadd.f32 %v953, %v954
  %v956 = vsel %vm822, %v736, 0.0
  %v957 = vadd.f32 %v955, %v956
  %v958 = vsel %vm822, %v739, 0.0
  %v959 = vadd.f32 %v957, %v958
  %v960 = vsel %vm822, %v742, 0.0
  %v961 = vadd.f32 %v959, %v960
  %v962 = vsel %vm822, %v745, 0.0
  %v963 = vadd.f32 %v961, %v962
  %v964 = vsel %vm822, %v748, 0.0
  %v965 = vadd.f32 %v963, %v964
  %v966 = vsel %vm822, %v751, 0.0
  %v967 = vadd.f32 %v965, %v966
  %v968 = vsel %vm822, %v754, 0.0
  %v969 = vadd.f32 %v967, %v968
  %v970 = vsel %vm822, %v757, 0.0
  %v971 = vadd.f32 %v969, %v970
  %v972 = vsel %vm822, %v760, 0.0
  %v973 = vadd.f32 %v971, %v972
  %v974 = vsel %vm822, %v763, 0.0
  %v975 = vadd.f32 %v973, %v974
  %v976 = vsel %vm822, %v766, 0.0
  %v977 = vadd.f32 %v975, %v976
  %v978 = vsel %vm822, %v769, 0.0
  %v979 = vadd.f32 %v977, %v978
  %v980 = vsel %vm822, %v772, 0.0
  %v981 = vadd.f32 %v979, %v980
  %v982 = vsel %vm822, %v775, 0.0
  %v983 = vadd.f32 %v981, %v982
  %v984 = vsel %vm822, %v778, 0.0
  %v985 = vadd.f32 %v983, %v984
  %v986 = vsel %vm822, %v781, 0.0
  %v987 = vadd.f32 %v985, %v986
  %v988 = vsel %vm822, %v784, 0.0
  %v989 = vadd.f32 %v987, %v988
  %v990 = vsel %vm822, %v787, 0.0
  %v991 = vadd.f32 %v989, %v990
  %v992 = vsel %vm822, %v790, 0.0
  %v993 = vadd.f32 %v991, %v992
  %v994 = vsel %vm822, %v793, 0.0
  %v995 = vadd.f32 %v993, %v994
  %v996 = vsel %vm822, %v796, 0.0
  %v997 = vadd.f32 %v995, %v996
  %v998 = vsel %vm822, %v799, 0.0
  %v999 = vadd.f32 %v997, %v998
  %v1000 = vsel %vm822, %v802, 0.0
  %v1001 = vadd.f32 %v999, %v1000
  %v1002 = vsel %vm822, %v805, 0.0
  %v1003 = vadd.f32 %v1001, %v1002
  %v1004 = vsel %vm822, %v808, 0.0
  %v1005 = vadd.f32 %v1003, %v1004
  %v1006 = vsel %vm822, %v811, 0.0
  %v1007 = vadd.f32 %v1005, %v1006
  %v1008 = vsel %vm822, %v814, 0.0
  %v1009 = vadd.f32 %v1007, %v1008
  %v1010 = vsel %vm822, %v817, 0.0
  %v1011 = vadd.f32 %v1009, %v1010
  %v1012 = vsel %vm822, %v820, 0.0
  %v1013 = vadd.f32 %v1011, %v1012
  %v1014 = vrot.slane %v1013, 4
  %v1015 = vadd.f32 %v1013, %v1014
  %v1016 = vrot.slane %v1015, 2
  %v1017 = vadd.f32 %v1015, %v1016
  %v1018 = vrot.slane %v1017, 1
  %v1019 = vadd.f32 %v1017, %v1018
  %vm1020 = vcmask 122880
  %1021 = vst.msk [vmem:[%s7] sm:$0x1] %vm1020, %v1019
  %v1022 = vmul.f32 %v631, %v631
  %v1023 = vmul.f32 %v634, %v634
  %v1024 = vmul.f32 %v637, %v637
  %v1025 = vmul.f32 %v640, %v640
  %v1026 = vmul.f32 %v643, %v643
  %v1027 = vmul.f32 %v646, %v646
  %v1028 = vmul.f32 %v649, %v649
  %v1029 = vmul.f32 %v652, %v652
  %v1030 = vmul.f32 %v655, %v655
  %v1031 = vmul.f32 %v658, %v658
  %v1032 = vmul.f32 %v661, %v661
  %v1033 = vmul.f32 %v664, %v664
  %v1034 = vmul.f32 %v667, %v667
  %v1035 = vmul.f32 %v670, %v670
  %v1036 = vmul.f32 %v673, %v673
  %v1037 = vmul.f32 %v676, %v676
  %v1038 = vmul.f32 %v679, %v679
  %v1039 = vmul.f32 %v682, %v682
  %v1040 = vmul.f32 %v685, %v685
  %v1041 = vmul.f32 %v688, %v688
  %v1042 = vmul.f32 %v691, %v691
  %v1043 = vmul.f32 %v694, %v694
  %v1044 = vmul.f32 %v697, %v697
  %v1045 = vmul.f32 %v700, %v700
  %v1046 = vmul.f32 %v703, %v703
  %v1047 = vmul.f32 %v706, %v706
  %v1048 = vmul.f32 %v709, %v709
  %v1049 = vmul.f32 %v712, %v712
  %v1050 = vmul.f32 %v715, %v715
  %v1051 = vmul.f32 %v718, %v718
  %v1052 = vmul.f32 %v721, %v721
  %v1053 = vmul.f32 %v724, %v724
  %v1054 = vmul.f32 %v727, %v727
  %v1055 = vmul.f32 %v730, %v730
  %v1056 = vmul.f32 %v733, %v733
  %v1057 = vmul.f32 %v736, %v736
  %v1058 = vmul.f32 %v739, %v739
  %v1059 = vmul.f32 %v742, %v742
  %v1060 = vmul.f32 %v745, %v745
  %v1061 = vmul.f32 %v748, %v748
  %v1062 = vmul.f32 %v751, %v751
  %v1063 = vmul.f32 %v754, %v754
  %v1064 = vmul.f32 %v757, %v757
  %v1065 = vmul.f32 %v760, %v760
  %v1066 = vmul.f32 %v763, %v763
  %v1067 = vmul.f32 %v766, %v766
  %v1068 = vmul.f32 %v769, %v769
  %v1069 = vmul.f32 %v772, %v772
  %v1070 = vmul.f32 %v775, %v775
  %v1071 = vmul.f32 %v778, %v778
  %v1072 = vmul.f32 %v781, %v781
  %v1073 = vmul.f32 %v784, %v784
  %v1074 = vmul.f32 %v787, %v787
  %v1075 = vmul.f32 %v790, %v790
  %v1076 = vmul.f32 %v793, %v793
  %v1077 = vmul.f32 %v796, %v796
  %v1078 = vmul.f32 %v799, %v799
  %v1079 = vmul.f32 %v802, %v802
  %v1080 = vmul.f32 %v805, %v805
  %v1081 = vmul.f32 %v808, %v808
  %v1082 = vmul.f32 %v811, %v811
  %v1083 = vmul.f32 %v814, %v814
  %v1084 = vmul.f32 %v817, %v817
  %v1085 = vmul.f32 %v820, %v820
  %v1086 = vsel %vm822, %v1022, 0.0
  %v1087 = vsel %vm822, %v1023, 0.0
  %v1088 = vadd.f32 %v1086, %v1087
  %v1089 = vsel %vm822, %v1024, 0.0
  %v1090 = vadd.f32 %v1088, %v1089
  %v1091 = vsel %vm822, %v1025, 0.0
  %v1092 = vadd.f32 %v1090, %v1091
  %v1093 = vsel %vm822, %v1026, 0.0
  %v1094 = vadd.f32 %v1092, %v1093
  %v1095 = vsel %vm822, %v1027, 0.0
  %v1096 = vadd.f32 %v1094, %v1095
  %v1097 = vsel %vm822, %v1028, 0.0
  %v1098 = vadd.f32 %v1096, %v1097
  %v1099 = vsel %vm822, %v1029, 0.0
  %v1100 = vadd.f32 %v1098, %v1099
  %v1101 = vsel %vm822, %v1030, 0.0
  %v1102 = vadd.f32 %v1100, %v1101
  %v1103 = vsel %vm822, %v1031, 0.0
  %v1104 = vadd.f32 %v1102, %v1103
  %v1105 = vsel %vm822, %v1032, 0.0
  %v1106 = vadd.f32 %v1104, %v1105
  %v1107 = vsel %vm822, %v1033, 0.0
  %v1108 = vadd.f32 %v1106, %v1107
  %v1109 = vsel %vm822, %v1034, 0.0
  %v1110 = vadd.f32 %v1108, %v1109
  %v1111 = vsel %vm822, %v1035, 0.0
  %v1112 = vadd.f32 %v1110, %v1111
  %v1113 = vsel %vm822, %v1036, 0.0
  %v1114 = vadd.f32 %v1112, %v1113
  %v1115 = vsel %vm822, %v1037, 0.0
  %v1116 = vadd.f32 %v1114, %v1115
  %v1117 = vsel %vm822, %v1038, 0.0
  %v1118 = vadd.f32 %v1116, %v1117
  %v1119 = vsel %vm822, %v1039, 0.0
  %v1120 = vadd.f32 %v1118, %v1119
  %v1121 = vsel %vm822, %v1040, 0.0
  %v1122 = vadd.f32 %v1120, %v1121
  %v1123 = vsel %vm822, %v1041, 0.0
  %v1124 = vadd.f32 %v1122, %v1123
  %v1125 = vsel %vm822, %v1042, 0.0
  %v1126 = vadd.f32 %v1124, %v1125
  %v1127 = vsel %vm822, %v1043, 0.0
  %v1128 = vadd.f32 %v1126, %v1127
  %v1129 = vsel %vm822, %v1044, 0.0
  %v1130 = vadd.f32 %v1128, %v1129
  %v1131 = vsel %vm822, %v1045, 0.0
  %v1132 = vadd.f32 %v1130, %v1131
  %v1133 = vsel %vm822, %v1046, 0.0
  %v1134 = vadd.f32 %v1132, %v1133
  %v1135 = vsel %vm822, %v1047, 0.0
  %v1136 = vadd.f32 %v1134, %v1135
  %v1137 = vsel %vm822, %v1048, 0.0
  %v1138 = vadd.f32 %v1136, %v1137
  %v1139 = vsel %vm822, %v1049, 0.0
  %v1140 = vadd.f32 %v1138, %v1139
  %v1141 = vsel %vm822, %v1050, 0.0
  %v1142 = vadd.f32 %v1140, %v1141
  %v1143 = vsel %vm822, %v1051, 0.0
  %v1144 = vadd.f32 %v1142, %v1143
  %v1145 = vsel %vm822, %v1052, 0.0
  %v1146 = vadd.f32 %v1144, %v1145
  %v1147 = vsel %vm822, %v1053, 0.0
  %v1148 = vadd.f32 %v1146, %v1147
  %v1149 = vsel %vm822, %v1054, 0.0
  %v1150 = vadd.f32 %v1148, %v1149
  %v1151 = vsel %vm822, %v1055, 0.0
  %v1152 = vadd.f32 %v1150, %v1151
  %v1153 = vsel %vm822, %v1056, 0.0
  %v1154 = vadd.f32 %v1152, %v1153
  %v1155 = vsel %vm822, %v1057, 0.0
  %v1156 = vadd.f32 %v1154, %v1155
  %v1157 = vsel %vm822, %v1058, 0.0
  %v1158 = vadd.f32 %v1156, %v1157
  %v1159 = vsel %vm822, %v1059, 0.0
  %v1160 = vadd.f32 %v1158, %v1159
  %v1161 = vsel %vm822, %v1060, 0.0
  %v1162 = vadd.f32 %v1160, %v1161
  %v1163 = vsel %vm822, %v1061, 0.0
  %v1164 = vadd.f32 %v1162, %v1163
  %v1165 = vsel %vm822, %v1062, 0.0
  %v1166 = vadd.f32 %v1164, %v1165
  %v1167 = vsel %vm822, %v1063, 0.0
  %v1168 = vadd.f32 %v1166, %v1167
  %v1169 = vsel %vm822, %v1064, 0.0
  %v1170 = vadd.f32 %v1168, %v1169
  %v1171 = vsel %vm822, %v1065, 0.0
  %v1172 = vadd.f32 %v1170, %v1171
  %v1173 = vsel %vm822, %v1066, 0.0
  %v1174 = vadd.f32 %v1172, %v1173
  %v1175 = vsel %vm822, %v1067, 0.0
  %v1176 = vadd.f32 %v1174, %v1175
  %v1177 = vsel %vm822, %v1068, 0.0
  %v1178 = vadd.f32 %v1176, %v1177
  %v1179 = vsel %vm822, %v1069, 0.0
  %v1180 = vadd.f32 %v1178, %v1179
  %v1181 = vsel %vm822, %v1070, 0.0
  %v1182 = vadd.f32 %v1180, %v1181
  %v1183 = vsel %vm822, %v1071, 0.0
  %v1184 = vadd.f32 %v1182, %v1183
  %v1185 = vsel %vm822, %v1072, 0.0
  %v1186 = vadd.f32 %v1184, %v1185
  %v1187 = vsel %vm822, %v1073, 0.0
  %v1188 = vadd.f32 %v1186, %v1187
  %v1189 = vsel %vm822, %v1074, 0.0
  %v1190 = vadd.f32 %v1188, %v1189
  %v1191 = vsel %vm822, %v1075, 0.0
  %v1192 = vadd.f32 %v1190, %v1191
  %v1193 = vsel %vm822, %v1076, 0.0
  %v1194 = vadd.f32 %v1192, %v1193
  %v1195 = vsel %vm822, %v1077, 0.0
  %v1196 = vadd.f32 %v1194, %v1195
  %v1197 = vsel %vm822, %v1078, 0.0
  %v1198 = vadd.f32 %v1196, %v1197
  %v1199 = vsel %vm822, %v1079, 0.0
  %v1200 = vadd.f32 %v1198, %v1199
  %v1201 = vsel %vm822, %v1080, 0.0
  %v1202 = vadd.f32 %v1200, %v1201
  %v1203 = vsel %vm822, %v1081, 0.0
  %v1204 = vadd.f32 %v1202, %v1203
  %v1205 = vsel %vm822, %v1082, 0.0
  %v1206 = vadd.f32 %v1204, %v1205
  %v1207 = vsel %vm822, %v1083, 0.0
  %v1208 = vadd.f32 %v1206, %v1207
  %v1209 = vsel %vm822, %v1084, 0.0
  %v1210 = vadd.f32 %v1208, %v1209
  %v1211 = vsel %vm822, %v1085, 0.0
  %v1212 = vadd.f32 %v1210, %v1211
  %v1213 = vrot.slane %v1212, 4
  %v1214 = vadd.f32 %v1212, %v1213
  %v1215 = vrot.slane %v1214, 2
  %v1216 = vadd.f32 %v1214, %v1215
  %v1217 = vrot.slane %v1216, 1
  %v1218 = vadd.f32 %v1216, %v1217
  %1219 = vst.msk [vmem:[%s7 + $0x1] sm:$0x1] %vm1020, %v1218
  %v1220 = vld [vmem:[%s4] sm:$0xff]
  %v1221 = vld [vmem:[%s4 + $0x8] sm:$0xff]
  %v1222 = vld [vmem:[%s4 + $0x10] sm:$0xff]
  %v1223 = vld [vmem:[%s4 + $0x18] sm:$0xff]
  %v1224 = vld [vmem:[%s4 + $0x20] sm:$0xff]
  %v1225 = vld [vmem:[%s4 + $0x28] sm:$0xff]
  %v1226 = vld [vmem:[%s4 + $0x30] sm:$0xff]
  %v1227 = vld [vmem:[%s4 + $0x38] sm:$0xff]
  %v1228 = vld [vmem:[%s4 + $0x40] sm:$0xff]
  %v1229 = vld [vmem:[%s4 + $0x48] sm:$0xff]
  %v1230 = vld [vmem:[%s4 + $0x50] sm:$0xff]
  %v1231 = vld [vmem:[%s4 + $0x58] sm:$0xff]
  %v1232 = vld [vmem:[%s4 + $0x60] sm:$0xff]
  %v1233 = vld [vmem:[%s4 + $0x68] sm:$0xff]
  %v1234 = vld [vmem:[%s4 + $0x70] sm:$0xff]
  %v1235 = vld [vmem:[%s4 + $0x78] sm:$0xff]
  %v1236 = vld [vmem:[%s4 + $0x80] sm:$0xff]
  %v1237 = vld [vmem:[%s4 + $0x88] sm:$0xff]
  %v1238 = vld [vmem:[%s4 + $0x90] sm:$0xff]
  %v1239 = vld [vmem:[%s4 + $0x98] sm:$0xff]
  %v1240 = vld [vmem:[%s4 + $0xa0] sm:$0xff]
  %v1241 = vld [vmem:[%s4 + $0xa8] sm:$0xff]
  %v1242 = vld [vmem:[%s4 + $0xb0] sm:$0xff]
  %v1243 = vld [vmem:[%s4 + $0xb8] sm:$0xff]
  %v1244 = vld [vmem:[%s4 + $0xc0] sm:$0xff]
  %v1245 = vld [vmem:[%s4 + $0xc8] sm:$0xff]
  %v1246 = vld [vmem:[%s4 + $0xd0] sm:$0xff]
  %v1247 = vld [vmem:[%s4 + $0xd8] sm:$0xff]
  %v1248 = vld [vmem:[%s4 + $0xe0] sm:$0xff]
  %v1249 = vld [vmem:[%s4 + $0xe8] sm:$0xff]
  %v1250 = vld [vmem:[%s4 + $0xf0] sm:$0xff]
  %v1251 = vld [vmem:[%s4 + $0xf8] sm:$0xff]
  %v1252 = vld [vmem:[%s4 + $0x100] sm:$0xff]
  %v1253 = vld [vmem:[%s4 + $0x108] sm:$0xff]
  %v1254 = vld [vmem:[%s4 + $0x110] sm:$0xff]
  %v1255 = vld [vmem:[%s4 + $0x118] sm:$0xff]
  %v1256 = vld [vmem:[%s4 + $0x120] sm:$0xff]
  %v1257 = vld [vmem:[%s4 + $0x128] sm:$0xff]
  %v1258 = vld [vmem:[%s4 + $0x130] sm:$0xff]
  %v1259 = vld [vmem:[%s4 + $0x138] sm:$0xff]
  %v1260 = vld [vmem:[%s4 + $0x140] sm:$0xff]
  %v1261 = vld [vmem:[%s4 + $0x148] sm:$0xff]
  %v1262 = vld [vmem:[%s4 + $0x150] sm:$0xff]
  %v1263 = vld [vmem:[%s4 + $0x158] sm:$0xff]
  %v1264 = vld [vmem:[%s4 + $0x160] sm:$0xff]
  %v1265 = vld [vmem:[%s4 + $0x168] sm:$0xff]
  %v1266 = vld [vmem:[%s4 + $0x170] sm:$0xff]
  %v1267 = vld [vmem:[%s4 + $0x178] sm:$0xff]
  %v1268 = vld [vmem:[%s4 + $0x180] sm:$0xff]
  %v1269 = vld [vmem:[%s4 + $0x188] sm:$0xff]
  %v1270 = vld [vmem:[%s4 + $0x190] sm:$0xff]
  %v1271 = vld [vmem:[%s4 + $0x198] sm:$0xff]
  %v1272 = vld [vmem:[%s4 + $0x1a0] sm:$0xff]
  %v1273 = vld [vmem:[%s4 + $0x1a8] sm:$0xff]
  %v1274 = vld [vmem:[%s4 + $0x1b0] sm:$0xff]
  %v1275 = vld [vmem:[%s4 + $0x1b8] sm:$0xff]
  %v1276 = vld [vmem:[%s4 + $0x1c0] sm:$0xff]
  %v1277 = vld [vmem:[%s4 + $0x1c8] sm:$0xff]
  %v1278 = vld [vmem:[%s4 + $0x1d0] sm:$0xff]
  %v1279 = vld [vmem:[%s4 + $0x1d8] sm:$0xff]
  %v1280 = vld [vmem:[%s4 + $0x1e0] sm:$0xff]
  %v1281 = vld [vmem:[%s4 + $0x1e8] sm:$0xff]
  %v1282 = vld [vmem:[%s4 + $0x1f0] sm:$0xff]
  %v1283 = vld [vmem:[%s4 + $0x1f8] sm:$0xff]
  %v1284 = vld [vmem:[%s5] sm:$0xf]
  %vm1285 = vcmask 31744
  %v1287 = vsel %vm1285, %v1220, 0
  %v1290 = vsel %vm1285, %v1221, 0
  %v1293 = vsel %vm1285, %v1222, 0
  %v1296 = vsel %vm1285, %v1223, 0
  %v1299 = vsel %vm1285, %v1224, 0
  %v1302 = vsel %vm1285, %v1225, 0
  %v1305 = vsel %vm1285, %v1226, 0
  %v1308 = vsel %vm1285, %v1227, 0
  %v1311 = vsel %vm1285, %v1228, 0
  %v1314 = vsel %vm1285, %v1229, 0
  %v1317 = vsel %vm1285, %v1230, 0
  %v1320 = vsel %vm1285, %v1231, 0
  %v1323 = vsel %vm1285, %v1232, 0
  %v1326 = vsel %vm1285, %v1233, 0
  %v1329 = vsel %vm1285, %v1234, 0
  %v1332 = vsel %vm1285, %v1235, 0
  %v1335 = vsel %vm1285, %v1236, 0
  %v1338 = vsel %vm1285, %v1237, 0
  %v1341 = vsel %vm1285, %v1238, 0
  %v1344 = vsel %vm1285, %v1239, 0
  %v1347 = vsel %vm1285, %v1240, 0
  %v1350 = vsel %vm1285, %v1241, 0
  %v1353 = vsel %vm1285, %v1242, 0
  %v1356 = vsel %vm1285, %v1243, 0
  %v1359 = vsel %vm1285, %v1244, 0
  %v1362 = vsel %vm1285, %v1245, 0
  %v1365 = vsel %vm1285, %v1246, 0
  %v1368 = vsel %vm1285, %v1247, 0
  %v1371 = vsel %vm1285, %v1248, 0
  %v1374 = vsel %vm1285, %v1249, 0
  %v1377 = vsel %vm1285, %v1250, 0
  %v1380 = vsel %vm1285, %v1251, 0
  %v1383 = vsel %vm1285, %v1252, 0
  %v1386 = vsel %vm1285, %v1253, 0
  %v1389 = vsel %vm1285, %v1254, 0
  %v1392 = vsel %vm1285, %v1255, 0
  %v1395 = vsel %vm1285, %v1256, 0
  %v1398 = vsel %vm1285, %v1257, 0
  %v1401 = vsel %vm1285, %v1258, 0
  %v1404 = vsel %vm1285, %v1259, 0
  %v1407 = vsel %vm1285, %v1260, 0
  %v1410 = vsel %vm1285, %v1261, 0
  %v1413 = vsel %vm1285, %v1262, 0
  %v1416 = vsel %vm1285, %v1263, 0
  %v1419 = vsel %vm1285, %v1264, 0
  %v1422 = vsel %vm1285, %v1265, 0
  %v1425 = vsel %vm1285, %v1266, 0
  %v1428 = vsel %vm1285, %v1267, 0
  %v1431 = vsel %vm1285, %v1268, 0
  %v1434 = vsel %vm1285, %v1269, 0
  %v1437 = vsel %vm1285, %v1270, 0
  %v1440 = vsel %vm1285, %v1271, 0
  %v1443 = vsel %vm1285, %v1272, 0
  %v1446 = vsel %vm1285, %v1273, 0
  %v1449 = vsel %vm1285, %v1274, 0
  %v1452 = vsel %vm1285, %v1275, 0
  %v1455 = vsel %vm1285, %v1276, 0
  %v1458 = vsel %vm1285, %v1277, 0
  %v1461 = vsel %vm1285, %v1278, 0
  %v1464 = vsel %vm1285, %v1279, 0
  %v1467 = vsel %vm1285, %v1280, 0
  %v1470 = vsel %vm1285, %v1281, 0
  %v1473 = vsel %vm1285, %v1282, 0
  %v1476 = vsel %vm1285, %v1283, 0
  %vm1478 = vcmask 1043456
  %v1480 = vsel %vm1478, %v1284, 0
  %1482 = vmatpush.msra.mxu0 0.0
  %1483 = vmatpush.msra.mxu0 0.0
  %1484 = vmatpush.msra.mxu0 0.0
  %1485 = vmatpush.msra.mxu0 0.0
  %1486 = vmatpush.msra.mxu0 0.0
  %1487 = vmatpush.msra.mxu0 0.0
  %1488 = vmatpush.msra.mxu0 0.0
  %1489 = vmatpush.msra.mxu0 0.0
  %1490 = vmatpush.msra.mxu0 0.0
  %1491 = vmatpush.msra.mxu0 0.0
  %1492 = vmatpush.msra.mxu0 0.0
  %1493 = vmatpush.msra.mxu0 0.0
  %1494 = vmatpush.msra.mxu0 0.0
  %1495 = vmatpush.msra.mxu0 0.0
  %1496 = vmatpush.msra.mxu0 0.0
  %1497 = vmatpush.msra.mxu0 %v1480
  %1498 = vmatmul.f32.gmra.mxu0 %v1287
  %v1499 = vpop.f32.mrf.mxu0
  %v1500 = vadd.f32 0.0, %v1499
  %1501 = vmatmul.f32.gmra.mxu0 %v1290
  %v1502 = vpop.f32.mrf.mxu0
  %v1503 = vadd.f32 0.0, %v1502
  %1504 = vmatmul.f32.gmra.mxu0 %v1293
  %v1505 = vpop.f32.mrf.mxu0
  %v1506 = vadd.f32 0.0, %v1505
  %1507 = vmatmul.f32.gmra.mxu0 %v1296
  %v1508 = vpop.f32.mrf.mxu0
  %v1509 = vadd.f32 0.0, %v1508
  %1510 = vmatmul.f32.gmra.mxu0 %v1299
  %v1511 = vpop.f32.mrf.mxu0
  %v1512 = vadd.f32 0.0, %v1511
  %1513 = vmatmul.f32.gmra.mxu0 %v1302
  %v1514 = vpop.f32.mrf.mxu0
  %v1515 = vadd.f32 0.0, %v1514
  %1516 = vmatmul.f32.gmra.mxu0 %v1305
  %v1517 = vpop.f32.mrf.mxu0
  %v1518 = vadd.f32 0.0, %v1517
  %1519 = vmatmul.f32.gmra.mxu0 %v1308
  %v1520 = vpop.f32.mrf.mxu0
  %v1521 = vadd.f32 0.0, %v1520
  %1522 = vmatmul.f32.gmra.mxu0 %v1311
  %v1523 = vpop.f32.mrf.mxu0
  %v1524 = vadd.f32 0.0, %v1523
  %1525 = vmatmul.f32.gmra.mxu0 %v1314
  %v1526 = vpop.f32.mrf.mxu0
  %v1527 = vadd.f32 0.0, %v1526
  %1528 = vmatmul.f32.gmra.mxu0 %v1317
  %v1529 = vpop.f32.mrf.mxu0
  %v1530 = vadd.f32 0.0, %v1529
  %1531 = vmatmul.f32.gmra.mxu0 %v1320
  %v1532 = vpop.f32.mrf.mxu0
  %v1533 = vadd.f32 0.0, %v1532
  %1534 = vmatmul.f32.gmra.mxu0 %v1323
  %v1535 = vpop.f32.mrf.mxu0
  %v1536 = vadd.f32 0.0, %v1535
  %1537 = vmatmul.f32.gmra.mxu0 %v1326
  %v1538 = vpop.f32.mrf.mxu0
  %v1539 = vadd.f32 0.0, %v1538
  %1540 = vmatmul.f32.gmra.mxu0 %v1329
  %v1541 = vpop.f32.mrf.mxu0
  %v1542 = vadd.f32 0.0, %v1541
  %1543 = vmatmul.f32.gmra.mxu0 %v1332
  %v1544 = vpop.f32.mrf.mxu0
  %v1545 = vadd.f32 0.0, %v1544
  %1546 = vmatmul.f32.gmra.mxu0 %v1335
  %v1547 = vpop.f32.mrf.mxu0
  %v1548 = vadd.f32 0.0, %v1547
  %1549 = vmatmul.f32.gmra.mxu0 %v1338
  %v1550 = vpop.f32.mrf.mxu0
  %v1551 = vadd.f32 0.0, %v1550
  %1552 = vmatmul.f32.gmra.mxu0 %v1341
  %v1553 = vpop.f32.mrf.mxu0
  %v1554 = vadd.f32 0.0, %v1553
  %1555 = vmatmul.f32.gmra.mxu0 %v1344
  %v1556 = vpop.f32.mrf.mxu0
  %v1557 = vadd.f32 0.0, %v1556
  %1558 = vmatmul.f32.gmra.mxu0 %v1347
  %v1559 = vpop.f32.mrf.mxu0
  %v1560 = vadd.f32 0.0, %v1559
  %1561 = vmatmul.f32.gmra.mxu0 %v1350
  %v1562 = vpop.f32.mrf.mxu0
  %v1563 = vadd.f32 0.0, %v1562
  %1564 = vmatmul.f32.gmra.mxu0 %v1353
  %v1565 = vpop.f32.mrf.mxu0
  %v1566 = vadd.f32 0.0, %v1565
  %1567 = vmatmul.f32.gmra.mxu0 %v1356
  %v1568 = vpop.f32.mrf.mxu0
  %v1569 = vadd.f32 0.0, %v1568
  %1570 = vmatmul.f32.gmra.mxu0 %v1359
  %v1571 = vpop.f32.mrf.mxu0
  %v1572 = vadd.f32 0.0, %v1571
  %1573 = vmatmul.f32.gmra.mxu0 %v1362
  %v1574 = vpop.f32.mrf.mxu0
  %v1575 = vadd.f32 0.0, %v1574
  %1576 = vmatmul.f32.gmra.mxu0 %v1365
  %v1577 = vpop.f32.mrf.mxu0
  %v1578 = vadd.f32 0.0, %v1577
  %1579 = vmatmul.f32.gmra.mxu0 %v1368
  %v1580 = vpop.f32.mrf.mxu0
  %v1581 = vadd.f32 0.0, %v1580
  %1582 = vmatmul.f32.gmra.mxu0 %v1371
  %v1583 = vpop.f32.mrf.mxu0
  %v1584 = vadd.f32 0.0, %v1583
  %1585 = vmatmul.f32.gmra.mxu0 %v1374
  %v1586 = vpop.f32.mrf.mxu0
  %v1587 = vadd.f32 0.0, %v1586
  %1588 = vmatmul.f32.gmra.mxu0 %v1377
  %v1589 = vpop.f32.mrf.mxu0
  %v1590 = vadd.f32 0.0, %v1589
  %1591 = vmatmul.f32.gmra.mxu0 %v1380
  %v1592 = vpop.f32.mrf.mxu0
  %v1593 = vadd.f32 0.0, %v1592
  %1594 = vmatmul.f32.gmra.mxu0 %v1383
  %v1595 = vpop.f32.mrf.mxu0
  %v1596 = vadd.f32 0.0, %v1595
  %1597 = vmatmul.f32.gmra.mxu0 %v1386
  %v1598 = vpop.f32.mrf.mxu0
  %v1599 = vadd.f32 0.0, %v1598
  %1600 = vmatmul.f32.gmra.mxu0 %v1389
  %v1601 = vpop.f32.mrf.mxu0
  %v1602 = vadd.f32 0.0, %v1601
  %1603 = vmatmul.f32.gmra.mxu0 %v1392
  %v1604 = vpop.f32.mrf.mxu0
  %v1605 = vadd.f32 0.0, %v1604
  %1606 = vmatmul.f32.gmra.mxu0 %v1395
  %v1607 = vpop.f32.mrf.mxu0
  %v1608 = vadd.f32 0.0, %v1607
  %1609 = vmatmul.f32.gmra.mxu0 %v1398
  %v1610 = vpop.f32.mrf.mxu0
  %v1611 = vadd.f32 0.0, %v1610
  %1612 = vmatmul.f32.gmra.mxu0 %v1401
  %v1613 = vpop.f32.mrf.mxu0
  %v1614 = vadd.f32 0.0, %v1613
  %1615 = vmatmul.f32.gmra.mxu0 %v1404
  %v1616 = vpop.f32.mrf.mxu0
  %v1617 = vadd.f32 0.0, %v1616
  %1618 = vmatmul.f32.gmra.mxu0 %v1407
  %v1619 = vpop.f32.mrf.mxu0
  %v1620 = vadd.f32 0.0, %v1619
  %1621 = vmatmul.f32.gmra.mxu0 %v1410
  %v1622 = vpop.f32.mrf.mxu0
  %v1623 = vadd.f32 0.0, %v1622
  %1624 = vmatmul.f32.gmra.mxu0 %v1413
  %v1625 = vpop.f32.mrf.mxu0
  %v1626 = vadd.f32 0.0, %v1625
  %1627 = vmatmul.f32.gmra.mxu0 %v1416
  %v1628 = vpop.f32.mrf.mxu0
  %v1629 = vadd.f32 0.0, %v1628
  %1630 = vmatmul.f32.gmra.mxu0 %v1419
  %v1631 = vpop.f32.mrf.mxu0
  %v1632 = vadd.f32 0.0, %v1631
  %1633 = vmatmul.f32.gmra.mxu0 %v1422
  %v1634 = vpop.f32.mrf.mxu0
  %v1635 = vadd.f32 0.0, %v1634
  %1636 = vmatmul.f32.gmra.mxu0 %v1425
  %v1637 = vpop.f32.mrf.mxu0
  %v1638 = vadd.f32 0.0, %v1637
  %1639 = vmatmul.f32.gmra.mxu0 %v1428
  %v1640 = vpop.f32.mrf.mxu0
  %v1641 = vadd.f32 0.0, %v1640
  %1642 = vmatmul.f32.gmra.mxu0 %v1431
  %v1643 = vpop.f32.mrf.mxu0
  %v1644 = vadd.f32 0.0, %v1643
  %1645 = vmatmul.f32.gmra.mxu0 %v1434
  %v1646 = vpop.f32.mrf.mxu0
  %v1647 = vadd.f32 0.0, %v1646
  %1648 = vmatmul.f32.gmra.mxu0 %v1437
  %v1649 = vpop.f32.mrf.mxu0
  %v1650 = vadd.f32 0.0, %v1649
  %1651 = vmatmul.f32.gmra.mxu0 %v1440
  %v1652 = vpop.f32.mrf.mxu0
  %v1653 = vadd.f32 0.0, %v1652
  %1654 = vmatmul.f32.gmra.mxu0 %v1443
  %v1655 = vpop.f32.mrf.mxu0
  %v1656 = vadd.f32 0.0, %v1655
  %1657 = vmatmul.f32.gmra.mxu0 %v1446
  %v1658 = vpop.f32.mrf.mxu0
  %v1659 = vadd.f32 0.0, %v1658
  %1660 = vmatmul.f32.gmra.mxu0 %v1449
  %v1661 = vpop.f32.mrf.mxu0
  %v1662 = vadd.f32 0.0, %v1661
  %1663 = vmatmul.f32.gmra.mxu0 %v1452
  %v1664 = vpop.f32.mrf.mxu0
  %v1665 = vadd.f32 0.0, %v1664
  %1666 = vmatmul.f32.gmra.mxu0 %v1455
  %v1667 = vpop.f32.mrf.mxu0
  %v1668 = vadd.f32 0.0, %v1667
  %1669 = vmatmul.f32.gmra.mxu0 %v1458
  %v1670 = vpop.f32.mrf.mxu0
  %v1671 = vadd.f32 0.0, %v1670
  %1672 = vmatmul.f32.gmra.mxu0 %v1461
  %v1673 = vpop.f32.mrf.mxu0
  %v1674 = vadd.f32 0.0, %v1673
  %1675 = vmatmul.f32.gmra.mxu0 %v1464
  %v1676 = vpop.f32.mrf.mxu0
  %v1677 = vadd.f32 0.0, %v1676
  %1678 = vmatmul.f32.gmra.mxu0 %v1467
  %v1679 = vpop.f32.mrf.mxu0
  %v1680 = vadd.f32 0.0, %v1679
  %1681 = vmatmul.f32.gmra.mxu0 %v1470
  %v1682 = vpop.f32.mrf.mxu0
  %v1683 = vadd.f32 0.0, %v1682
  %1684 = vmatmul.f32.gmra.mxu0 %v1473
  %v1685 = vpop.f32.mrf.mxu0
  %v1686 = vadd.f32 0.0, %v1685
  %1687 = vmatmul.f32.gmra.mxu0 %v1476
  %v1688 = vpop.f32.mrf.mxu0
  %v1689 = vadd.f32 0.0, %v1688
  %1690 = vdwg.mxu0
  %1691 = vst.msk [vmem:[%s8] sm:$0xff] %vm822, %v1500
  %1692 = vst.msk [vmem:[%s8 + $0x8] sm:$0xff] %vm822, %v1503
  %1693 = vst.msk [vmem:[%s8 + $0x10] sm:$0xff] %vm822, %v1506
  %1694 = vst.msk [vmem:[%s8 + $0x18] sm:$0xff] %vm822, %v1509
  %1695 = vst.msk [vmem:[%s8 + $0x20] sm:$0xff] %vm822, %v1512
  %1696 = vst.msk [vmem:[%s8 + $0x28] sm:$0xff] %vm822, %v1515
  %1697 = vst.msk [vmem:[%s8 + $0x30] sm:$0xff] %vm822, %v1518
  %1698 = vst.msk [vmem:[%s8 + $0x38] sm:$0xff] %vm822, %v1521
  %1699 = vst.msk [vmem:[%s8 + $0x40] sm:$0xff] %vm822, %v1524
  %1700 = vst.msk [vmem:[%s8 + $0x48] sm:$0xff] %vm822, %v1527
  %1701 = vst.msk [vmem:[%s8 + $0x50] sm:$0xff] %vm822, %v1530
  %1702 = vst.msk [vmem:[%s8 + $0x58] sm:$0xff] %vm822, %v1533
  %1703 = vst.msk [vmem:[%s8 + $0x60] sm:$0xff] %vm822, %v1536
  %1704 = vst.msk [vmem:[%s8 + $0x68] sm:$0xff] %vm822, %v1539
  %1705 = vst.msk [vmem:[%s8 + $0x70] sm:$0xff] %vm822, %v1542
  %1706 = vst.msk [vmem:[%s8 + $0x78] sm:$0xff] %vm822, %v1545
  %1707 = vst.msk [vmem:[%s8 + $0x80] sm:$0xff] %vm822, %v1548
  %1708 = vst.msk [vmem:[%s8 + $0x88] sm:$0xff] %vm822, %v1551
  %1709 = vst.msk [vmem:[%s8 + $0x90] sm:$0xff] %vm822, %v1554
  %1710 = vst.msk [vmem:[%s8 + $0x98] sm:$0xff] %vm822, %v1557
  %1711 = vst.msk [vmem:[%s8 + $0xa0] sm:$0xff] %vm822, %v1560
  %1712 = vst.msk [vmem:[%s8 + $0xa8] sm:$0xff] %vm822, %v1563
  %1713 = vst.msk [vmem:[%s8 + $0xb0] sm:$0xff] %vm822, %v1566
  %1714 = vst.msk [vmem:[%s8 + $0xb8] sm:$0xff] %vm822, %v1569
  %1715 = vst.msk [vmem:[%s8 + $0xc0] sm:$0xff] %vm822, %v1572
  %1716 = vst.msk [vmem:[%s8 + $0xc8] sm:$0xff] %vm822, %v1575
  %1717 = vst.msk [vmem:[%s8 + $0xd0] sm:$0xff] %vm822, %v1578
  %1718 = vst.msk [vmem:[%s8 + $0xd8] sm:$0xff] %vm822, %v1581
  %1719 = vst.msk [vmem:[%s8 + $0xe0] sm:$0xff] %vm822, %v1584
  %1720 = vst.msk [vmem:[%s8 + $0xe8] sm:$0xff] %vm822, %v1587
  %1721 = vst.msk [vmem:[%s8 + $0xf0] sm:$0xff] %vm822, %v1590
  %1722 = vst.msk [vmem:[%s8 + $0xf8] sm:$0xff] %vm822, %v1593
  %1723 = vst.msk [vmem:[%s8 + $0x100] sm:$0xff] %vm822, %v1596
  %1724 = vst.msk [vmem:[%s8 + $0x108] sm:$0xff] %vm822, %v1599
  %1725 = vst.msk [vmem:[%s8 + $0x110] sm:$0xff] %vm822, %v1602
  %1726 = vst.msk [vmem:[%s8 + $0x118] sm:$0xff] %vm822, %v1605
  %1727 = vst.msk [vmem:[%s8 + $0x120] sm:$0xff] %vm822, %v1608
  %1728 = vst.msk [vmem:[%s8 + $0x128] sm:$0xff] %vm822, %v1611
  %1729 = vst.msk [vmem:[%s8 + $0x130] sm:$0xff] %vm822, %v1614
  %1730 = vst.msk [vmem:[%s8 + $0x138] sm:$0xff] %vm822, %v1617
  %1731 = vst.msk [vmem:[%s8 + $0x140] sm:$0xff] %vm822, %v1620
  %1732 = vst.msk [vmem:[%s8 + $0x148] sm:$0xff] %vm822, %v1623
  %1733 = vst.msk [vmem:[%s8 + $0x150] sm:$0xff] %vm822, %v1626
  %1734 = vst.msk [vmem:[%s8 + $0x158] sm:$0xff] %vm822, %v1629
  %1735 = vst.msk [vmem:[%s8 + $0x160] sm:$0xff] %vm822, %v1632
  %1736 = vst.msk [vmem:[%s8 + $0x168] sm:$0xff] %vm822, %v1635
  %1737 = vst.msk [vmem:[%s8 + $0x170] sm:$0xff] %vm822, %v1638
  %1738 = vst.msk [vmem:[%s8 + $0x178] sm:$0xff] %vm822, %v1641
  %1739 = vst.msk [vmem:[%s8 + $0x180] sm:$0xff] %vm822, %v1644
  %1740 = vst.msk [vmem:[%s8 + $0x188] sm:$0xff] %vm822, %v1647
  %1741 = vst.msk [vmem:[%s8 + $0x190] sm:$0xff] %vm822, %v1650
  %1742 = vst.msk [vmem:[%s8 + $0x198] sm:$0xff] %vm822, %v1653
  %1743 = vst.msk [vmem:[%s8 + $0x1a0] sm:$0xff] %vm822, %v1656
  %1744 = vst.msk [vmem:[%s8 + $0x1a8] sm:$0xff] %vm822, %v1659
  %1745 = vst.msk [vmem:[%s8 + $0x1b0] sm:$0xff] %vm822, %v1662
  %1746 = vst.msk [vmem:[%s8 + $0x1b8] sm:$0xff] %vm822, %v1665
  %1747 = vst.msk [vmem:[%s8 + $0x1c0] sm:$0xff] %vm822, %v1668
  %1748 = vst.msk [vmem:[%s8 + $0x1c8] sm:$0xff] %vm822, %v1671
  %1749 = vst.msk [vmem:[%s8 + $0x1d0] sm:$0xff] %vm822, %v1674
  %1750 = vst.msk [vmem:[%s8 + $0x1d8] sm:$0xff] %vm822, %v1677
  %1751 = vst.msk [vmem:[%s8 + $0x1e0] sm:$0xff] %vm822, %v1680
  %1752 = vst.msk [vmem:[%s8 + $0x1e8] sm:$0xff] %vm822, %v1683
  %1753 = vst.msk [vmem:[%s8 + $0x1f0] sm:$0xff] %vm822, %v1686
  %1754 = vst.msk [vmem:[%s8 + $0x1f8] sm:$0xff] %vm822, %v1689
  %v1755 = vsel %vm822, %v1500, 0.0
  %v1756 = vsel %vm822, %v1503, 0.0
  %v1757 = vadd.f32 %v1755, %v1756
  %v1758 = vsel %vm822, %v1506, 0.0
  %v1759 = vadd.f32 %v1757, %v1758
  %v1760 = vsel %vm822, %v1509, 0.0
  %v1761 = vadd.f32 %v1759, %v1760
  %v1762 = vsel %vm822, %v1512, 0.0
  %v1763 = vadd.f32 %v1761, %v1762
  %v1764 = vsel %vm822, %v1515, 0.0
  %v1765 = vadd.f32 %v1763, %v1764
  %v1766 = vsel %vm822, %v1518, 0.0
  %v1767 = vadd.f32 %v1765, %v1766
  %v1768 = vsel %vm822, %v1521, 0.0
  %v1769 = vadd.f32 %v1767, %v1768
  %v1770 = vsel %vm822, %v1524, 0.0
  %v1771 = vadd.f32 %v1769, %v1770
  %v1772 = vsel %vm822, %v1527, 0.0
  %v1773 = vadd.f32 %v1771, %v1772
  %v1774 = vsel %vm822, %v1530, 0.0
  %v1775 = vadd.f32 %v1773, %v1774
  %v1776 = vsel %vm822, %v1533, 0.0
  %v1777 = vadd.f32 %v1775, %v1776
  %v1778 = vsel %vm822, %v1536, 0.0
  %v1779 = vadd.f32 %v1777, %v1778
  %v1780 = vsel %vm822, %v1539, 0.0
  %v1781 = vadd.f32 %v1779, %v1780
  %v1782 = vsel %vm822, %v1542, 0.0
  %v1783 = vadd.f32 %v1781, %v1782
  %v1784 = vsel %vm822, %v1545, 0.0
  %v1785 = vadd.f32 %v1783, %v1784
  %v1786 = vsel %vm822, %v1548, 0.0
  %v1787 = vadd.f32 %v1785, %v1786
  %v1788 = vsel %vm822, %v1551, 0.0
  %v1789 = vadd.f32 %v1787, %v1788
  %v1790 = vsel %vm822, %v1554, 0.0
  %v1791 = vadd.f32 %v1789, %v1790
  %v1792 = vsel %vm822, %v1557, 0.0
  %v1793 = vadd.f32 %v1791, %v1792
  %v1794 = vsel %vm822, %v1560, 0.0
  %v1795 = vadd.f32 %v1793, %v1794
  %v1796 = vsel %vm822, %v1563, 0.0
  %v1797 = vadd.f32 %v1795, %v1796
  %v1798 = vsel %vm822, %v1566, 0.0
  %v1799 = vadd.f32 %v1797, %v1798
  %v1800 = vsel %vm822, %v1569, 0.0
  %v1801 = vadd.f32 %v1799, %v1800
  %v1802 = vsel %vm822, %v1572, 0.0
  %v1803 = vadd.f32 %v1801, %v1802
  %v1804 = vsel %vm822, %v1575, 0.0
  %v1805 = vadd.f32 %v1803, %v1804
  %v1806 = vsel %vm822, %v1578, 0.0
  %v1807 = vadd.f32 %v1805, %v1806
  %v1808 = vsel %vm822, %v1581, 0.0
  %v1809 = vadd.f32 %v1807, %v1808
  %v1810 = vsel %vm822, %v1584, 0.0
  %v1811 = vadd.f32 %v1809, %v1810
  %v1812 = vsel %vm822, %v1587, 0.0
  %v1813 = vadd.f32 %v1811, %v1812
  %v1814 = vsel %vm822, %v1590, 0.0
  %v1815 = vadd.f32 %v1813, %v1814
  %v1816 = vsel %vm822, %v1593, 0.0
  %v1817 = vadd.f32 %v1815, %v1816
  %v1818 = vsel %vm822, %v1596, 0.0
  %v1819 = vadd.f32 %v1817, %v1818
  %v1820 = vsel %vm822, %v1599, 0.0
  %v1821 = vadd.f32 %v1819, %v1820
  %v1822 = vsel %vm822, %v1602, 0.0
  %v1823 = vadd.f32 %v1821, %v1822
  %v1824 = vsel %vm822, %v1605, 0.0
  %v1825 = vadd.f32 %v1823, %v1824
  %v1826 = vsel %vm822, %v1608, 0.0
  %v1827 = vadd.f32 %v1825, %v1826
  %v1828 = vsel %vm822, %v1611, 0.0
  %v1829 = vadd.f32 %v1827, %v1828
  %v1830 = vsel %vm822, %v1614, 0.0
  %v1831 = vadd.f32 %v1829, %v1830
  %v1832 = vsel %vm822, %v1617, 0.0
  %v1833 = vadd.f32 %v1831, %v1832
  %v1834 = vsel %vm822, %v1620, 0.0
  %v1835 = vadd.f32 %v1833, %v1834
  %v1836 = vsel %vm822, %v1623, 0.0
  %v1837 = vadd.f32 %v1835, %v1836
  %v1838 = vsel %vm822, %v1626, 0.0
  %v1839 = vadd.f32 %v1837, %v1838
  %v1840 = vsel %vm822, %v1629, 0.0
  %v1841 = vadd.f32 %v1839, %v1840
  %v1842 = vsel %vm822, %v1632, 0.0
  %v1843 = vadd.f32 %v1841, %v1842
  %v1844 = vsel %vm822, %v1635, 0.0
  %v1845 = vadd.f32 %v1843, %v1844
  %v1846 = vsel %vm822, %v1638, 0.0
  %v1847 = vadd.f32 %v1845, %v1846
  %v1848 = vsel %vm822, %v1641, 0.0
  %v1849 = vadd.f32 %v1847, %v1848
  %v1850 = vsel %vm822, %v1644, 0.0
  %v1851 = vadd.f32 %v1849, %v1850
  %v1852 = vsel %vm822, %v1647, 0.0
  %v1853 = vadd.f32 %v1851, %v1852
  %v1854 = vsel %vm822, %v1650, 0.0
  %v1855 = vadd.f32 %v1853, %v1854
  %v1856 = vsel %vm822, %v1653, 0.0
  %v1857 = vadd.f32 %v1855, %v1856
  %v1858 = vsel %vm822, %v1656, 0.0
  %v1859 = vadd.f32 %v1857, %v1858
  %v1860 = vsel %vm822, %v1659, 0.0
  %v1861 = vadd.f32 %v1859, %v1860
  %v1862 = vsel %vm822, %v1662, 0.0
  %v1863 = vadd.f32 %v1861, %v1862
  %v1864 = vsel %vm822, %v1665, 0.0
  %v1865 = vadd.f32 %v1863, %v1864
  %v1866 = vsel %vm822, %v1668, 0.0
  %v1867 = vadd.f32 %v1865, %v1866
  %v1868 = vsel %vm822, %v1671, 0.0
  %v1869 = vadd.f32 %v1867, %v1868
  %v1870 = vsel %vm822, %v1674, 0.0
  %v1871 = vadd.f32 %v1869, %v1870
  %v1872 = vsel %vm822, %v1677, 0.0
  %v1873 = vadd.f32 %v1871, %v1872
  %v1874 = vsel %vm822, %v1680, 0.0
  %v1875 = vadd.f32 %v1873, %v1874
  %v1876 = vsel %vm822, %v1683, 0.0
  %v1877 = vadd.f32 %v1875, %v1876
  %v1878 = vsel %vm822, %v1686, 0.0
  %v1879 = vadd.f32 %v1877, %v1878
  %v1880 = vsel %vm822, %v1689, 0.0
  %v1881 = vadd.f32 %v1879, %v1880
  %v1882 = vrot.slane %v1881, 4
  %v1883 = vadd.f32 %v1881, %v1882
  %v1884 = vrot.slane %v1883, 2
  %v1885 = vadd.f32 %v1883, %v1884
  %v1886 = vrot.slane %v1885, 1
  %v1887 = vadd.f32 %v1885, %v1886
  %1888 = vst.msk [vmem:[%s9] sm:$0x1] %vm1020, %v1887
  %v1889 = vmul.f32 %v1500, %v1500
  %v1890 = vmul.f32 %v1503, %v1503
  %v1891 = vmul.f32 %v1506, %v1506
  %v1892 = vmul.f32 %v1509, %v1509
  %v1893 = vmul.f32 %v1512, %v1512
  %v1894 = vmul.f32 %v1515, %v1515
  %v1895 = vmul.f32 %v1518, %v1518
  %v1896 = vmul.f32 %v1521, %v1521
  %v1897 = vmul.f32 %v1524, %v1524
  %v1898 = vmul.f32 %v1527, %v1527
  %v1899 = vmul.f32 %v1530, %v1530
  %v1900 = vmul.f32 %v1533, %v1533
  %v1901 = vmul.f32 %v1536, %v1536
  %v1902 = vmul.f32 %v1539, %v1539
  %v1903 = vmul.f32 %v1542, %v1542
  %v1904 = vmul.f32 %v1545, %v1545
  %v1905 = vmul.f32 %v1548, %v1548
  %v1906 = vmul.f32 %v1551, %v1551
  %v1907 = vmul.f32 %v1554, %v1554
  %v1908 = vmul.f32 %v1557, %v1557
  %v1909 = vmul.f32 %v1560, %v1560
  %v1910 = vmul.f32 %v1563, %v1563
  %v1911 = vmul.f32 %v1566, %v1566
  %v1912 = vmul.f32 %v1569, %v1569
  %v1913 = vmul.f32 %v1572, %v1572
  %v1914 = vmul.f32 %v1575, %v1575
  %v1915 = vmul.f32 %v1578, %v1578
  %v1916 = vmul.f32 %v1581, %v1581
  %v1917 = vmul.f32 %v1584, %v1584
  %v1918 = vmul.f32 %v1587, %v1587
  %v1919 = vmul.f32 %v1590, %v1590
  %v1920 = vmul.f32 %v1593, %v1593
  %v1921 = vmul.f32 %v1596, %v1596
  %v1922 = vmul.f32 %v1599, %v1599
  %v1923 = vmul.f32 %v1602, %v1602
  %v1924 = vmul.f32 %v1605, %v1605
  %v1925 = vmul.f32 %v1608, %v1608
  %v1926 = vmul.f32 %v1611, %v1611
  %v1927 = vmul.f32 %v1614, %v1614
  %v1928 = vmul.f32 %v1617, %v1617
  %v1929 = vmul.f32 %v1620, %v1620
  %v1930 = vmul.f32 %v1623, %v1623
  %v1931 = vmul.f32 %v1626, %v1626
  %v1932 = vmul.f32 %v1629, %v1629
  %v1933 = vmul.f32 %v1632, %v1632
  %v1934 = vmul.f32 %v1635, %v1635
  %v1935 = vmul.f32 %v1638, %v1638
  %v1936 = vmul.f32 %v1641, %v1641
  %v1937 = vmul.f32 %v1644, %v1644
  %v1938 = vmul.f32 %v1647, %v1647
  %v1939 = vmul.f32 %v1650, %v1650
  %v1940 = vmul.f32 %v1653, %v1653
  %v1941 = vmul.f32 %v1656, %v1656
  %v1942 = vmul.f32 %v1659, %v1659
  %v1943 = vmul.f32 %v1662, %v1662
  %v1944 = vmul.f32 %v1665, %v1665
  %v1945 = vmul.f32 %v1668, %v1668
  %v1946 = vmul.f32 %v1671, %v1671
  %v1947 = vmul.f32 %v1674, %v1674
  %v1948 = vmul.f32 %v1677, %v1677
  %v1949 = vmul.f32 %v1680, %v1680
  %v1950 = vmul.f32 %v1683, %v1683
  %v1951 = vmul.f32 %v1686, %v1686
  %v1952 = vmul.f32 %v1689, %v1689
  %v1953 = vsel %vm822, %v1889, 0.0
  %v1954 = vsel %vm822, %v1890, 0.0
  %v1955 = vadd.f32 %v1953, %v1954
  %v1956 = vsel %vm822, %v1891, 0.0
  %v1957 = vadd.f32 %v1955, %v1956
  %v1958 = vsel %vm822, %v1892, 0.0
  %v1959 = vadd.f32 %v1957, %v1958
  %v1960 = vsel %vm822, %v1893, 0.0
  %v1961 = vadd.f32 %v1959, %v1960
  %v1962 = vsel %vm822, %v1894, 0.0
  %v1963 = vadd.f32 %v1961, %v1962
  %v1964 = vsel %vm822, %v1895, 0.0
  %v1965 = vadd.f32 %v1963, %v1964
  %v1966 = vsel %vm822, %v1896, 0.0
  %v1967 = vadd.f32 %v1965, %v1966
  %v1968 = vsel %vm822, %v1897, 0.0
  %v1969 = vadd.f32 %v1967, %v1968
  %v1970 = vsel %vm822, %v1898, 0.0
  %v1971 = vadd.f32 %v1969, %v1970
  %v1972 = vsel %vm822, %v1899, 0.0
  %v1973 = vadd.f32 %v1971, %v1972
  %v1974 = vsel %vm822, %v1900, 0.0
  %v1975 = vadd.f32 %v1973, %v1974
  %v1976 = vsel %vm822, %v1901, 0.0
  %v1977 = vadd.f32 %v1975, %v1976
  %v1978 = vsel %vm822, %v1902, 0.0
  %v1979 = vadd.f32 %v1977, %v1978
  %v1980 = vsel %vm822, %v1903, 0.0
  %v1981 = vadd.f32 %v1979, %v1980
  %v1982 = vsel %vm822, %v1904, 0.0
  %v1983 = vadd.f32 %v1981, %v1982
  %v1984 = vsel %vm822, %v1905, 0.0
  %v1985 = vadd.f32 %v1983, %v1984
  %v1986 = vsel %vm822, %v1906, 0.0
  %v1987 = vadd.f32 %v1985, %v1986
  %v1988 = vsel %vm822, %v1907, 0.0
  %v1989 = vadd.f32 %v1987, %v1988
  %v1990 = vsel %vm822, %v1908, 0.0
  %v1991 = vadd.f32 %v1989, %v1990
  %v1992 = vsel %vm822, %v1909, 0.0
  %v1993 = vadd.f32 %v1991, %v1992
  %v1994 = vsel %vm822, %v1910, 0.0
  %v1995 = vadd.f32 %v1993, %v1994
  %v1996 = vsel %vm822, %v1911, 0.0
  %v1997 = vadd.f32 %v1995, %v1996
  %v1998 = vsel %vm822, %v1912, 0.0
  %v1999 = vadd.f32 %v1997, %v1998
  %v2000 = vsel %vm822, %v1913, 0.0
  %v2001 = vadd.f32 %v1999, %v2000
  %v2002 = vsel %vm822, %v1914, 0.0
  %v2003 = vadd.f32 %v2001, %v2002
  %v2004 = vsel %vm822, %v1915, 0.0
  %v2005 = vadd.f32 %v2003, %v2004
  %v2006 = vsel %vm822, %v1916, 0.0
  %v2007 = vadd.f32 %v2005, %v2006
  %v2008 = vsel %vm822, %v1917, 0.0
  %v2009 = vadd.f32 %v2007, %v2008
  %v2010 = vsel %vm822, %v1918, 0.0
  %v2011 = vadd.f32 %v2009, %v2010
  %v2012 = vsel %vm822, %v1919, 0.0
  %v2013 = vadd.f32 %v2011, %v2012
  %v2014 = vsel %vm822, %v1920, 0.0
  %v2015 = vadd.f32 %v2013, %v2014
  %v2016 = vsel %vm822, %v1921, 0.0
  %v2017 = vadd.f32 %v2015, %v2016
  %v2018 = vsel %vm822, %v1922, 0.0
  %v2019 = vadd.f32 %v2017, %v2018
  %v2020 = vsel %vm822, %v1923, 0.0
  %v2021 = vadd.f32 %v2019, %v2020
  %v2022 = vsel %vm822, %v1924, 0.0
  %v2023 = vadd.f32 %v2021, %v2022
  %v2024 = vsel %vm822, %v1925, 0.0
  %v2025 = vadd.f32 %v2023, %v2024
  %v2026 = vsel %vm822, %v1926, 0.0
  %v2027 = vadd.f32 %v2025, %v2026
  %v2028 = vsel %vm822, %v1927, 0.0
  %v2029 = vadd.f32 %v2027, %v2028
  %v2030 = vsel %vm822, %v1928, 0.0
  %v2031 = vadd.f32 %v2029, %v2030
  %v2032 = vsel %vm822, %v1929, 0.0
  %v2033 = vadd.f32 %v2031, %v2032
  %v2034 = vsel %vm822, %v1930, 0.0
  %v2035 = vadd.f32 %v2033, %v2034
  %v2036 = vsel %vm822, %v1931, 0.0
  %v2037 = vadd.f32 %v2035, %v2036
  %v2038 = vsel %vm822, %v1932, 0.0
  %v2039 = vadd.f32 %v2037, %v2038
  %v2040 = vsel %vm822, %v1933, 0.0
  %v2041 = vadd.f32 %v2039, %v2040
  %v2042 = vsel %vm822, %v1934, 0.0
  %v2043 = vadd.f32 %v2041, %v2042
  %v2044 = vsel %vm822, %v1935, 0.0
  %v2045 = vadd.f32 %v2043, %v2044
  %v2046 = vsel %vm822, %v1936, 0.0
  %v2047 = vadd.f32 %v2045, %v2046
  %v2048 = vsel %vm822, %v1937, 0.0
  %v2049 = vadd.f32 %v2047, %v2048
  %v2050 = vsel %vm822, %v1938, 0.0
  %v2051 = vadd.f32 %v2049, %v2050
  %v2052 = vsel %vm822, %v1939, 0.0
  %v2053 = vadd.f32 %v2051, %v2052
  %v2054 = vsel %vm822, %v1940, 0.0
  %v2055 = vadd.f32 %v2053, %v2054
  %v2056 = vsel %vm822, %v1941, 0.0
  %v2057 = vadd.f32 %v2055, %v2056
  %v2058 = vsel %vm822, %v1942, 0.0
  %v2059 = vadd.f32 %v2057, %v2058
  %v2060 = vsel %vm822, %v1943, 0.0
  %v2061 = vadd.f32 %v2059, %v2060
  %v2062 = vsel %vm822, %v1944, 0.0
  %v2063 = vadd.f32 %v2061, %v2062
  %v2064 = vsel %vm822, %v1945, 0.0
  %v2065 = vadd.f32 %v2063, %v2064
  %v2066 = vsel %vm822, %v1946, 0.0
  %v2067 = vadd.f32 %v2065, %v2066
  %v2068 = vsel %vm822, %v1947, 0.0
  %v2069 = vadd.f32 %v2067, %v2068
  %v2070 = vsel %vm822, %v1948, 0.0
  %v2071 = vadd.f32 %v2069, %v2070
  %v2072 = vsel %vm822, %v1949, 0.0
  %v2073 = vadd.f32 %v2071, %v2072
  %v2074 = vsel %vm822, %v1950, 0.0
  %v2075 = vadd.f32 %v2073, %v2074
  %v2076 = vsel %vm822, %v1951, 0.0
  %v2077 = vadd.f32 %v2075, %v2076
  %v2078 = vsel %vm822, %v1952, 0.0
  %v2079 = vadd.f32 %v2077, %v2078
  %v2080 = vrot.slane %v2079, 4
  %v2081 = vadd.f32 %v2079, %v2080
  %v2082 = vrot.slane %v2081, 2
  %v2083 = vadd.f32 %v2081, %v2082
  %v2084 = vrot.slane %v2083, 1
  %v2085 = vadd.f32 %v2083, %v2084
  %2086 = vst.msk [vmem:[%s9 + $0x1] sm:$0x1] %vm1020, %v2085
  // Predicated region
  $region26: #{bottleneck_forward.6} parent=0 // pred_check
    _
  $region27: #{bottleneck_forward.6} parent=0 // pred_check_branch
    %2088 = sbr.rel (0) target = $region29
  $region28: #{bottleneck_forward.6} parent=0 // pred_region
    _
  $region29: #{bottleneck_forward.6} parent=0 // pred_fallthru
    _
  // Predicated region
  $region30: #{bottleneck_forward.6} parent=0 // pred_check
    _
  $region31: #{bottleneck_forward.6} parent=0 // pred_check_branch
    %2090 = sbr.rel (0) target = $region33
  $region32: #{bottleneck_forward.6} parent=0 // pred_region
    _
  $region33: #{bottleneck_forward.6} parent=0 // pred_fallthru
    _
  // Predicated region
  $region34: #{bottleneck_forward.6} parent=0 // pred_check
    _
  $region35: #{bottleneck_forward.6} parent=0 // pred_check_branch
    %2092 = sbr.rel (0) target = $region37
  $region36: #{bottleneck_forward.6} parent=0 // pred_region
    _
  $region37: #{bottleneck_forward.6} parent=0 // pred_fallthru
    _
  // Predicated region
  $region38: #{bottleneck_forward.6} parent=0 // pred_check
    _
  $region39: #{bottleneck_forward.6} parent=0 // pred_check_branch
    %2094 = sbr.rel (0) target = $region41
  $region40: #{bottleneck_forward.6} parent=0 // pred_region
    _
  $region41: #{bottleneck_forward.6} parent=0 // pred_fallthru
    _
  // Predicated region
  $region42: #{bottleneck_forward.6} parent=0 // pred_check
    _
  $region43: #{bottleneck_forward.6} parent=0 // pred_check_branch
    %2096 = sbr.rel (0) target = $region45
  $region44: #{bottleneck_forward.6} parent=0 // pred_region
    _
  $region45: #{bottleneck_forward.6} parent=0 // pred_fallthru
    _
  // Predicated region
  $region46: #{bottleneck_forward.6} parent=0 // pred_check
    _
  $region47: #{bottleneck_forward.6} parent=0 // pred_check_branch
    %2098 = sbr.rel (0) target = $region49
  $region48: #{bottleneck_forward.6} parent=0 // pred_region
    _
  $region49: #{bottleneck_forward.6} parent=0 // pred_fallthru
    _
  // Predicated region
  $region50: #{bottleneck_forward.6} parent=0 // pred_check
    _
  $region51: #{bottleneck_forward.6} parent=0 // pred_check_branch
    %2100 = sbr.rel (0) target = $region53
  $region52: #{bottleneck_forward.6} parent=0 // pred_region
    _
  $region53: #{bottleneck_forward.6} parent=0 // pred_fallthru
    _
  // Predicated region
  $region54: #{bottleneck_forward.6} parent=0 // pred_check
    _
  $region55: #{bottleneck_forward.6} parent=0 // pred_check_branch
    %2102 = sbr.rel (0) target = $region57
  $region56: #{bottleneck_forward.6} parent=0 // pred_region
    _
  $region57: #{bottleneck_forward.6} parent=0 // pred_fallthru
    _

// kernel: bottleneck_forward.5
$region0: #{bottleneck_forward.5}
  #allocation0 [shape = 'u32[]', space=smem, size = 0x4, offset = 0x4, fixed_abs, tag = 'smem constant byte address 0x4 - core index']
  #allocation1 [shape = 'u32[72,128]{1,0:T(1,128)}', space=vmem, size = 0x9000, scoped, tag = 'internal scratch']
  #allocation2 [shape = 'f32[18,18,8]{2,1,0:T(8,128)}', space=vmem, size = 0x36000, scoped, tag = 'scratch operand']
  %s0 = inlined_call_operand.vmem [shape: f32[2,16,16,8], index: 0, kind: input, shape index: {}]
  %s1 = inlined_call_operand.vmem [shape: f32[1,8], index: 1, kind: input, shape index: {}]
  %s2 = inlined_call_operand.vmem [shape: f32[1,8], index: 2, kind: input, shape index: {}]
  %s3 = inlined_call_operand.vmem [shape: f32[72,8], index: 3, kind: input, shape index: {}]
  %s4 = inlined_call_operand.vmem [shape: f32[2,16,16,8], index: 4, kind: output, shape index: {0}]
  %s5 = inlined_call_operand.vmem [shape: f32[2,2,8], index: 5, kind: output, shape index: {1}]
  %6 = xla_tuple %s4, %s5
  %s7 = sld [smem:[#allocation0]]
  $region73: #{bottleneck_forward.5} parent=0
    _
  %s9 = ssub.s32 1, %s7
  %s10 = scalar_select 0, %s9, %s7
  loop: start=0, step=1, limit=4
  $region2: #{bottleneck_forward.5} parent=0 // loop_pre_header
    _
  $region3: #{bottleneck_forward.5} parent=0 // loop_header
    %s12 = sphi 0, %s16
    %p13 = scmp.ge.s32.totalorder %s12, 4
    %s19 = sphi 0, %s31
    %s20 = sphi 0, %s27
    %s21 = sphi 0, %s19
    %s22 = sphi 0, %s20
    %s23 = sphi 0, %s21
    %s24 = sphi 0, %s22
    %s34 = sphi 0, %s36
    %s37 = sphi 0, %s34
    %s38 = sphi 0, %s37
    %s54 = sphi 0, %s38
    %s58 = sphi 0, %s58
    %s60 = sphi 0, %s58
    %s61 = sphi 0, %s60
    %s75 = sphi 0, %s61
    %s79 = sphi 0, %s79
    %s81 = sphi 0, %s79
    %s82 = sphi 0, %s81
    %s96 = sphi 0, %s82
    %s100 = sphi 0, %s100
    %s102 = sphi 0, %s100
    %s103 = sphi 0, %s102
    %s117 = sphi 0, %s103
    %s125 = sphi 0, %s127
    %s128 = sphi 0, %s125
    %s129 = sphi 0, %s128
    %s145 = sphi 0, %s129
    %s153 = sphi 0, %s155
    %s156 = sphi 0, %s153
    %s157 = sphi 0, %s156
    %s173 = sphi 0, %s157
  $region4: #{bottleneck_forward.5} parent=0 // loop_header_branch
    %15 = sbr.rel (%p13) target = $region8
  $region5: #{bottleneck_forward.5} parent=0 // loop_body
    %s17 = ssub.s32 %s12, 1
    %s18 = ssub.s32 %s12, 2
    %s25 = sadd.s32 1, %s20
    %p26 = scmp.ge.s32.totalorder %s25, 1
    %s27 = scalar_select %p26, 0, %s25
    %s28 = sadd.s32 1, %s19
    %s29 = scalar_select %p26, %s28, %s19
    %p30 = scmp.ge.s32.totalorder %s29, 2
    %s31 = scalar_select %p30, 0, %s29
    %s32 = ssub.s32 %s19, %s31
    %p33 = scmp.eq.s32.totalorder %s32, 0
    %s35 = sadd.s32 %s34, 1
    %s36 = scalar_select %p33, %s34, %s35
    %p39 = pneg %p33
    %p40 = scmp.eq.s32.totalorder %s12, 1
    %p41 = por %p39, %p40
    %p42 = scmp.ne.s32.totalorder %s34, %s37
    %p43 = scmp.eq.s32.totalorder %s12, 0
    %p44 = por %p42, %p43
    %p45 = scmp.ne.s32.totalorder %s34, %s37
    %p46 = scmp.eq.s32.totalorder %s17, 1
    %p47 = por %p45, %p46
    %p48 = scmp.ne.s32.totalorder %s37, %s38
    %p49 = scmp.eq.s32.totalorder %s17, 0
    %p50 = por %p48, %p49
    %p51 = scmp.ne.s32.totalorder %s37, %s38
    %p52 = scmp.eq.s32.totalorder %s18, 1
    %p53 = por %p51, %p52
    %p55 = scmp.ne.s32.totalorder %s38, %s54
    %p56 = scmp.eq.s32.totalorder %s18, 0
    %p57 = por %p55, %p56
    %s59 = sadd.s32 %s58, 1
    %p62 = scmp.eq.s32.totalorder %s12, 1
    %p63 = scmp.ne.s32.totalorder %s58, %s60
    %p64 = scmp.eq.s32.totalorder %s12, 0
    %p65 = por %p63, %p64
    %p66 = scmp.ne.s32.totalorder %s58, %s60
    %p67 = scmp.eq.s32.totalorder %s17, 1
    %p68 = por %p66, %p67
    %p69 = scmp.ne.s32.totalorder %s60, %s61
    %p70 = scmp.eq.s32.totalorder %s17, 0
    %p71 = por %p69, %p70
    %p72 = scmp.ne.s32.totalorder %s60, %s61
    %p73 = scmp.eq.s32.totalorder %s18, 1
    %p74 = por %p72, %p73
    %p76 = scmp.ne.s32.totalorder %s61, %s75
    %p77 = scmp.eq.s32.totalorder %s18, 0
    %p78 = por %p76, %p77
    %s80 = sadd.s32 %s79, 1
    %p83 = scmp.eq.s32.totalorder %s12, 1
    %p84 = scmp.ne.s32.totalorder %s79, %s81
    %p85 = scmp.eq.s32.totalorder %s12, 0
    %p86 = por %p84, %p85
    %p87 = scmp.ne.s32.totalorder %s79, %s81
    %p88 = scmp.eq.s32.totalorder %s17, 1
    %p89 = por %p87, %p88
    %p90 = scmp.ne.s32.totalorder %s81, %s82
    %p91 = scmp.eq.s32.totalorder %s17, 0
    %p92 = por %p90, %p91
    %p93 = scmp.ne.s32.totalorder %s81, %s82
    %p94 = scmp.eq.s32.totalorder %s18, 1
    %p95 = por %p93, %p94
    %p97 = scmp.ne.s32.totalorder %s82, %s96
    %p98 = scmp.eq.s32.totalorder %s18, 0
    %p99 = por %p97, %p98
    %s101 = sadd.s32 %s100, 1
    %p104 = scmp.eq.s32.totalorder %s12, 1
    %p105 = scmp.ne.s32.totalorder %s100, %s102
    %p106 = scmp.eq.s32.totalorder %s12, 0
    %p107 = por %p105, %p106
    %p108 = scmp.ne.s32.totalorder %s100, %s102
    %p109 = scmp.eq.s32.totalorder %s17, 1
    %p110 = por %p108, %p109
    %p111 = scmp.ne.s32.totalorder %s102, %s103
    %p112 = scmp.eq.s32.totalorder %s17, 0
    %p113 = por %p111, %p112
    %p114 = scmp.ne.s32.totalorder %s102, %s103
    %p115 = scmp.eq.s32.totalorder %s18, 1
    %p116 = por %p114, %p115
    %p118 = scmp.ne.s32.totalorder %s103, %s117
    %p119 = scmp.eq.s32.totalorder %s18, 0
    %p120 = por %p118, %p119
    %s121 = ssub.s32 %s19, %s31
    %s122 = ssub.s32 %s20, %s27
    %s123 = sor.u32 %s121, %s122
    %p124 = scmp.eq.s32.totalorder %s123, 0
    %s126 = sadd.s32 %s125, 1
    %s127 = scalar_select %p124, %s125, %s126
    %p130 = pneg %p124
    %p131 = scmp.eq.s32.totalorder %s12, 1
    %p132 = por %p130, %p131
    %p133 = scmp.ne.s32.totalorder %s125, %s128
    %p134 = scmp.eq.s32.totalorder %s12, 0
    %p135 = por %p133, %p134
    %p136 = scmp.ne.s32.totalorder %s125, %s128
    %p137 = scmp.eq.s32.totalorder %s17, 1
    %p138 = por %p136, %p137
    %p139 = scmp.ne.s32.totalorder %s128, %s129
    %p140 = scmp.eq.s32.totalorder %s17, 0
    %p141 = por %p139, %p140
    %p142 = scmp.ne.s32.totalorder %s128, %s129
    %p143 = scmp.eq.s32.totalorder %s18, 1
    %p144 = por %p142, %p143
    %p146 = scmp.ne.s32.totalorder %s129, %s145
    %p147 = scmp.eq.s32.totalorder %s18, 0
    %p148 = por %p146, %p147
    %s149 = sadd.s32 %s19, %s20
    %s150 = sadd.s32 %s31, %s27
    %s151 = ssub.s32 %s149, %s150
    %p152 = scmp.eq.s32.totalorder %s151, 0
    %s154 = sadd.s32 %s153, 1
    %s155 = scalar_select %p152, %s153, %s154
    %p158 = pneg %p152
    %p159 = scmp.eq.s32.totalorder %s12, 1
    %p160 = por %p158, %p159
    %p161 = scmp.ne.s32.totalorder %s153, %s156
    %p162 = scmp.eq.s32.totalorder %s12, 0
    %p163 = por %p161, %p162
    %p164 = scmp.ne.s32.totalorder %s153, %s156
    %p165 = scmp.eq.s32.totalorder %s17, 1
    %p166 = por %p164, %p165
    %p167 = scmp.ne.s32.totalorder %s156, %s157
    %p168 = scmp.eq.s32.totalorder %s17, 0
    %p169 = por %p167, %p168
    %p170 = scmp.ne.s32.totalorder %s156, %s157
    %p171 = scmp.eq.s32.totalorder %s18, 1
    %p172 = por %p170, %p171
    %p174 = scmp.ne.s32.totalorder %s157, %s173
    %p175 = scmp.eq.s32.totalorder %s18, 0
    %p176 = por %p174, %p175
    %p177 = scmp.le.s32.totalorder 1, %s12
    %p178 = scmp.lt.s32.totalorder %s12, 3
    %p179 = pnand %p177, %p178
    %p180 = pneg %p179
    // Predicated region
    $region9: #{bottleneck_forward.5} parent=5 // pred_check
      _
    $region10: #{bottleneck_forward.5} parent=5 // pred_check_branch
      %182 = sbr.rel (%p179) target = $region12
    $region11: #{bottleneck_forward.5} parent=5 // pred_region
      %s183 = ssub.s32 %s12, 1
      // Predicated region
      $region13: #{bottleneck_forward.5} parent=11 // pred_check
        %p184 = pneg %p71
      $region14: #{bottleneck_forward.5} parent=11 // pred_check_branch
        %186 = sbr.rel (%p184) target = $region16
      $region15: #{bottleneck_forward.5} parent=11 // pred_region
        _
      $region16: #{bottleneck_forward.5} parent=11 // pred_fallthru
        _
      // Predicated region
      $region17: #{bottleneck_forward.5} parent=11 // pred_check
        %p187 = pneg %p92
      $region18: #{bottleneck_forward.5} parent=11 // pred_check_branch
        %189 = sbr.rel (%p187) target = $region20
      $region19: #{bottleneck_forward.5} parent=11 // pred_region
        _
      $region20: #{bottleneck_forward.5} parent=11 // pred_fallthru
        _
      // Predicated region
      $region21: #{bottleneck_forward.5} parent=11 // pred_check
        %p190 = pneg %p113
      $region22: #{bottleneck_forward.5} parent=11 // pred_check_branch
        %192 = sbr.rel (%p190) target = $region24
      $region23: #{bottleneck_forward.5} parent=11 // pred_region
        _
      $region24: #{bottleneck_forward.5} parent=11 // pred_fallthru
        _
    $region12: #{bottleneck_forward.5} parent=5 // pred_fallthru
      _
    %p193 = scmp.lt.s32.totalorder %s12, 2
    // Predicated region
    $region25: #{bottleneck_forward.5} parent=5 // pred_check
      %p194 = pneg %p193
    $region26: #{bottleneck_forward.5} parent=5 // pred_check_branch
      %196 = sbr.rel (%p194) target = $region28
    $region27: #{bottleneck_forward.5} parent=5 // pred_region
      // Predicated region
      $region29: #{bottleneck_forward.5} parent=27 // pred_check
        %p197 = pneg %p44
      $region30: #{bottleneck_forward.5} parent=27 // pred_check_branch
        %199 = sbr.rel (%p197) target = $region32
      $region31: #{bottleneck_forward.5} parent=27 // pred_region
        %p200 = scmp.lt.s32.totalorder %s19, 1
        %s201 = scalar_select %p200, %s19, 1
        %s202 = smul.addr %s201, 32
        %s203 = smul.addr %s202, 8
        %s204 = scalar_lea.vmem %s0, %s203
      $region32: #{bottleneck_forward.5} parent=27 // pred_fallthru
        _
    $region28: #{bottleneck_forward.5} parent=5 // pred_fallthru
      _
    %p205 = scmp.le.s32.totalorder 1, %s12
    %p206 = scmp.lt.s32.totalorder %s12, 3
    %p207 = pnand %p205, %p206
    %p208 = pneg %p207
    // Predicated region
    $region33: #{bottleneck_forward.5} parent=5 // pred_check
      _
    $region34: #{bottleneck_forward.5} parent=5 // pred_check_branch
      %210 = sbr.rel (%p207) target = $region36
    $region35: #{bottleneck_forward.5} parent=5 // pred_region
      %s211 = ssub.s32 %s12, 1
      %p212 = scmp.lt.s32.totalorder %s21, 1
      %s213 = scalar_select %p212, %s21, 1
      %s214 = smul.addr %s213, 32
      %s215 = smul.addr %s214, 8
      %s216 = scalar_lea.vmem %s0, %s215
      %p217 = pneg %p50
      %p218 = pneg %p47
      %p219 = pneg %p71
      %p220 = pneg %p68
      %p221 = pneg %p92
      %p222 = pneg %p89
      %p223 = pneg %p113
      %p224 = pneg %p110
      %p225 = pneg %p141
      %p226 = pneg %p138
      %s227 = smul.u32 16, %s22
      %p228 = scmp.lt.s32.totalorder %s21, 1
      %s229 = scalar_select %p228, %s21, 1
      %p230 = scmp.lt.s32.totalorder %s227, 15
      %s231 = scalar_select %p230, %s227, 15
      %s232 = smul.addr %s231, 2
      %s233 = smul.addr %s229, 32
      %s234 = sadd.s32 %s232, %s233
      %s235 = smul.addr %s234, 8
      %s236 = scalar_lea.vmem %s4, %s235
      %p237 = pneg %p169
      %p238 = pneg %p166
      %s239 = sadd.s32 %s21, %s22
      %p240 = scmp.lt.s32.totalorder %s239, 1
      %s241 = scalar_select %p240, %s239, 1
      %s242 = smul.addr %s241, 2
      %s243 = scalar_lea.vmem %s5, %s242
      %p244 = scmp.lt.s32.totalorder %s21, 1
      %s245 = scalar_select %p244, %s21, 1
      %s246 = smul.addr %s245, 32
      %s247 = smul.addr %s246, 8
      %s248 = scalar_lea.vmem %s0, %s247
      %s249 = smul.u32 16, %s22
      %p250 = scmp.lt.s32.totalorder %s21, 1
      %s251 = scalar_select %p250, %s21, 1
      %p252 = scmp.lt.s32.totalorder %s249, 15
      %s253 = scalar_select %p252, %s249, 15
      %s254 = smul.addr %s253, 2
      %s255 = smul.addr %s251, 32
      %s256 = sadd.s32 %s254, %s255
      %s257 = smul.addr %s256, 8
      %s258 = scalar_lea.vmem %s4, %s257
      %s259 = smul.u32 16, %s22
      %s260 = sadd.s32 %s21, %s22
      %p261 = scmp.lt.s32.totalorder %s260, 1
      %s262 = scalar_select %p261, %s260, 1
      %s263 = smul.addr %s262, 2
      %s264 = scalar_lea.vmem %s5, %s263
      %s265 = sadd.s32 %s21, %s22
      %s266 = smul.u32 %s22, 16
      %v267 = vld [vmem:[%s1] sm:$0x1]
      %v268 = vld [vmem:[%s2] sm:$0x1]
      %s269 = smul.u32 %s266, 16
      %s270 = scalar_lea.vmem %s248, %s269
      %v271 = vld [vmem:[%s270] sm:$0xff]
      %v272 = vld [vmem:[%s270 + $0x8] sm:$0xff]
      %v273 = vld [vmem:[%s270 + $0x10] sm:$0xff]
      %v274 = vld [vmem:[%s270 + $0x18] sm:$0xff]
      %v275 = vld [vmem:[%s270 + $0x20] sm:$0xff]
      %v276 = vld [vmem:[%s270 + $0x28] sm:$0xff]
      %v277 = vld [vmem:[%s270 + $0x30] sm:$0xff]
      %v278 = vld [vmem:[%s270 + $0x38] sm:$0xff]
      %v279 = vld [vmem:[%s270 + $0x40] sm:$0xff]
      %v280 = vld [vmem:[%s270 + $0x48] sm:$0xff]
      %v281 = vld [vmem:[%s270 + $0x50] sm:$0xff]
      %v282 = vld [vmem:[%s270 + $0x58] sm:$0xff]
      %v283 = vld [vmem:[%s270 + $0x60] sm:$0xff]
      %v284 = vld [vmem:[%s270 + $0x68] sm:$0xff]
      %v285 = vld [vmem:[%s270 + $0x70] sm:$0xff]
      %v286 = vld [vmem:[%s270 + $0x78] sm:$0xff]
      %v287 = vld [vmem:[%s270 + $0x80] sm:$0xff]
      %v288 = vld [vmem:[%s270 + $0x88] sm:$0xff]
      %v289 = vld [vmem:[%s270 + $0x90] sm:$0xff]
      %v290 = vld [vmem:[%s270 + $0x98] sm:$0xff]
      %v291 = vld [vmem:[%s270 + $0xa0] sm:$0xff]
      %v292 = vld [vmem:[%s270 + $0xa8] sm:$0xff]
      %v293 = vld [vmem:[%s270 + $0xb0] sm:$0xff]
      %v294 = vld [vmem:[%s270 + $0xb8] sm:$0xff]
      %v295 = vld [vmem:[%s270 + $0xc0] sm:$0xff]
      %v296 = vld [vmem:[%s270 + $0xc8] sm:$0xff]
      %v297 = vld [vmem:[%s270 + $0xd0] sm:$0xff]
      %v298 = vld [vmem:[%s270 + $0xd8] sm:$0xff]
      %v299 = vld [vmem:[%s270 + $0xe0] sm:$0xff]
      %v300 = vld [vmem:[%s270 + $0xe8] sm:$0xff]
      %v301 = vld [vmem:[%s270 + $0xf0] sm:$0xff]
      %v302 = vld [vmem:[%s270 + $0xf8] sm:$0xff]
      %v304 = vperm.slane %v267, 0
      %v306 = vmul.f32 %v271, %v304
      %v307 = vmul.f32 %v272, %v304
      %v308 = vmul.f32 %v273, %v304
      %v309 = vmul.f32 %v274, %v304
      %v310 = vmul.f32 %v275, %v304
      %v311 = vmul.f32 %v276, %v304
      %v312 = vmul.f32 %v277, %v304
      %v313 = vmul.f32 %v278, %v304
      %v314 = vmul.f32 %v279, %v304
      %v315 = vmul.f32 %v280, %v304
      %v316 = vmul.f32 %v281, %v304
      %v317 = vmul.f32 %v282, %v304
      %v318 = vmul.f32 %v283, %v304
      %v319 = vmul.f32 %v284, %v304
      %v320 = vmul.f32 %v285, %v304
      %v321 = vmul.f32 %v286, %v304
      %v322 = vmul.f32 %v287, %v304
      %v323 = vmul.f32 %v288, %v304
      %v324 = vmul.f32 %v289, %v304
      %v325 = vmul.f32 %v290, %v304
      %v326 = vmul.f32 %v291, %v304
      %v327 = vmul.f32 %v292, %v304
      %v328 = vmul.f32 %v293, %v304
      %v329 = vmul.f32 %v294, %v304
      %v330 = vmul.f32 %v295, %v304
      %v331 = vmul.f32 %v296, %v304
      %v332 = vmul.f32 %v297, %v304
      %v333 = vmul.f32 %v298, %v304
      %v334 = vmul.f32 %v299, %v304
      %v335 = vmul.f32 %v300, %v304
      %v336 = vmul.f32 %v301, %v304
      %v337 = vmul.f32 %v302, %v304
      %v339 = vperm.slane %v268, 0
      %v341 = vadd.f32 %v306, %v339
      %v342 = vadd.f32 %v307, %v339
      %v343 = vadd.f32 %v308, %v339
      %v344 = vadd.f32 %v309, %v339
      %v345 = vadd.f32 %v310, %v339
      %v346 = vadd.f32 %v311, %v339
      %v347 = vadd.f32 %v312, %v339
      %v348 = vadd.f32 %v313, %v339
      %v349 = vadd.f32 %v314, %v339
      %v350 = vadd.f32 %v315, %v339
      %v351 = vadd.f32 %v316, %v339
      %v352 = vadd.f32 %v317, %v339
      %v353 = vadd.f32 %v318, %v339
      %v354 = vadd.f32 %v319, %v339
      %v355 = vadd.f32 %v320, %v339
      %v356 = vadd.f32 %v321, %v339
      %v357 = vadd.f32 %v322, %v339
      %v358 = vadd.f32 %v323, %v339
      %v359 = vadd.f32 %v324, %v339
      %v360 = vadd.f32 %v325, %v339
      %v361 = vadd.f32 %v326, %v339
      %v362 = vadd.f32 %v327, %v339
      %v363 = vadd.f32 %v328, %v339
      %v364 = vadd.f32 %v329, %v339
      %v365 = vadd.f32 %v330, %v339
      %v366 = vadd.f32 %v331, %v339
      %v367 = vadd.f32 %v332, %v339
      %v368 = vadd.f32 %v333, %v339
      %v369 = vadd.f32 %v334, %v339
      %v370 = vadd.f32 %v335, %v339
      %v371 = vadd.f32 %v336, %v339
      %v372 = vadd.f32 %v337, %v339
      %vm373 = vcmp.ge.f32.partialorder %v341, 0.0
      %vm374 = vcmp.ge.f32.partialorder %v342, 0.0
      %vm375 = vcmp.ge.f32.partialorder %v343, 0.0
      %vm376 = vcmp.ge.f32.partialorder %v344, 0.0
      %vm377 = vcmp.ge.f32.partialorder %v345, 0.0
      %vm378 = vcmp.ge.f32.partialorder %v346, 0.0
      %vm379 = vcmp.ge.f32.partialorder %v347, 0.0
      %vm380 = vcmp.ge.f32.partialorder %v348, 0.0
      %vm381 = vcmp.ge.f32.partialorder %v349, 0.0
      %vm382 = vcmp.ge.f32.partialorder %v350, 0.0
      %vm383 = vcmp.ge.f32.partialorder %v351, 0.0
      %vm384 = vcmp.ge.f32.partialorder %v352, 0.0
      %vm385 = vcmp.ge.f32.partialorder %v353, 0.0
      %vm386 = vcmp.ge.f32.partialorder %v354, 0.0
      %vm387 = vcmp.ge.f32.partialorder %v355, 0.0
      %vm388 = vcmp.ge.f32.partialorder %v356, 0.0
      %vm389 = vcmp.ge.f32.partialorder %v357, 0.0
      %vm390 = vcmp.ge.f32.partialorder %v358, 0.0
      %vm391 = vcmp.ge.f32.partialorder %v359, 0.0
      %vm392 = vcmp.ge.f32.partialorder %v360, 0.0
      %vm393 = vcmp.ge.f32.partialorder %v361, 0.0
      %vm394 = vcmp.ge.f32.partialorder %v362, 0.0
      %vm395 = vcmp.ge.f32.partialorder %v363, 0.0
      %vm396 = vcmp.ge.f32.partialorder %v364, 0.0
      %vm397 = vcmp.ge.f32.partialorder %v365, 0.0
      %vm398 = vcmp.ge.f32.partialorder %v366, 0.0
      %vm399 = vcmp.ge.f32.partialorder %v367, 0.0
      %vm400 = vcmp.ge.f32.partialorder %v368, 0.0
      %vm401 = vcmp.ge.f32.partialorder %v369, 0.0
      %vm402 = vcmp.ge.f32.partialorder %v370, 0.0
      %vm403 = vcmp.ge.f32.partialorder %v371, 0.0
      %vm404 = vcmp.ge.f32.partialorder %v372, 0.0
      %v405 = vmul.f32 %v341, 0.01
      %v406 = vmul.f32 %v342, 0.01
      %v407 = vmul.f32 %v343, 0.01
      %v408 = vmul.f32 %v344, 0.01
      %v409 = vmul.f32 %v345, 0.01
      %v410 = vmul.f32 %v346, 0.01
      %v411 = vmul.f32 %v347, 0.01
      %v412 = vmul.f32 %v348, 0.01
      %v413 = vmul.f32 %v349, 0.01
      %v414 = vmul.f32 %v350, 0.01
      %v415 = vmul.f32 %v351, 0.01
      %v416 = vmul.f32 %v352, 0.01
      %v417 = vmul.f32 %v353, 0.01
      %v418 = vmul.f32 %v354, 0.01
      %v419 = vmul.f32 %v355, 0.01
      %v420 = vmul.f32 %v356, 0.01
      %v421 = vmul.f32 %v357, 0.01
      %v422 = vmul.f32 %v358, 0.01
      %v423 = vmul.f32 %v359, 0.01
      %v424 = vmul.f32 %v360, 0.01
      %v425 = vmul.f32 %v361, 0.01
      %v426 = vmul.f32 %v362, 0.01
      %v427 = vmul.f32 %v363, 0.01
      %v428 = vmul.f32 %v364, 0.01
      %v429 = vmul.f32 %v365, 0.01
      %v430 = vmul.f32 %v366, 0.01
      %v431 = vmul.f32 %v367, 0.01
      %v432 = vmul.f32 %v368, 0.01
      %v433 = vmul.f32 %v369, 0.01
      %v434 = vmul.f32 %v370, 0.01
      %v435 = vmul.f32 %v371, 0.01
      %v436 = vmul.f32 %v372, 0.01
      %v437 = vsel %vm373, %v341, %v405
      %v438 = vsel %vm374, %v342, %v406
      %v439 = vsel %vm375, %v343, %v407
      %v440 = vsel %vm376, %v344, %v408
      %v441 = vsel %vm377, %v345, %v409
      %v442 = vsel %vm378, %v346, %v410
      %v443 = vsel %vm379, %v347, %v411
      %v444 = vsel %vm380, %v348, %v412
      %v445 = vsel %vm381, %v349, %v413
      %v446 = vsel %vm382, %v350, %v414
      %v447 = vsel %vm383, %v351, %v415
      %v448 = vsel %vm384, %v352, %v416
      %v449 = vsel %vm385, %v353, %v417
      %v450 = vsel %vm386, %v354, %v418
      %v451 = vsel %vm387, %v355, %v419
      %v452 = vsel %vm388, %v356, %v420
      %v453 = vsel %vm389, %v357, %v421
      %v454 = vsel %vm390, %v358, %v422
      %v455 = vsel %vm391, %v359, %v423
      %v456 = vsel %vm392, %v360, %v424
      %v457 = vsel %vm393, %v361, %v425
      %v458 = vsel %vm394, %v362, %v426
      %v459 = vsel %vm395, %v363, %v427
      %v460 = vsel %vm396, %v364, %v428
      %v461 = vsel %vm397, %v365, %v429
      %v462 = vsel %vm398, %v366, %v430
      %v463 = vsel %vm399, %v367, %v431
      %v464 = vsel %vm400, %v368, %v432
      %v465 = vsel %vm401, %v369, %v433
      %v466 = vsel %vm402, %v370, %v434
      %v467 = vsel %vm403, %v371, %v435
      %v468 = vsel %vm404, %v372, %v436
      %s469 = scalar_lea.vmem [#allocation2], 24
      %vm470 = vcmask 64512
      %471 = vst.msk [vmem:[%s469 + $0x1] sm:$0xff] %vm470, %v437
      %472 = vst.msk [vmem:[%s469 + $0x9] sm:$0xff] %vm470, %v438
      %473 = vst.msk [vmem:[%s469 + $0x19] sm:$0xff] %vm470, %v439
      %474 = vst.msk [vmem:[%s469 + $0x21] sm:$0xff] %vm470, %v440
      %475 = vst.msk [vmem:[%s469 + $0x31] sm:$0xff] %vm470, %v441
      %476 = vst.msk [vmem:[%s469 + $0x39] sm:$0xff] %vm470, %v442
      %477 = vst.msk [vmem:[%s469 + $0x49] sm:$0xff] %vm470, %v443
      %478 = vst.msk [vmem:[%s469 + $0x51] sm:$0xff] %vm470, %v444
      %479 = vst.msk [vmem:[%s469 + $0x61] sm:$0xff] %vm470, %v445
      %480 = vst.msk [vmem:[%s469 + $0x69] sm:$0xff] %vm470, %v446
      %481 = vst.msk [vmem:[%s469 + $0x79] sm:$0xff] %vm470, %v447
      %482 = vst.msk [vmem:[%s469 + $0x81] sm:$0xff] %vm470, %v448
      %483 = vst.msk [vmem:[%s469 + $0x91] sm:$0xff] %vm470, %v449
      %484 = vst.msk [vmem:[%s469 + $0x99] sm:$0xff] %vm470, %v450
      %485 = vst.msk [vmem:[%s469 + $0xa9] sm:$0xff] %vm470, %v451
      %486 = vst.msk [vmem:[%s469 + $0xb1] sm:$0xff] %vm470, %v452
      %487 = vst.msk [vmem:[%s469 + $0xc1] sm:$0xff] %vm470, %v453
      %488 = vst.msk [vmem:[%s469 + $0xc9] sm:$0xff] %vm470, %v454
      %489 = vst.msk [vmem:[%s469 + $0xd9] sm:$0xff] %vm470, %v455
      %490 = vst.msk [vmem:[%s469 + $0xe1] sm:$0xff] %vm470, %v456
      %491 = vst.msk [vmem:[%s469 + $0xf1] sm:$0xff] %vm470, %v457
      %492 = vst.msk [vmem:[%s469 + $0xf9] sm:$0xff] %vm470, %v458
      %493 = vst.msk [vmem:[%s469 + $0x109] sm:$0xff] %vm470, %v459
      %494 = vst.msk [vmem:[%s469 + $0x111] sm:$0xff] %vm470, %v460
      %495 = vst.msk [vmem:[%s469 + $0x121] sm:$0xff] %vm470, %v461
      %496 = vst.msk [vmem:[%s469 + $0x129] sm:$0xff] %vm470, %v462
      %497 = vst.msk [vmem:[%s469 + $0x139] sm:$0xff] %vm470, %v463
      %498 = vst.msk [vmem:[%s469 + $0x141] sm:$0xff] %vm470, %v464
      %499 = vst.msk [vmem:[%s469 + $0x151] sm:$0xff] %vm470, %v465
      %500 = vst.msk [vmem:[%s469 + $0x159] sm:$0xff] %vm470, %v466
      %501 = vst.msk [vmem:[%s469 + $0x169] sm:$0xff] %vm470, %v467
      %502 = vst.msk [vmem:[%s469 + $0x171] sm:$0xff] %vm470, %v468
      %vm503 = vcmask 57344
      %504 = vst.msk [vmem:[#allocation2] sm:$0x1] %vm503, 0.0
      %505 = vst.msk [vmem:[#allocation2 + $0x18] sm:$0x1] %vm503, 0.0
      %506 = vst.msk [vmem:[#allocation2 + $0x30] sm:$0x1] %vm503, 0.0
      %507 = vst.msk [vmem:[#allocation2 + $0x48] sm:$0x1] %vm503, 0.0
      %508 = vst.msk [vmem:[#allocation2 + $0x60] sm:$0x1] %vm503, 0.0
      %509 = vst.msk [vmem:[#allocation2 + $0x78] sm:$0x1] %vm503, 0.0
      %510 = vst.msk [vmem:[#allocation2 + $0x90] sm:$0x1] %vm503, 0.0
      %511 = vst.msk [vmem:[#allocation2 + $0xa8] sm:$0x1] %vm503, 0.0
      %512 = vst.msk [vmem:[#allocation2 + $0xc0] sm:$0x1] %vm503, 0.0
      %513 = vst.msk [vmem:[#allocation2 + $0xd8] sm:$0x1] %vm503, 0.0
      %514 = vst.msk [vmem:[#allocation2 + $0xf0] sm:$0x1] %vm503, 0.0
      %515 = vst.msk [vmem:[#allocation2 + $0x108] sm:$0x1] %vm503, 0.0
      %516 = vst.msk [vmem:[#allocation2 + $0x120] sm:$0x1] %vm503, 0.0
      %517 = vst.msk [vmem:[#allocation2 + $0x138] sm:$0x1] %vm503, 0.0
      %518 = vst.msk [vmem:[#allocation2 + $0x150] sm:$0x1] %vm503, 0.0
      %519 = vst.msk [vmem:[#allocation2 + $0x168] sm:$0x1] %vm503, 0.0
      %520 = vst.msk [vmem:[#allocation2 + $0x180] sm:$0x1] %vm503, 0.0
      %521 = vst.msk [vmem:[#allocation2 + $0x198] sm:$0x1] %vm503, 0.0
      %522 = vst.msk [vmem:[#allocation2 + $0x11] sm:$0x1] %vm503, 0.0
      %523 = vst.msk [vmem:[#allocation2 + $0x29] sm:$0x1] %vm503, 0.0
      %524 = vst.msk [vmem:[#allocation2 + $0x41] sm:$0x1] %vm503, 0.0
      %525 = vst.msk [vmem:[#allocation2 + $0x59] sm:$0x1] %vm503, 0.0
      %526 = vst.msk [vmem:[#allocation2 + $0x71] sm:$0x1] %vm503, 0.0
      %527 = vst.msk [vmem:[#allocation2 + $0x89] sm:$0x1] %vm503, 0.0
      %528 = vst.msk [vmem:[#allocation2 + $0xa1] sm:$0x1] %vm503, 0.0
      %529 = vst.msk [vmem:[#allocation2 + $0xb9] sm:$0x1] %vm503, 0.0
      %530 = vst.msk [vmem:[#allocation2 + $0xd1] sm:$0x1] %vm503, 0.0
      %531 = vst.msk [vmem:[#allocation2 + $0xe9] sm:$0x1] %vm503, 0.0
      %532 = vst.msk [vmem:[#allocation2 + $0x101] sm:$0x1] %vm503, 0.0
      %533 = vst.msk [vmem:[#allocation2 + $0x119] sm:$0x1] %vm503, 0.0
      %534 = vst.msk [vmem:[#allocation2 + $0x131] sm:$0x1] %vm503, 0.0
      %535 = vst.msk [vmem:[#allocation2 + $0x149] sm:$0x1] %vm503, 0.0
      %536 = vst.msk [vmem:[#allocation2 + $0x161] sm:$0x1] %vm503, 0.0
      %537 = vst.msk [vmem:[#allocation2 + $0x179] sm:$0x1] %vm503, 0.0
      %538 = vst.msk [vmem:[#allocation2 + $0x191] sm:$0x1] %vm503, 0.0
      %539 = vst.msk [vmem:[#allocation2 + $0x1a9] sm:$0x1] %vm503, 0.0
      %p540 = scmp.eq.s32.totalorder %s22, 0
      // Predicated region
      $region37: #{bottleneck_forward.5} parent=35 // pred_check
        %p541 = pneg %p540
      $region38: #{bottleneck_forward.5} parent=35 // pred_check_branch
        %543 = sbr.rel (%p541) target = $region40
      $region39: #{bottleneck_forward.5} parent=35 // pred_region
        %544 = vst.msk [vmem:[#allocation2 + $0x1] sm:$0xff] %vm470, 0.0
        %545 = vst.msk [vmem:[#allocation2 + $0x9] sm:$0xff] %vm470, 0.0
      $region40: #{bottleneck_forward.5} parent=35 // pred_fallthru
        _
      %p546 = scmp.gt.s32.totalorder %s22, 0
      // Predicated region
      $region41: #{bottleneck_forward.5} parent=35 // pred_check
        %p547 = pneg %p546
      $region42: #{bottleneck_forward.5} parent=35 // pred_check_branch
        %549 = sbr.rel (%p547) target = $region44
      $region43: #{bottleneck_forward.5} parent=35 // pred_region
        %s550 = ssub.s32 %s266, 1
        %s551 = smul.u32 %s550, 16
        %s552 = scalar_lea.vmem %s248, %s551
        %v553 = vld [vmem:[%s552] sm:$0xff]
        %v554 = vld [vmem:[%s552 + $0x8] sm:$0xff]
        %v555 = vmul.f32 %v553, %v304
        %v556 = vmul.f32 %v554, %v304
        %v557 = vadd.f32 %v555, %v339
        %v558 = vadd.f32 %v556, %v339
        %vm559 = vcmp.ge.f32.partialorder %v557, 0.0
        %vm560 = vcmp.ge.f32.partialorder %v558, 0.0
        %v561 = vmul.f32 %v557, 0.01
        %v562 = vmul.f32 %v558, 0.01
        %v563 = vsel %vm559, %v557, %v561
        %v564 = vsel %vm560, %v558, %v562
        %565 = vst.msk [vmem:[#allocation2 + $0x1] sm:$0xff] %vm470, %v563
        %566 = vst.msk [vmem:[#allocation2 + $0x9] sm:$0xff] %vm470, %v564
      $region44: #{bottleneck_forward.5} parent=35 // pred_fallthru
        _
      // Predicated region
      $region45: #{bottleneck_forward.5} parent=35 // pred_check
        %p567 = pneg %p540
      $region46: #{bottleneck_forward.5} parent=35 // pred_check_branch
        %569 = sbr.rel (%p567) target = $region48
      $region47: #{bottleneck_forward.5} parent=35 // pred_region
        %s570 = scalar_lea.vmem [#allocation2], 408
        %571 = vst.msk [vmem:[%s570 + $0x1] sm:$0xff] %vm470, 0.0
        %572 = vst.msk [vmem:[%s570 + $0x9] sm:$0xff] %vm470, 0.0
      $region48: #{bottleneck_forward.5} parent=35 // pred_fallthru
        _
      %p573 = scmp.lt.s32.totalorder %s22, 0
      // Predicated region
      $region49: #{bottleneck_forward.5} parent=35 // pred_check
        %p574 = pneg %p573
      $region50: #{bottleneck_forward.5} parent=35 // pred_check_branch
        %576 = sbr.rel (%p574) target = $region52
      $region51: #{bottleneck_forward.5} parent=35 // pred_region
        %s577 = sadd.s32 %s266, 16
        %s578 = smul.u32 %s577, 16
        %s579 = scalar_lea.vmem %s248, %s578
        %v580 = vld [vmem:[%s579] sm:$0xff]
        %v581 = vld [vmem:[%s579 + $0x8] sm:$0xff]
        %v582 = vmul.f32 %v580, %v304
        %v583 = vmul.f32 %v581, %v304
        %v584 = vadd.f32 %v582, %v339
        %v585 = vadd.f32 %v583, %v339
        %vm586 = vcmp.ge.f32.partialorder %v584, 0.0
        %vm587 = vcmp.ge.f32.partialorder %v585, 0.0
        %v588 = vmul.f32 %v584, 0.01
        %v589 = vmul.f32 %v585, 0.01
        %v590 = vsel %vm586, %v584, %v588
        %v591 = vsel %vm587, %v585, %v589
        %s592 = scalar_lea.vmem [#allocation2], 408
        %593 = vst.msk [vmem:[%s592 + $0x1] sm:$0xff] %vm470, %v590
        %594 = vst.msk [vmem:[%s592 + $0x9] sm:$0xff] %vm470, %v591
      $region52: #{bottleneck_forward.5} parent=35 // pred_fallthru
        _
      %v595 = vld [vmem:[#allocation2] sm:$0xff]
      %v596 = vld [vmem:[#allocation2 + $0x8] sm:$0xff]
      %v597 = vld [vmem:[#allocation2 + $0x10] sm:$0x3]
      %v598 = vld [vmem:[#allocation2 + $0x18] sm:$0xff]
      %v599 = vld [vmem:[#allocation2 + $0x20] sm:$0xff]
      %v600 = vld [vmem:[#allocation2 + $0x28] sm:$0x3]
      %v601 = vld [vmem:[#allocation2 + $0x30] sm:$0xff]
      %v602 = vld [vmem:[#allocation2 + $0x38] sm:$0xff]
      %v603 = vld [vmem:[#allocation2 + $0x40] sm:$0x3]
      %v604 = vld [vmem:[#allocation2 + $0x48] sm:$0xff]
      %v605 = vld [vmem:[#allocation2 + $0x50] sm:$0xff]
      %v606 = vld [vmem:[#allocation2 + $0x58] sm:$0x3]
      %v607 = vld [vmem:[#allocation2 + $0x60] sm:$0xff]
      %v608 = vld [vmem:[#allocation2 + $0x68] sm:$0xff]
      %v609 = vld [vmem:[#allocation2 + $0x70] sm:$0x3]
      %v610 = vld [vmem:[#allocation2 + $0x78] sm:$0xff]
      %v611 = vld [vmem:[#allocation2 + $0x80] sm:$0xff]
      %v612 = vld [vmem:[#allocation2 + $0x88] sm:$0x3]
      %v613 = vld [vmem:[#allocation2 + $0x90] sm:$0xff]
      %v614 = vld [vmem:[#allocation2 + $0x98] sm:$0xff]
      %v615 = vld [vmem:[#allocation2 + $0xa0] sm:$0x3]
      %v616 = vld [vmem:[#allocation2 + $0xa8] sm:$0xff]
      %v617 = vld [vmem:[#allocation2 + $0xb0] sm:$0xff]
      %v618 = vld [vmem:[#allocation2 + $0xb8] sm:$0x3]
      %v619 = vld [vmem:[#allocation2 + $0xc0] sm:$0xff]
      %v620 = vld [vmem:[#allocation2 + $0xc8] sm:$0xff]
      %v621 = vld [vmem:[#allocation2 + $0xd0] sm:$0x3]
      %v622 = vld [vmem:[#allocation2 + $0xd8] sm:$0xff]
      %v623 = vld [vmem:[#allocation2 + $0xe0] sm:$0xff]
      %v624 = vld [vmem:[#allocation2 + $0xe8] sm:$0x3]
      %v625 = vld [vmem:[#allocation2 + $0xf0] sm:$0xff]
      %v626 = vld [vmem:[#allocation2 + $0xf8] sm:$0xff]
      %v627 = vld [vmem:[#allocation2 + $0x100] sm:$0x3]
      %v628 = vld [vmem:[#allocation2 + $0x108] sm:$0xff]
      %v629 = vld [vmem:[#allocation2 + $0x110] sm:$0xff]
      %v630 = vld [vmem:[#allocation2 + $0x118] sm:$0x3]
      %v631 = vld [vmem:[#allocation2 + $0x120] sm:$0xff]
      %v632 = vld [vmem:[#allocation2 + $0x128] sm:$0xff]
      %v633 = vld [vmem:[#allocation2 + $0x130] sm:$0x3]
      %v634 = vld [vmem:[#allocation2 + $0x138] sm:$0xff]
      %v635 = vld [vmem:[#allocation2 + $0x140] sm:$0xff]
      %v636 = vld [vmem:[#allocation2 + $0x148] sm:$0x3]
      %v637 = vld [vmem:[#allocation2 + $0x150] sm:$0xff]
      %v638 = vld [vmem:[#allocation2 + $0x158] sm:$0xff]
      %v639 = vld [vmem:[#allocation2 + $0x160] sm:$0x3]
      %v640 = vld [vmem:[#allocation2 + $0x168] sm:$0xff]
      %v641 = vld [vmem:[#allocation2 + $0x170] sm:$0xff]
      %v642 = vld [vmem:[#allocation2 + $0x178] sm:$0x3]
      %v643 = vld [vmem:[#allocation2 + $0x180] sm:$0xff]
      %v644 = vld [vmem:[#allocation2 + $0x188] sm:$0xff]
      %v645 = vld [vmem:[#allocation2 + $0x190] sm:$0x3]
      %v646 = vld [vmem:[#allocation2 + $0x198] sm:$0xff]
      %v647 = vld [vmem:[#allocation2 + $0x1a0] sm:$0xff]
      %v648 = vld [vmem:[#allocation2 + $0x1a8] sm:$0x3]
      %vm697 = vcmask 1046528
      %v698 = vrot.slane %v595, 1
      %v699 = vrot.slane %v596, 1
      %v700 = vsel %vm697, %v698, %v699
      %v701 = vrot.slane %v597, 1
      %v702 = vsel %vm697, %v699, %v701
      %v703 = vrot.slane %v598, 1
      %v704 = vrot.slane %v599, 1
      %v705 = vsel %vm697, %v703, %v704
      %v706 = vrot.slane %v600, 1
      %v707 = vsel %vm697, %v704, %v706
      %v708 = vrot.slane %v601, 1
      %v709 = vrot.slane %v602, 1
      %v710 = vsel %vm697, %v708, %v709
      %v711 = vrot.slane %v603, 1
      %v712 = vsel %vm697, %v709, %v711
      %v713 = vrot.slane %v604, 1
      %v714 = vrot.slane %v605, 1
      %v715 = vsel %vm697, %v713, %v714
      %v716 = vrot.slane %v606, 1
      %v717 = vsel %vm697, %v714, %v716
      %v718 = vrot.slane %v607, 1
      %v719 = vrot.slane %v608, 1
      %v720 = vsel %vm697, %v718, %v719
      %v721 = vrot.slane %v609, 1
      %v722 = vsel %vm697, %v719, %v721
      %v723 = vrot.slane %v610, 1
      %v724 = vrot.slane %v611, 1
      %v725 = vsel %vm697, %v723, %v724
      %v726 = vrot.slane %v612, 1
      %v727 = vsel %vm697, %v724, %v726
      %v728 = vrot.slane %v613, 1
      %v729 = vrot.slane %v614, 1
      %v730 = vsel %vm697, %v728, %v729
      %v731 = vrot.slane %v615, 1
      %v732 = vsel %vm697, %v729, %v731
      %v733 = vrot.slane %v616, 1
      %v734 = vrot.slane %v617, 1
      %v735 = vsel %vm697, %v733, %v734
      %v736 = vrot.slane %v618, 1
      %v737 = vsel %vm697, %v734, %v736
      %v738 = vrot.slane %v619, 1
      %v739 = vrot.slane %v620, 1
      %v740 = vsel %vm697, %v738, %v739
      %v741 = vrot.slane %v621, 1
      %v742 = vsel %vm697, %v739, %v741
      %v743 = vrot.slane %v622, 1
      %v744 = vrot.slane %v623, 1
      %v745 = vsel %vm697, %v743, %v744
      %v746 = vrot.slane %v624, 1
      %v747 = vsel %vm697, %v744, %v746
      %v748 = vrot.slane %v625, 1
      %v749 = vrot.slane %v626, 1
      %v750 = vsel %vm697, %v748, %v749
      %v751 = vrot.slane %v627, 1
      %v752 = vsel %vm697, %v749, %v751
      %v753 = vrot.slane %v628, 1
      %v754 = vrot.slane %v629, 1
      %v755 = vsel %vm697, %v753, %v754
      %v756 = vrot.slane %v630, 1
      %v757 = vsel %vm697, %v754, %v756
      %v758 = vrot.slane %v631, 1
      %v759 = vrot.slane %v632, 1
      %v760 = vsel %vm697, %v758, %v759
      %v761 = vrot.slane %v633, 1
      %v762 = vsel %vm697, %v759, %v761
      %v763 = vrot.slane %v634, 1
      %v764 = vrot.slane %v635, 1
      %v765 = vsel %vm697, %v763, %v764
      %v766 = vrot.slane %v636, 1
      %v767 = vsel %vm697, %v764, %v766
      %v768 = vrot.slane %v637, 1
      %v769 = vrot.slane %v638, 1
      %v770 = vsel %vm697, %v768, %v769
      %v771 = vrot.slane %v639, 1
      %v772 = vsel %vm697, %v769, %v771
      %v773 = vrot.slane %v640, 1
      %v774 = vrot.slane %v641, 1
      %v775 = vsel %vm697, %v773, %v774
      %v776 = vrot.slane %v642, 1
      %v777 = vsel %vm697, %v774, %v776
      %vm778 = vcmask 1045504
      %v779 = vrot.slane %v595, 2
      %v780 = vrot.slane %v596, 2
      %v781 = vsel %vm778, %v779, %v780
      %v782 = vrot.slane %v597, 2
      %v783 = vsel %vm778, %v780, %v782
      %v784 = vrot.slane %v598, 2
      %v785 = vrot.slane %v599, 2
      %v786 = vsel %vm778, %v784, %v785
      %v787 = vrot.slane %v600, 2
      %v788 = vsel %vm778, %v785, %v787
      %v789 = vrot.slane %v601, 2
      %v790 = vrot.slane %v602, 2
      %v791 = vsel %vm778, %v789, %v790
      %v792 = vrot.slane %v603, 2
      %v793 = vsel %vm778, %v790, %v792
      %v794 = vrot.slane %v604, 2
      %v795 = vrot.slane %v605, 2
      %v796 = vsel %vm778, %v794, %v795
      %v797 = vrot.slane %v606, 2
      %v798 = vsel %vm778, %v795, %v797
      %v799 = vrot.slane %v607, 2
      %v800 = vrot.slane %v608, 2
      %v801 = vsel %vm778, %v799, %v800
      %v802 = vrot.slane %v609, 2
      %v803 = vsel %vm778, %v800, %v802
      %v804 = vrot.slane %v610, 2
      %v805 = vrot.slane %v611, 2
      %v806 = vsel %vm778, %v804, %v805
      %v807 = vrot.slane %v612, 2
      %v808 = vsel %vm778, %v805, %v807
      %v809 = vrot.slane %v613, 2
      %v810 = vrot.slane %v614, 2
      %v811 = vsel %vm778, %v809, %v810
      %v812 = vrot.slane %v615, 2
      %v813 = vsel %vm778, %v810, %v812
      %v814 = vrot.slane %v616, 2
      %v815 = vrot.slane %v617, 2
      %v816 = vsel %vm778, %v814, %v815
      %v817 = vrot.slane %v618, 2
      %v818 = vsel %vm778, %v815, %v817
      %v819 = vrot.slane %v619, 2
      %v820 = vrot.slane %v620, 2
      %v821 = vsel %vm778, %v819, %v820
      %v822 = vrot.slane %v621, 2
      %v823 = vsel %vm778, %v820, %v822
      %v824 = vrot.slane %v622, 2
      %v825 = vrot.slane %v623, 2
      %v826 = vsel %vm778, %v824, %v825
      %v827 = vrot.slane %v624, 2
      %v828 = vsel %vm778, %v825, %v827
      %v829 = vrot.slane %v625, 2
      %v830 = vrot.slane %v626, 2
      %v831 = vsel %vm778, %v829, %v830
      %v832 = vrot.slane %v627, 2
      %v833 = vsel %vm778, %v830, %v832
      %v834 = vrot.slane %v628, 2
      %v835 = vrot.slane %v629, 2
      %v836 = vsel %vm778, %v834, %v835
      %v837 = vrot.slane %v630, 2
      %v838 = vsel %vm778, %v835, %v837
      %v839 = vrot.slane %v631, 2
      %v840 = vrot.slane %v632, 2
      %v841 = vsel %vm778, %v839, %v840
      %v842 = vrot.slane %v633, 2
      %v843 = vsel %vm778, %v840, %v842
      %v844 = vrot.slane %v634, 2
      %v845 = vrot.slane %v635, 2
      %v846 = vsel %vm778, %v844, %v845
      %v847 = vrot.slane %v636, 2
      %v848 = vsel %vm778, %v845, %v847
      %v849 = vrot.slane %v637, 2
      %v850 = vrot.slane %v638, 2
      %v851 = vsel %vm778, %v849, %v850
      %v852 = vrot.slane %v639, 2
      %v853 = vsel %vm778, %v850, %v852
      %v854 = vrot.slane %v640, 2
      %v855 = vrot.slane %v641, 2
      %v856 = vsel %vm778, %v854, %v855
      %v857 = vrot.slane %v642, 2
      %v858 = vsel %vm778, %v855, %v857
      %v862 = vrot.slane %v643, 1
      %v863 = vrot.slane %v644, 1
      %v864 = vsel %vm697, %v862, %v863
      %v865 = vrot.slane %v645, 1
      %v866 = vsel %vm697, %v863, %v865
      %v867 = vrot.slane %v643, 2
      %v868 = vrot.slane %v644, 2
      %v869 = vsel %vm778, %v867, %v868
      %v870 = vrot.slane %v645, 2
      %v871 = vsel %vm778, %v868, %v870
      %v875 = vrot.slane %v646, 1
      %v876 = vrot.slane %v647, 1
      %v877 = vsel %vm697, %v875, %v876
      %v878 = vrot.slane %v648, 1
      %v879 = vsel %vm697, %v876, %v878
      %v880 = vrot.slane %v646, 2
      %v881 = vrot.slane %v647, 2
      %v882 = vsel %vm778, %v880, %v881
      %v883 = vrot.slane %v648, 2
      %v884 = vsel %vm778, %v881, %v883
      %885 = vrot.lane.b32.xlu0 %v700, 8
      %v886 = vpop.permute.xlu0 %885
      %887 = vrot.lane.b32.xlu0 %v702, 8
      %v888 = vpop.permute.xlu0 %887
      %889 = vrot.lane.b32.xlu0 %v705, 8
      %v890 = vpop.permute.xlu0 %889
      %891 = vrot.lane.b32.xlu0 %v707, 8
      %v892 = vpop.permute.xlu0 %891
      %893 = vrot.lane.b32.xlu0 %v710, 8
      %v894 = vpop.permute.xlu0 %893
      %895 = vrot.lane.b32.xlu0 %v712, 8
      %v896 = vpop.permute.xlu0 %895
      %897 = vrot.lane.b32.xlu0 %v715, 8
      %v898 = vpop.permute.xlu0 %897
      %899 = vrot.lane.b32.xlu0 %v717, 8
      %v900 = vpop.permute.xlu0 %899
      %901 = vrot.lane.b32.xlu0 %v720, 8
      %v902 = vpop.permute.xlu0 %901
      %903 = vrot.lane.b32.xlu0 %v722, 8
      %v904 = vpop.permute.xlu0 %903
      %905 = vrot.lane.b32.xlu0 %v725, 8
      %v906 = vpop.permute.xlu0 %905
      %907 = vrot.lane.b32.xlu0 %v727, 8
      %v908 = vpop.permute.xlu0 %907
      %909 = vrot.lane.b32.xlu0 %v730, 8
      %v910 = vpop.permute.xlu0 %909
      %911 = vrot.lane.b32.xlu0 %v732, 8
      %v912 = vpop.permute.xlu0 %911
      %913 = vrot.lane.b32.xlu0 %v735, 8
      %v914 = vpop.permute.xlu0 %913
      %915 = vrot.lane.b32.xlu0 %v737, 8
      %v916 = vpop.permute.xlu0 %915
      %917 = vrot.lane.b32.xlu0 %v740, 8
      %v918 = vpop.permute.xlu0 %917
      %919 = vrot.lane.b32.xlu0 %v742, 8
      %v920 = vpop.permute.xlu0 %919
      %921 = vrot.lane.b32.xlu0 %v745, 8
      %v922 = vpop.permute.xlu0 %921
      %923 = vrot.lane.b32.xlu0 %v747, 8
      %v924 = vpop.permute.xlu0 %923
      %925 = vrot.lane.b32.xlu0 %v750, 8
      %v926 = vpop.permute.xlu0 %925
      %927 = vrot.lane.b32.xlu0 %v752, 8
      %v928 = vpop.permute.xlu0 %927
      %929 = vrot.lane.b32.xlu0 %v755, 8
      %v930 = vpop.permute.xlu0 %929
      %931 = vrot.lane.b32.xlu0 %v757, 8
      %v932 = vpop.permute.xlu0 %931
      %933 = vrot.lane.b32.xlu0 %v760, 8
      %v934 = vpop.permute.xlu0 %933
      %935 = vrot.lane.b32.xlu0 %v762, 8
      %v936 = vpop.permute.xlu0 %935
      %937 = vrot.lane.b32.xlu0 %v765, 8
      %v938 = vpop.permute.xlu0 %937
      %939 = vrot.lane.b32.xlu0 %v767, 8
      %v940 = vpop.permute.xlu0 %939
      %941 = vrot.lane.b32.xlu0 %v770, 8
      %v942 = vpop.permute.xlu0 %941
      %943 = vrot.lane.b32.xlu0 %v772, 8
      %v944 = vpop.permute.xlu0 %943
      %945 = vrot.lane.b32.xlu0 %v775, 8
      %v946 = vpop.permute.xlu0 %945
      %947 = vrot.lane.b32.xlu0 %v777, 8
      %v948 = vpop.permute.xlu0 %947
      %981 = vrot.lane.b32.xlu0 %v781, 16
      %v982 = vpop.permute.xlu0 %981
      %983 = vrot.lane.b32.xlu0 %v783, 16
      %v984 = vpop.permute.xlu0 %983
      %985 = vrot.lane.b32.xlu0 %v786, 16
      %v986 = vpop.permute.xlu0 %985
      %987 = vrot.lane.b32.xlu0 %v788, 16
      %v988 = vpop.permute.xlu0 %987
      %989 = vrot.lane.b32.xlu0 %v791, 16
      %v990 = vpop.permute.xlu0 %989
      %991 = vrot.lane.b32.xlu0 %v793, 16
      %v992 = vpop.permute.xlu0 %991
      %993 = vrot.lane.b32.xlu0 %v796, 16
      %v994 = vpop.permute.xlu0 %993
      %995 = vrot.lane.b32.xlu0 %v798, 16
      %v996 = vpop.permute.xlu0 %995
      %997 = vrot.lane.b32.xlu0 %v801, 16
      %v998 = vpop.permute.xlu0 %997
      %999 = vrot.lane.b32.xlu0 %v803, 16
      %v1000 = vpop.permute.xlu0 %999
      %1001 = vrot.lane.b32.xlu0 %v806, 16
      %v1002 = vpop.permute.xlu0 %1001
      %1003 = vrot.lane.b32.xlu0 %v808, 16
      %v1004 = vpop.permute.xlu0 %1003
      %1005 = vrot.lane.b32.xlu0 %v811, 16
      %v1006 = vpop.permute.xlu0 %1005
      %1007 = vrot.lane.b32.xlu0 %v813, 16
      %v1008 = vpop.permute.xlu0 %1007
      %1009 = vrot.lane.b32.xlu0 %v816, 16
      %v1010 = vpop.permute.xlu0 %1009
      %1011 = vrot.lane.b32.xlu0 %v818, 16
      %v1012 = vpop.permute.xlu0 %1011
      %1013 = vrot.lane.b32.xlu0 %v821, 16
      %v1014 = vpop.permute.xlu0 %1013
      %1015 = vrot.lane.b32.xlu0 %v823, 16
      %v1016 = vpop.permute.xlu0 %1015
      %1017 = vrot.lane.b32.xlu0 %v826, 16
      %v1018 = vpop.permute.xlu0 %1017
      %1019 = vrot.lane.b32.xlu0 %v828, 16
      %v1020 = vpop.permute.xlu0 %1019
      %1021 = vrot.lane.b32.xlu0 %v831, 16
      %v1022 = vpop.permute.xlu0 %1021
      %1023 = vrot.lane.b32.xlu0 %v833, 16
      %v1024 = vpop.permute.xlu0 %1023
      %1025 = vrot.lane.b32.xlu0 %v836, 16
      %v1026 = vpop.permute.xlu0 %1025
      %1027 = vrot.lane.b32.xlu0 %v838, 16
      %v1028 = vpop.permute.xlu0 %1027
      %1029 = vrot.lane.b32.xlu0 %v841, 16
      %v1030 = vpop.permute.xlu0 %1029
      %1031 = vrot.lane.b32.xlu0 %v843, 16
      %v1032 = vpop.permute.xlu0 %1031
      %1033 = vrot.lane.b32.xlu0 %v846, 16
      %v1034 = vpop.permute.xlu0 %1033
      %1035 = vrot.lane.b32.xlu0 %v848, 16
      %v1036 = vpop.permute.xlu0 %1035
      %1037 = vrot.lane.b32.xlu0 %v851, 16
      %v1038 = vpop.permute.xlu0 %1037
      %1039 = vrot.lane.b32.xlu0 %v853, 16
      %v1040 = vpop.permute.xlu0 %1039
      %1041 = vrot.lane.b32.xlu0 %v856, 16
      %v1042 = vpop.permute.xlu0 %1041
      %1043 = vrot.lane.b32.xlu0 %v858, 16
      %v1044 = vpop.permute.xlu0 %1043
      %1077 = vrot.lane.b32.xlu0 %v598, 24
      %v1078 = vpop.permute.xlu0 %1077
      %1079 = vrot.lane.b32.xlu0 %v599, 24
      %v1080 = vpop.permute.xlu0 %1079
      %1081 = vrot.lane.b32.xlu0 %v601, 24
      %v1082 = vpop.permute.xlu0 %1081
      %1083 = vrot.lane.b32.xlu0 %v602, 24
      %v1084 = vpop.permute.xlu0 %1083
      %1085 = vrot.lane.b32.xlu0 %v604, 24
      %v1086 = vpop.permute.xlu0 %1085
      %1087 = vrot.lane.b32.xlu0 %v605, 24
      %v1088 = vpop.permute.xlu0 %1087
      %1089 = vrot.lane.b32.xlu0 %v607, 24
      %v1090 = vpop.permute.xlu0 %1089
      %1091 = vrot.lane.b32.xlu0 %v608, 24
      %v1092 = vpop.permute.xlu0 %1091
      %1093 = vrot.lane.b32.xlu0 %v610, 24
      %v1094 = vpop.permute.xlu0 %1093
      %1095 = vrot.lane.b32.xlu0 %v611, 24
      %v1096 = vpop.permute.xlu0 %1095
      %1097 = vrot.lane.b32.xlu0 %v613, 24
      %v1098 = vpop.permute.xlu0 %1097
      %1099 = vrot.lane.b32.xlu0 %v614, 24
      %v1100 = vpop.permute.xlu0 %1099
      %1101 = vrot.lane.b32.xlu0 %v616, 24
      %v1102 = vpop.permute.xlu0 %1101
      %1103 = vrot.lane.b32.xlu0 %v617, 24
      %v1104 = vpop.permute.xlu0 %1103
      %1105 = vrot.lane.b32.xlu0 %v619, 24
      %v1106 = vpop.permute.xlu0 %1105
      %1107 = vrot.lane.b32.xlu0 %v620, 24
      %v1108 = vpop.permute.xlu0 %1107
      %1109 = vrot.lane.b32.xlu0 %v622, 24
      %v1110 = vpop.permute.xlu0 %1109
      %1111 = vrot.lane.b32.xlu0 %v623, 24
      %v1112 = vpop.permute.xlu0 %1111
      %1113 = vrot.lane.b32.xlu0 %v625, 24
      %v1114 = vpop.permute.xlu0 %1113
      %1115 = vrot.lane.b32.xlu0 %v626, 24
      %v1116 = vpop.permute.xlu0 %1115
      %1117 = vrot.lane.b32.xlu0 %v628, 24
      %v1118 = vpop.permute.xlu0 %1117
      %1119 = vrot.lane.b32.xlu0 %v629, 24
      %v1120 = vpop.permute.xlu0 %1119
      %1121 = vrot.lane.b32.xlu0 %v631, 24
      %v1122 = vpop.permute.xlu0 %1121
      %1123 = vrot.lane.b32.xlu0 %v632, 24
      %v1124 = vpop.permute.xlu0 %1123
      %1125 = vrot.lane.b32.xlu0 %v634, 24
      %v1126 = vpop.permute.xlu0 %1125
      %1127 = vrot.lane.b32.xlu0 %v635, 24
      %v1128 = vpop.permute.xlu0 %1127
      %1129 = vrot.lane.b32.xlu0 %v637, 24
      %v1130 = vpop.permute.xlu0 %1129
      %1131 = vrot.lane.b32.xlu0 %v638, 24
      %v1132 = vpop.permute.xlu0 %1131
      %1133 = vrot.lane.b32.xlu0 %v640, 24
      %v1134 = vpop.permute.xlu0 %1133
      %1135 = vrot.lane.b32.xlu0 %v641, 24
      %v1136 = vpop.permute.xlu0 %1135
      %1137 = vrot.lane.b32.xlu0 %v643, 24
      %v1138 = vpop.permute.xlu0 %1137
      %1139 = vrot.lane.b32.xlu0 %v644, 24
      %v1140 = vpop.permute.xlu0 %1139
      %1173 = vrot.lane.b32.xlu0 %v705, 32
      %v1174 = vpop.permute.xlu0 %1173
      %1175 = vrot.lane.b32.xlu0 %v707, 32
      %v1176 = vpop.permute.xlu0 %1175
      %1177 = vrot.lane.b32.xlu0 %v710, 32
      %v1178 = vpop.permute.xlu0 %1177
      %1179 = vrot.lane.b32.xlu0 %v712, 32
      %v1180 = vpop.permute.xlu0 %1179
      %1181 = vrot.lane.b32.xlu0 %v715, 32
      %v1182 = vpop.permute.xlu0 %1181
      %1183 = vrot.lane.b32.xlu0 %v717, 32
      %v1184 = vpop.permute.xlu0 %1183
      %1185 = vrot.lane.b32.xlu0 %v720, 32
      %v1186 = vpop.permute.xlu0 %1185
      %1187 = vrot.lane.b32.xlu0 %v722, 32
      %v1188 = vpop.permute.xlu0 %1187
      %1189 = vrot.lane.b32.xlu0 %v725, 32
      %v1190 = vpop.permute.xlu0 %1189
      %1191 = vrot.lane.b32.xlu0 %v727, 32
      %v1192 = vpop.permute.xlu0 %1191
      %1193 = vrot.lane.b32.xlu0 %v730, 32
      %v1194 = vpop.permute.xlu0 %1193
      %1195 = vrot.lane.b32.xlu0 %v732, 32
      %v1196 = vpop.permute.xlu0 %1195
      %1197 = vrot.lane.b32.xlu0 %v735, 32
      %v1198 = vpop.permute.xlu0 %1197
      %1199 = vrot.lane.b32.xlu0 %v737, 32
      %v1200 = vpop.permute.xlu0 %1199
      %1201 = vrot.lane.b32.xlu0 %v740, 32
      %v1202 = vpop.permute.xlu0 %1201
      %1203 = vrot.lane.b32.xlu0 %v742, 32
      %v1204 = vpop.permute.xlu0 %1203
      %1205 = vrot.lane.b32.xlu0 %v745, 32
      %v1206 = vpop.permute.xlu0 %1205
      %1207 = vrot.lane.b32.xlu0 %v747, 32
      %v1208 = vpop.permute.xlu0 %1207
      %1209 = vrot.lane.b32.xlu0 %v750, 32
      %v1210 = vpop.permute.xlu0 %1209
      %1211 = vrot.lane.b32.xlu0 %v752, 32
      %v1212 = vpop.permute.xlu0 %1211
      %1213 = vrot.lane.b32.xlu0 %v755, 32
      %v1214 = vpop.permute.xlu0 %1213
      %1215 = vrot.lane.b32.xlu0 %v757, 32
      %v1216 = vpop.permute.xlu0 %1215
      %1217 = vrot.lane.b32.xlu0 %v760, 32
      %v1218 = vpop.permute.xlu0 %1217
      %1219 = vrot.lane.b32.xlu0 %v762, 32
      %v1220 = vpop.permute.xlu0 %1219
      %1221 = vrot.lane.b32.xlu0 %v765, 32
      %v1222 = vpop.permute.xlu0 %1221
      %1223 = vrot.lane.b32.xlu0 %v767, 32
      %v1224 = vpop.permute.xlu0 %1223
      %1225 = vrot.lane.b32.xlu0 %v770, 32
      %v1226 = vpop.permute.xlu0 %1225
      %1227 = vrot.lane.b32.xlu0 %v772, 32
      %v1228 = vpop.permute.xlu0 %1227
      %1229 = vrot.lane.b32.xlu0 %v775, 32
      %v1230 = vpop.permute.xlu0 %1229
      %1231 = vrot.lane.b32.xlu0 %v777, 32
      %v1232 = vpop.permute.xlu0 %1231
      %1233 = vrot.lane.b32.xlu0 %v864, 32
      %v1234 = vpop.permute.xlu0 %1233
      %1235 = vrot.lane.b32.xlu0 %v866, 32
      %v1236 = vpop.permute.xlu0 %1235
      %1269 = vrot.lane.b32.xlu0 %v786, 40
      %v1270 = vpop.permute.xlu0 %1269
      %1271 = vrot.lane.b32.xlu0 %v788, 40
      %v1272 = vpop.permute.xlu0 %1271
      %1273 = vrot.lane.b32.xlu0 %v791, 40
      %v1274 = vpop.permute.xlu0 %1273
      %1275 = vrot.lane.b32.xlu0 %v793, 40
      %v1276 = vpop.permute.xlu0 %1275
      %1277 = vrot.lane.b32.xlu0 %v796, 40
      %v1278 = vpop.permute.xlu0 %1277
      %1279 = vrot.lane.b32.xlu0 %v798, 40
      %v1280 = vpop.permute.xlu0 %1279
      %1281 = vrot.lane.b32.xlu0 %v801, 40
      %v1282 = vpop.permute.xlu0 %1281
      %1283 = vrot.lane.b32.xlu0 %v803, 40
      %v1284 = vpop.permute.xlu0 %1283
      %1285 = vrot.lane.b32.xlu0 %v806, 40
      %v1286 = vpop.permute.xlu0 %1285
      %1287 = vrot.lane.b32.xlu0 %v808, 40
      %v1288 = vpop.permute.xlu0 %1287
      %1289 = vrot.lane.b32.xlu0 %v811, 40
      %v1290 = vpop.permute.xlu0 %1289
      %1291 = vrot.lane.b32.xlu0 %v813, 40
      %v1292 = vpop.permute.xlu0 %1291
      %1293 = vrot.lane.b32.xlu0 %v816, 40
      %v1294 = vpop.permute.xlu0 %1293
      %1295 = vrot.lane.b32.xlu0 %v818, 40
      %v1296 = vpop.permute.xlu0 %1295
      %1297 = vrot.lane.b32.xlu0 %v821, 40
      %v1298 = vpop.permute.xlu0 %1297
      %1299 = vrot.lane.b32.xlu0 %v823, 40
      %v1300 = vpop.permute.xlu0 %1299
      %1301 = vrot.lane.b32.xlu0 %v826, 40
      %v1302 = vpop.permute.xlu0 %1301
      %1303 = vrot.lane.b32.xlu0 %v828, 40
      %v1304 = vpop.permute.xlu0 %1303
      %1305 = vrot.lane.b32.xlu0 %v831, 40
      %v1306 = vpop.permute.xlu0 %1305
      %1307 = vrot.lane.b32.xlu0 %v833, 40
      %v1308 = vpop.permute.xlu0 %1307
      %1309 = vrot.lane.b32.xlu0 %v836, 40
      %v1310 = vpop.permute.xlu0 %1309
      %1311 = vrot.lane.b32.xlu0 %v838, 40
      %v1312 = vpop.permute.xlu0 %1311
      %1313 = vrot.lane.b32.xlu0 %v841, 40
      %v1314 = vpop.permute.xlu0 %1313
      %1315 = vrot.lane.b32.xlu0 %v843, 40
      %v1316 = vpop.permute.xlu0 %1315
      %1317 = vrot.lane.b32.xlu0 %v846, 40
      %v1318 = vpop.permute.xlu0 %1317
      %1319 = vrot.lane.b32.xlu0 %v848, 40
      %v1320 = vpop.permute.xlu0 %1319
      %1321 = vrot.lane.b32.xlu0 %v851, 40
      %v1322 = vpop.permute.xlu0 %1321
      %1323 = vrot.lane.b32.xlu0 %v853, 40
      %v1324 = vpop.permute.xlu0 %1323
      %1325 = vrot.lane.b32.xlu0 %v856, 40
      %v1326 = vpop.permute.xlu0 %1325
      %1327 = vrot.lane.b32.xlu0 %v858, 40
      %v1328 = vpop.permute.xlu0 %1327
      %1329 = vrot.lane.b32.xlu0 %v869, 40
      %v1330 = vpop.permute.xlu0 %1329
      %1331 = vrot.lane.b32.xlu0 %v871, 40
      %v1332 = vpop.permute.xlu0 %1331
      %1365 = vrot.lane.b32.xlu0 %v601, 48
      %v1366 = vpop.permute.xlu0 %1365
      %1367 = vrot.lane.b32.xlu0 %v602, 48
      %v1368 = vpop.permute.xlu0 %1367
      %1369 = vrot.lane.b32.xlu0 %v604, 48
      %v1370 = vpop.permute.xlu0 %1369
      %1371 = vrot.lane.b32.xlu0 %v605, 48
      %v1372 = vpop.permute.xlu0 %1371
      %1373 = vrot.lane.b32.xlu0 %v607, 48
      %v1374 = vpop.permute.xlu0 %1373
      %1375 = vrot.lane.b32.xlu0 %v608, 48
      %v1376 = vpop.permute.xlu0 %1375
      %1377 = vrot.lane.b32.xlu0 %v610, 48
      %v1378 = vpop.permute.xlu0 %1377
      %1379 = vrot.lane.b32.xlu0 %v611, 48
      %v1380 = vpop.permute.xlu0 %1379
      %1381 = vrot.lane.b32.xlu0 %v613, 48
      %v1382 = vpop.permute.xlu0 %1381
      %1383 = vrot.lane.b32.xlu0 %v614, 48
      %v1384 = vpop.permute.xlu0 %1383
      %1385 = vrot.lane.b32.xlu0 %v616, 48
      %v1386 = vpop.permute.xlu0 %1385
      %1387 = vrot.lane.b32.xlu0 %v617, 48
      %v1388 = vpop.permute.xlu0 %1387
      %1389 = vrot.lane.b32.xlu0 %v619, 48
      %v1390 = vpop.permute.xlu0 %1389
      %1391 = vrot.lane.b32.xlu0 %v620, 48
      %v1392 = vpop.permute.xlu0 %1391
      %1393 = vrot.lane.b32.xlu0 %v622, 48
      %v1394 = vpop.permute.xlu0 %1393
      %1395 = vrot.lane.b32.xlu0 %v623, 48
      %v1396 = vpop.permute.xlu0 %1395
      %1397 = vrot.lane.b32.xlu0 %v625, 48
      %v1398 = vpop.permute.xlu0 %1397
      %1399 = vrot.lane.b32.xlu0 %v626, 48
      %v1400 = vpop.permute.xlu0 %1399
      %1401 = vrot.lane.b32.xlu0 %v628, 48
      %v1402 = vpop.permute.xlu0 %1401
      %1403 = vrot.lane.b32.xlu0 %v629, 48
      %v1404 = vpop.permute.xlu0 %1403
      %1405 = vrot.lane.b32.xlu0 %v631, 48
      %v1406 = vpop.permute.xlu0 %1405
      %1407 = vrot.lane.b32.xlu0 %v632, 48
      %v1408 = vpop.permute.xlu0 %1407
      %1409 = vrot.lane.b32.xlu0 %v634, 48
      %v1410 = vpop.permute.xlu0 %1409
      %1411 = vrot.lane.b32.xlu0 %v635, 48
      %v1412 = vpop.permute.xlu0 %1411
      %1413 = vrot.lane.b32.xlu0 %v637, 48
      %v1414 = vpop.permute.xlu0 %1413
      %1415 = vrot.lane.b32.xlu0 %v638, 48
      %v1416 = vpop.permute.xlu0 %1415
      %1417 = vrot.lane.b32.xlu0 %v640, 48
      %v1418 = vpop.permute.xlu0 %1417
      %1419 = vrot.lane.b32.xlu0 %v641, 48
      %v1420 = vpop.permute.xlu0 %1419
      %1421 = vrot.lane.b32.xlu0 %v643, 48
      %v1422 = vpop.permute.xlu0 %1421
      %1423 = vrot.lane.b32.xlu0 %v644, 48
      %v1424 = vpop.permute.xlu0 %1423
      %1425 = vrot.lane.b32.xlu0 %v646, 48
      %v1426 = vpop.permute.xlu0 %1425
      %1427 = vrot.lane.b32.xlu0 %v647, 48
      %v1428 = vpop.permute.xlu0 %1427
      %1461 = vrot.lane.b32.xlu0 %v710, 56
      %v1462 = vpop.permute.xlu0 %1461
      %1463 = vrot.lane.b32.xlu0 %v712, 56
      %v1464 = vpop.permute.xlu0 %1463
      %1465 = vrot.lane.b32.xlu0 %v715, 56
      %v1466 = vpop.permute.xlu0 %1465
      %1467 = vrot.lane.b32.xlu0 %v717, 56
      %v1468 = vpop.permute.xlu0 %1467
      %1469 = vrot.lane.b32.xlu0 %v720, 56
      %v1470 = vpop.permute.xlu0 %1469
      %1471 = vrot.lane.b32.xlu0 %v722, 56
      %v1472 = vpop.permute.xlu0 %1471
      %1473 = vrot.lane.b32.xlu0 %v725, 56
      %v1474 = vpop.permute.xlu0 %1473
      %1475 = vrot.lane.b32.xlu0 %v727, 56
      %v1476 = vpop.permute.xlu0 %1475
      %1477 = vrot.lane.b32.xlu0 %v730, 56
      %v1478 = vpop.permute.xlu0 %1477
      %1479 = vrot.lane.b32.xlu0 %v732, 56
      %v1480 = vpop.permute.xlu0 %1479
      %1481 = vrot.lane.b32.xlu0 %v735, 56
      %v1482 = vpop.permute.xlu0 %1481
      %1483 = vrot.lane.b32.xlu0 %v737, 56
      %v1484 = vpop.permute.xlu0 %1483
      %1485 = vrot.lane.b32.xlu0 %v740, 56
      %v1486 = vpop.permute.xlu0 %1485
      %1487 = vrot.lane.b32.xlu0 %v742, 56
      %v1488 = vpop.permute.xlu0 %1487
      %1489 = vrot.lane.b32.xlu0 %v745, 56
      %v1490 = vpop.permute.xlu0 %1489
      %1491 = vrot.lane.b32.xlu0 %v747, 56
      %v1492 = vpop.permute.xlu0 %1491
      %1493 = vrot.lane.b32.xlu0 %v750, 56
      %v1494 = vpop.permute.xlu0 %1493
      %1495 = vrot.lane.b32.xlu0 %v752, 56
      %v1496 = vpop.permute.xlu0 %1495
      %1497 = vrot.lane.b32.xlu0 %v755, 56
      %v1498 = vpop.permute.xlu0 %1497
      %1499 = vrot.lane.b32.xlu0 %v757, 56
      %v1500 = vpop.permute.xlu0 %1499
      %1501 = vrot.lane.b32.xlu0 %v760, 56
      %v1502 = vpop.permute.xlu0 %1501
      %1503 = vrot.lane.b32.xlu0 %v762, 56
      %v1504 = vpop.permute.xlu0 %1503
      %1505 = vrot.lane.b32.xlu0 %v765, 56
      %v1506 = vpop.permute.xlu0 %1505
      %1507 = vrot.lane.b32.xlu0 %v767, 56
      %v1508 = vpop.permute.xlu0 %1507
      %1509 = vrot.lane.b32.xlu0 %v770, 56
      %v1510 = vpop.permute.xlu0 %1509
      %1511 = vrot.lane.b32.xlu0 %v772, 56
      %v1512 = vpop.permute.xlu0 %1511
      %1513 = vrot.lane.b32.xlu0 %v775, 56
      %v1514 = vpop.permute.xlu0 %1513
      %1515 = vrot.lane.b32.xlu0 %v777, 56
      %v1516 = vpop.permute.xlu0 %1515
      %1517 = vrot.lane.b32.xlu0 %v864, 56
      %v1518 = vpop.permute.xlu0 %1517
      %1519 = vrot.lane.b32.xlu0 %v866, 56
      %v1520 = vpop.permute.xlu0 %1519
      %1521 = vrot.lane.b32.xlu0 %v877, 56
      %v1522 = vpop.permute.xlu0 %1521
      %1523 = vrot.lane.b32.xlu0 %v879, 56
      %v1524 = vpop.permute.xlu0 %1523
      %1557 = vrot.lane.b32.xlu0 %v791, 64
      %v1558 = vpop.permute.xlu0 %1557
      %1559 = vrot.lane.b32.xlu0 %v793, 64
      %v1560 = vpop.permute.xlu0 %1559
      %1561 = vrot.lane.b32.xlu0 %v796, 64
      %v1562 = vpop.permute.xlu0 %1561
      %1563 = vrot.lane.b32.xlu0 %v798, 64
      %v1564 = vpop.permute.xlu0 %1563
      %1565 = vrot.lane.b32.xlu0 %v801, 64
      %v1566 = vpop.permute.xlu0 %1565
      %1567 = vrot.lane.b32.xlu0 %v803, 64
      %v1568 = vpop.permute.xlu0 %1567
      %1569 = vrot.lane.b32.xlu0 %v806, 64
      %v1570 = vpop.permute.xlu0 %1569
      %1571 = vrot.lane.b32.xlu0 %v808, 64
      %v1572 = vpop.permute.xlu0 %1571
      %1573 = vrot.lane.b32.xlu0 %v811, 64
      %v1574 = vpop.permute.xlu0 %1573
      %1575 = vrot.lane.b32.xlu0 %v813, 64
      %v1576 = vpop.permute.xlu0 %1575
      %1577 = vrot.lane.b32.xlu0 %v816, 64
      %v1578 = vpop.permute.xlu0 %1577
      %1579 = vrot.lane.b32.xlu0 %v818, 64
      %v1580 = vpop.permute.xlu0 %1579
      %1581 = vrot.lane.b32.xlu0 %v821, 64
      %v1582 = vpop.permute.xlu0 %1581
      %1583 = vrot.lane.b32.xlu0 %v823, 64
      %v1584 = vpop.permute.xlu0 %1583
      %1585 = vrot.lane.b32.xlu0 %v826, 64
      %v1586 = vpop.permute.xlu0 %1585
      %1587 = vrot.lane.b32.xlu0 %v828, 64
      %v1588 = vpop.permute.xlu0 %1587
      %1589 = vrot.lane.b32.xlu0 %v831, 64
      %v1590 = vpop.permute.xlu0 %1589
      %1591 = vrot.lane.b32.xlu0 %v833, 64
      %v1592 = vpop.permute.xlu0 %1591
      %1593 = vrot.lane.b32.xlu0 %v836, 64
      %v1594 = vpop.permute.xlu0 %1593
      %1595 = vrot.lane.b32.xlu0 %v838, 64
      %v1596 = vpop.permute.xlu0 %1595
      %1597 = vrot.lane.b32.xlu0 %v841, 64
      %v1598 = vpop.permute.xlu0 %1597
      %1599 = vrot.lane.b32.xlu0 %v843, 64
      %v1600 = vpop.permute.xlu0 %1599
      %1601 = vrot.lane.b32.xlu0 %v846, 64
      %v1602 = vpop.permute.xlu0 %1601
      %1603 = vrot.lane.b32.xlu0 %v848, 64
      %v1604 = vpop.permute.xlu0 %1603
      %1605 = vrot.lane.b32.xlu0 %v851, 64
      %v1606 = vpop.permute.xlu0 %1605
      %1607 = vrot.lane.b32.xlu0 %v853, 64
      %v1608 = vpop.permute.xlu0 %1607
      %1609 = vrot.lane.b32.xlu0 %v856, 64
      %v1610 = vpop.permute.xlu0 %1609
      %1611 = vrot.lane.b32.xlu0 %v858, 64
      %v1612 = vpop.permute.xlu0 %1611
      %1613 = vrot.lane.b32.xlu0 %v869, 64
      %v1614 = vpop.permute.xlu0 %1613
      %1615 = vrot.lane.b32.xlu0 %v871, 64
      %v1616 = vpop.permute.xlu0 %1615
      %1617 = vrot.lane.b32.xlu0 %v882, 64
      %v1618 = vpop.permute.xlu0 %1617
      %1619 = vrot.lane.b32.xlu0 %v884, 64
      %v1620 = vpop.permute.xlu0 %1619
      %v1653 = vsel %vm470, %v595, %v886
      %v1654 = vsel %vm470, %v596, %v888
      %v1655 = vsel %vm470, %v598, %v890
      %v1656 = vsel %vm470, %v599, %v892
      %v1657 = vsel %vm470, %v601, %v894
      %v1658 = vsel %vm470, %v602, %v896
      %v1659 = vsel %vm470, %v604, %v898
      %v1660 = vsel %vm470, %v605, %v900
      %v1661 = vsel %vm470, %v607, %v902
      %v1662 = vsel %vm470, %v608, %v904
      %v1663 = vsel %vm470, %v610, %v906
      %v1664 = vsel %vm470, %v611, %v908
      %v1665 = vsel %vm470, %v613, %v910
      %v1666 = vsel %vm470, %v614, %v912
      %v1667 = vsel %vm470, %v616, %v914
      %v1668 = vsel %vm470, %v617, %v916
      %v1669 = vsel %vm470, %v619, %v918
      %v1670 = vsel %vm470, %v620, %v920
      %v1671 = vsel %vm470, %v622, %v922
      %v1672 = vsel %vm470, %v623, %v924
      %v1673 = vsel %vm470, %v625, %v926
      %v1674 = vsel %vm470, %v626, %v928
      %v1675 = vsel %vm470, %v628, %v930
      %v1676 = vsel %vm470, %v629, %v932
      %v1677 = vsel %vm470, %v631, %v934
      %v1678 = vsel %vm470, %v632, %v936
      %v1679 = vsel %vm470, %v634, %v938
      %v1680 = vsel %vm470, %v635, %v940
      %v1681 = vsel %vm470, %v637, %v942
      %v1682 = vsel %vm470, %v638, %v944
      %v1683 = vsel %vm470, %v640, %v946
      %v1684 = vsel %vm470, %v641, %v948
      %vm1685 = vcmask 130048
      %v1686 = vsel %vm1685, %v1653, %v982
      %v1687 = vsel %vm1685, %v1654, %v984
      %v1688 = vsel %vm1685, %v1655, %v986
      %v1689 = vsel %vm1685, %v1656, %v988
      %v1690 = vsel %vm1685, %v1657, %v990
      %v1691 = vsel %vm1685, %v1658, %v992
      %v1692 = vsel %vm1685, %v1659, %v994
      %v1693 = vsel %vm1685, %v1660, %v996
      %v1694 = vsel %vm1685, %v1661, %v998
      %v1695 = vsel %vm1685, %v1662, %v1000
      %v1696 = vsel %vm1685, %v1663, %v1002
      %v1697 = vsel %vm1685, %v1664, %v1004
      %v1698 = vsel %vm1685, %v1665, %v1006
      %v1699 = vsel %vm1685, %v1666, %v1008
      %v1700 = vsel %vm1685, %v1667, %v1010
      %v1701 = vsel %vm1685, %v1668, %v1012
      %v1702 = vsel %vm1685, %v1669, %v1014
      %v1703 = vsel %vm1685, %v1670, %v1016
      %v1704 = vsel %vm1685, %v1671, %v1018
      %v1705 = vsel %vm1685, %v1672, %v1020
      %v1706 = vsel %vm1685, %v1673, %v1022
      %v1707 = vsel %vm1685, %v1674, %v1024
      %v1708 = vsel %vm1685, %v1675, %v1026
      %v1709 = vsel %vm1685, %v1676, %v1028
      %v1710 = vsel %vm1685, %v1677, %v1030
      %v1711 = vsel %vm1685, %v1678, %v1032
      %v1712 = vsel %vm1685, %v1679, %v1034
      %v1713 = vsel %vm1685, %v1680, %v1036
      %v1714 = vsel %vm1685, %v1681, %v1038
      %v1715 = vsel %vm1685, %v1682, %v1040
      %v1716 = vsel %vm1685, %v1683, %v1042
      %v1717 = vsel %vm1685, %v1684, %v1044
      %vm1718 = vcmask 195584
      %v1719 = vsel %vm1718, %v1686, %v1078
      %v1720 = vsel %vm1718, %v1687, %v1080
      %v1721 = vsel %vm1718, %v1688, %v1082
      %v1722 = vsel %vm1718, %v1689, %v1084
      %v1723 = vsel %vm1718, %v1690, %v1086
      %v1724 = vsel %vm1718, %v1691, %v1088
      %v1725 = vsel %vm1718, %v1692, %v1090
      %v1726 = vsel %vm1718, %v1693, %v1092
      %v1727 = vsel %vm1718, %v1694, %v1094
      %v1728 = vsel %vm1718, %v1695, %v1096
      %v1729 = vsel %vm1718, %v1696, %v1098
      %v1730 = vsel %vm1718, %v1697, %v1100
      %v1731 = vsel %vm1718, %v1698, %v1102
      %v1732 = vsel %vm1718, %v1699, %v1104
      %v1733 = vsel %vm1718, %v1700, %v1106
      %v1734 = vsel %vm1718, %v1701, %v1108
      %v1735 = vsel %vm1718, %v1702, %v1110
      %v1736 = vsel %vm1718, %v1703, %v1112
      %v1737 = vsel %vm1718, %v1704, %v1114
      %v1738 = vsel %vm1718, %v1705, %v1116
      %v1739 = vsel %vm1718, %v1706, %v1118
      %v1740 = vsel %vm1718, %v1707, %v1120
      %v1741 = vsel %vm1718, %v1708, %v1122
      %v1742 = vsel %vm1718, %v1709, %v1124
      %v1743 = vsel %vm1718, %v1710, %v1126
      %v1744 = vsel %vm1718, %v1711, %v1128
      %v1745 = vsel %vm1718, %v1712, %v1130
      %v1746 = vsel %vm1718, %v1713, %v1132
      %v1747 = vsel %vm1718, %v1714, %v1134
      %v1748 = vsel %vm1718, %v1715, %v1136
      %v1749 = vsel %vm1718, %v1716, %v1138
      %v1750 = vsel %vm1718, %v1717, %v1140
      %vm1751 = vcmask 261120
      %v1752 = vsel %vm1751, %v1719, %v1174
      %v1753 = vsel %vm1751, %v1720, %v1176
      %v1754 = vsel %vm1751, %v1721, %v1178
      %v1755 = vsel %vm1751, %v1722, %v1180
      %v1756 = vsel %vm1751, %v1723, %v1182
      %v1757 = vsel %vm1751, %v1724, %v1184
      %v1758 = vsel %vm1751, %v1725, %v1186
      %v1759 = vsel %vm1751, %v1726, %v1188
      %v1760 = vsel %vm1751, %v1727, %v1190
      %v1761 = vsel %vm1751, %v1728, %v1192
      %v1762 = vsel %vm1751, %v1729, %v1194
      %v1763 = vsel %vm1751, %v1730, %v1196
      %v1764 = vsel %vm1751, %v1731, %v1198
      %v1765 = vsel %vm1751, %v1732, %v1200
      %v1766 = vsel %vm1751, %v1733, %v1202
      %v1767 = vsel %vm1751, %v1734, %v1204
      %v1768 = vsel %vm1751, %v1735, %v1206
      %v1769 = vsel %vm1751, %v1736, %v1208
      %v1770 = vsel %vm1751, %v1737, %v1210
      %v1771 = vsel %vm1751, %v1738, %v1212
      %v1772 = vsel %vm1751, %v1739, %v1214
      %v1773 = vsel %vm1751, %v1740, %v1216
      %v1774 = vsel %vm1751, %v1741, %v1218
      %v1775 = vsel %vm1751, %v1742, %v1220
      %v1776 = vsel %vm1751, %v1743, %v1222
      %v1777 = vsel %vm1751, %v1744, %v1224
      %v1778 = vsel %vm1751, %v1745, %v1226
      %v1779 = vsel %vm1751, %v1746, %v1228
      %v1780 = vsel %vm1751, %v1747, %v1230
      %v1781 = vsel %vm1751, %v1748, %v1232
      %v1782 = vsel %vm1751, %v1749, %v1234
      %v1783 = vsel %vm1751, %v1750, %v1236
      %vm1784 = vcmask 326656
      %v1785 = vsel %vm1784, %v1752, %v1270
      %v1786 = vsel %vm1784, %v1753, %v1272
      %v1787 = vsel %vm1784, %v1754, %v1274
      %v1788 = vsel %vm1784, %v1755, %v1276
      %v1789 = vsel %vm1784, %v1756, %v1278
      %v1790 = vsel %vm1784, %v1757, %v1280
      %v1791 = vsel %vm1784, %v1758, %v1282
      %v1792 = vsel %vm1784, %v1759, %v1284
      %v1793 = vsel %vm1784, %v1760, %v1286
      %v1794 = vsel %vm1784, %v1761, %v1288
      %v1795 = vsel %vm1784, %v1762, %v1290
      %v1796 = vsel %vm1784, %v1763, %v1292
      %v1797 = vsel %vm1784, %v1764, %v1294
      %v1798 = vsel %vm1784, %v1765, %v1296
      %v1799 = vsel %vm1784, %v1766, %v1298
      %v1800 = vsel %vm1784, %v1767, %v1300
      %v1801 = vsel %vm1784, %v1768, %v1302
      %v1802 = vsel %vm1784, %v1769, %v1304
      %v1803 = vsel %vm1784, %v1770, %v1306
      %v1804 = vsel %vm1784, %v1771, %v1308
      %v1805 = vsel %vm1784, %v1772, %v1310
      %v1806 = vsel %vm1784, %v1773, %v1312
      %v1807 = vsel %vm1784, %v1774, %v1314
      %v1808 = vsel %vm1784, %v1775, %v1316
      %v1809 = vsel %vm1784, %v1776, %v1318
      %v1810 = vsel %vm1784, %v1777, %v1320
      %v1811 = vsel %vm1784, %v1778, %v1322
      %v1812 = vsel %vm1784, %v1779, %v1324
      %v1813 = vsel %vm1784, %v1780, %v1326
      %v1814 = vsel %vm1784, %v1781, %v1328
      %v1815 = vsel %vm1784, %v1782, %v1330
      %v1816 = vsel %vm1784, %v1783, %v1332
      %vm1817 = vcmask 392192
      %v1818 = vsel %vm1817, %v1785, %v1366
      %v1819 = vsel %vm1817, %v1786, %v1368
      %v1820 = vsel %vm1817, %v1787, %v1370
      %v1821 = vsel %vm1817, %v1788, %v1372
      %v1822 = vsel %vm1817, %v1789, %v1374
      %v1823 = vsel %vm1817, %v1790, %v1376
      %v1824 = vsel %vm1817, %v1791, %v1378
      %v1825 = vsel %vm1817, %v1792, %v1380
      %v1826 = vsel %vm1817, %v1793, %v1382
      %v1827 = vsel %vm1817, %v1794, %v1384
      %v1828 = vsel %vm1817, %v1795, %v1386
      %v1829 = vsel %vm1817, %v1796, %v1388
      %v1830 = vsel %vm1817, %v1797, %v1390
      %v1831 = vsel %vm1817, %v1798, %v1392
      %v1832 = vsel %vm1817, %v1799, %v1394
      %v1833 = vsel %vm1817, %v1800, %v1396
      %v1834 = vsel %vm1817, %v1801, %v1398
      %v1835 = vsel %vm1817, %v1802, %v1400
      %v1836 = vsel %vm1817, %v1803, %v1402
      %v1837 = vsel %vm1817, %v1804, %v1404
      %v1838 = vsel %vm1817, %v1805, %v1406
      %v1839 = vsel %vm1817, %v1806, %v1408
      %v1840 = vsel %vm1817, %v1807, %v1410
      %v1841 = vsel %vm1817, %v1808, %v1412
      %v1842 = vsel %vm1817, %v1809, %v1414
      %v1843 = vsel %vm1817, %v1810, %v1416
      %v1844 = vsel %vm1817, %v1811, %v1418
      %v1845 = vsel %vm1817, %v1812, %v1420
      %v1846 = vsel %vm1817, %v1813, %v1422
      %v1847 = vsel %vm1817, %v1814, %v1424
      %v1848 = vsel %vm1817, %v1815, %v1426
      %v1849 = vsel %vm1817, %v1816, %v1428
      %vm1850 = vcmask 457728
      %v1851 = vsel %vm1850, %v1818, %v1462
      %v1852 = vsel %vm1850, %v1819, %v1464
      %v1853 = vsel %vm1850, %v1820, %v1466
      %v1854 = vsel %vm1850, %v1821, %v1468
      %v1855 = vsel %vm1850, %v1822, %v1470
      %v1856 = vsel %vm1850, %v1823, %v1472
      %v1857 = vsel %vm1850, %v1824, %v1474
      %v1858 = vsel %vm1850, %v1825, %v1476
      %v1859 = vsel %vm1850, %v1826, %v1478
      %v1860 = vsel %vm1850, %v1827, %v1480
      %v1861 = vsel %vm1850, %v1828, %v1482
      %v1862 = vsel %vm1850, %v1829, %v1484
      %v1863 = vsel %vm1850, %v1830, %v1486
      %v1864 = vsel %vm1850, %v1831, %v1488
      %v1865 = vsel %vm1850, %v1832, %v1490
      %v1866 = vsel %vm1850, %v1833, %v1492
      %v1867 = vsel %vm1850, %v1834, %v1494
      %v1868 = vsel %vm1850, %v1835, %v1496
      %v1869 = vsel %vm1850, %v1836, %v1498
      %v1870 = vsel %vm1850, %v1837, %v1500
      %v1871 = vsel %vm1850, %v1838, %v1502
      %v1872 = vsel %vm1850, %v1839, %v1504
      %v1873 = vsel %vm1850, %v1840, %v1506
      %v1874 = vsel %vm1850, %v1841, %v1508
      %v1875 = vsel %vm1850, %v1842, %v1510
      %v1876 = vsel %vm1850, %v1843, %v1512
      %v1877 = vsel %vm1850, %v1844, %v1514
      %v1878 = vsel %vm1850, %v1845, %v1516
      %v1879 = vsel %vm1850, %v1846, %v1518
      %v1880 = vsel %vm1850, %v1847, %v1520
      %v1881 = vsel %vm1850, %v1848, %v1522
      %v1882 = vsel %vm1850, %v1849, %v1524
      %vm1883 = vcmask 523264
      %v1884 = vsel %vm1883, %v1851, %v1558
      %v1885 = vsel %vm1883, %v1852, %v1560
      %v1886 = vsel %vm1883, %v1853, %v1562
      %v1887 = vsel %vm1883, %v1854, %v1564
      %v1888 = vsel %vm1883, %v1855, %v1566
      %v1889 = vsel %vm1883, %v1856, %v1568
      %v1890 = vsel %vm1883, %v1857, %v1570
      %v1891 = vsel %vm1883, %v1858, %v1572
      %v1892 = vsel %vm1883, %v1859, %v1574
      %v1893 = vsel %vm1883, %v1860, %v1576
      %v1894 = vsel %vm1883, %v1861, %v1578
      %v1895 = vsel %vm1883, %v1862, %v1580
      %v1896 = vsel %vm1883, %v1863, %v1582
      %v1897 = vsel %vm1883, %v1864, %v1584
      %v1898 = vsel %vm1883, %v1865, %v1586
      %v1899 = vsel %vm1883, %v1866, %v1588
      %v1900 = vsel %vm1883, %v1867, %v1590
      %v1901 = vsel %vm1883, %v1868, %v1592
      %v1902 = vsel %vm1883, %v1869, %v1594
      %v1903 = vsel %vm1883, %v1870, %v1596
      %v1904 = vsel %vm1883, %v1871, %v1598
      %v1905 = vsel %vm1883, %v1872, %v1600
      %v1906 = vsel %vm1883, %v1873, %v1602
      %v1907 = vsel %vm1883, %v1874, %v1604
      %v1908 = vsel %vm1883, %v1875, %v1606
      %v1909 = vsel %vm1883, %v1876, %v1608
      %v1910 = vsel %vm1883, %v1877, %v1610
      %v1911 = vsel %vm1883, %v1878, %v1612
      %v1912 = vsel %vm1883, %v1879, %v1614
      %v1913 = vsel %vm1883, %v1880, %v1616
      %v1914 = vsel %vm1883, %v1881, %v1618
      %v1915 = vsel %vm1883, %v1882, %v1620
      %v1916 = vld [vmem:[%s3] sm:$0xff]
      %v1917 = vld [vmem:[%s3 + $0x8] sm:$0xff]
      %v1918 = vld [vmem:[%s3 + $0x10] sm:$0xff]
      %v1919 = vld [vmem:[%s3 + $0x18] sm:$0xff]
      %v1920 = vld [vmem:[%s3 + $0x20] sm:$0xff]
      %v1921 = vld [vmem:[%s3 + $0x28] sm:$0xff]
      %v1922 = vld [vmem:[%s3 + $0x30] sm:$0xff]
      %v1923 = vld [vmem:[%s3 + $0x38] sm:$0xff]
      %v1924 = vld [vmem:[%s3 + $0x40] sm:$0xff]
      %vm1925 = vcmask 588800
      %v1927 = vsel %vm1925, %v1884, 0
      %v1930 = vsel %vm1925, %v1885, 0
      %v1933 = vsel %vm1925, %v1886, 0
      %v1936 = vsel %vm1925, %v1887, 0
      %v1939 = vsel %vm1925, %v1888, 0
      %v1942 = vsel %vm1925, %v1889, 0
      %v1945 = vsel %vm1925, %v1890, 0
      %v1948 = vsel %vm1925, %v1891, 0
      %v1951 = vsel %vm1925, %v1892, 0
      %v1954 = vsel %vm1925, %v1893, 0
      %v1957 = vsel %vm1925, %v1894, 0
      %v1960 = vsel %vm1925, %v1895, 0
      %v1963 = vsel %vm1925, %v1896, 0
      %v1966 = vsel %vm1925, %v1897, 0
      %v1969 = vsel %vm1925, %v1898, 0
      %v1972 = vsel %vm1925, %v1899, 0
      %v1975 = vsel %vm1925, %v1900, 0
      %v1978 = vsel %vm1925, %v1901, 0
      %v1981 = vsel %vm1925, %v1902, 0
      %v1984 = vsel %vm1925, %v1903, 0
      %v1987 = vsel %vm1925, %v1904, 0
      %v1990 = vsel %vm1925, %v1905, 0
      %v1993 = vsel %vm1925, %v1906, 0
      %v1996 = vsel %vm1925, %v1907, 0
      %v1999 = vsel %vm1925, %v1908, 0
      %v2002 = vsel %vm1925, %v1909, 0
      %v2005 = vsel %vm1925, %v1910, 0
      %v2008 = vsel %vm1925, %v1911, 0
      %v2011 = vsel %vm1925, %v1912, 0
      %v2014 = vsel %vm1925, %v1913, 0
      %v2017 = vsel %vm1925, %v1914, 0
      %v2020 = vsel %vm1925, %v1915, 0
      %2022 = vmatpush.msra.mxu0 0.0
      %2023 = vmatpush.msra.mxu0 0.0
      %2024 = vmatpush.msra.mxu0 0.0
      %2025 = vmatpush.msra.mxu0 0.0
      %2026 = vmatpush.msra.mxu0 0.0
      %2027 = vmatpush.msra.mxu0 0.0
      %2028 = vmatpush.msra.mxu0 0.0
      %2029 = vmatpush.msra.mxu0 %v1924
      %2030 = vmatpush.msra.mxu0 %v1923
      %2031 = vmatpush.msra.mxu0 %v1922
      %2032 = vmatpush.msra.mxu0 %v1921
      %2033 = vmatpush.msra.mxu0 %v1920
      %2034 = vmatpush.msra.mxu0 %v1919
      %2035 = vmatpush.msra.mxu0 %v1918
      %2036 = vmatpush.msra.mxu0 %v1917
      %2037 = vmatpush.msra.mxu0 %v1916
      %2038 = vmatmul.f32.gmra.mxu0 %v1927
      %v2039 = vpop.f32.mrf.mxu0
      %v2040 = vadd.f32 0.0, %v2039
      %2041 = vmatmul.f32.gmra.mxu0 %v1930
      %v2042 = vpop.f32.mrf.mxu0
      %v2043 = vadd.f32 0.0, %v2042
      %2044 = vmatmul.f32.gmra.mxu0 %v1933
      %v2045 = vpop.f32.mrf.mxu0
      %v2046 = vadd.f32 0.0, %v2045
      %2047 = vmatmul.f32.gmra.mxu0 %v1936
      %v2048 = vpop.f32.mrf.mxu0
      %v2049 = vadd.f32 0.0, %v2048
      %2050 = vmatmul.f32.gmra.mxu0 %v1939
      %v2051 = vpop.f32.mrf.mxu0
      %v2052 = vadd.f32 0.0, %v2051
      %2053 = vmatmul.f32.gmra.mxu0 %v1942
      %v2054 = vpop.f32.mrf.mxu0
      %v2055 = vadd.f32 0.0, %v2054
      %2056 = vmatmul.f32.gmra.mxu0 %v1945
      %v2057 = vpop.f32.mrf.mxu0
      %v2058 = vadd.f32 0.0, %v2057
      %2059 = vmatmul.f32.gmra.mxu0 %v1948
      %v2060 = vpop.f32.mrf.mxu0
      %v2061 = vadd.f32 0.0, %v2060
      %2062 = vmatmul.f32.gmra.mxu0 %v1951
      %v2063 = vpop.f32.mrf.mxu0
      %v2064 = vadd.f32 0.0, %v2063
      %2065 = vmatmul.f32.gmra.mxu0 %v1954
      %v2066 = vpop.f32.mrf.mxu0
      %v2067 = vadd.f32 0.0, %v2066
      %2068 = vmatmul.f32.gmra.mxu0 %v1957
      %v2069 = vpop.f32.mrf.mxu0
      %v2070 = vadd.f32 0.0, %v2069
      %2071 = vmatmul.f32.gmra.mxu0 %v1960
      %v2072 = vpop.f32.mrf.mxu0
      %v2073 = vadd.f32 0.0, %v2072
      %2074 = vmatmul.f32.gmra.mxu0 %v1963
      %v2075 = vpop.f32.mrf.mxu0
      %v2076 = vadd.f32 0.0, %v2075
      %2077 = vmatmul.f32.gmra.mxu0 %v1966
      %v2078 = vpop.f32.mrf.mxu0
      %v2079 = vadd.f32 0.0, %v2078
      %2080 = vmatmul.f32.gmra.mxu0 %v1969
      %v2081 = vpop.f32.mrf.mxu0
      %v2082 = vadd.f32 0.0, %v2081
      %2083 = vmatmul.f32.gmra.mxu0 %v1972
      %v2084 = vpop.f32.mrf.mxu0
      %v2085 = vadd.f32 0.0, %v2084
      %2086 = vmatmul.f32.gmra.mxu0 %v1975
      %v2087 = vpop.f32.mrf.mxu0
      %v2088 = vadd.f32 0.0, %v2087
      %2089 = vmatmul.f32.gmra.mxu0 %v1978
      %v2090 = vpop.f32.mrf.mxu0
      %v2091 = vadd.f32 0.0, %v2090
      %2092 = vmatmul.f32.gmra.mxu0 %v1981
      %v2093 = vpop.f32.mrf.mxu0
      %v2094 = vadd.f32 0.0, %v2093
      %2095 = vmatmul.f32.gmra.mxu0 %v1984
      %v2096 = vpop.f32.mrf.mxu0
      %v2097 = vadd.f32 0.0, %v2096
      %2098 = vmatmul.f32.gmra.mxu0 %v1987
      %v2099 = vpop.f32.mrf.mxu0
      %v2100 = vadd.f32 0.0, %v2099
      %2101 = vmatmul.f32.gmra.mxu0 %v1990
      %v2102 = vpop.f32.mrf.mxu0
      %v2103 = vadd.f32 0.0, %v2102
      %2104 = vmatmul.f32.gmra.mxu0 %v1993
      %v2105 = vpop.f32.mrf.mxu0
      %v2106 = vadd.f32 0.0, %v2105
      %2107 = vmatmul.f32.gmra.mxu0 %v1996
      %v2108 = vpop.f32.mrf.mxu0
      %v2109 = vadd.f32 0.0, %v2108
      %2110 = vmatmul.f32.gmra.mxu0 %v1999
      %v2111 = vpop.f32.mrf.mxu0
      %v2112 = vadd.f32 0.0, %v2111
      %2113 = vmatmul.f32.gmra.mxu0 %v2002
      %v2114 = vpop.f32.mrf.mxu0
      %v2115 = vadd.f32 0.0, %v2114
      %2116 = vmatmul.f32.gmra.mxu0 %v2005
      %v2117 = vpop.f32.mrf.mxu0
      %v2118 = vadd.f32 0.0, %v2117
      %2119 = vmatmul.f32.gmra.mxu0 %v2008
      %v2120 = vpop.f32.mrf.mxu0
      %v2121 = vadd.f32 0.0, %v2120
      %2122 = vmatmul.f32.gmra.mxu0 %v2011
      %v2123 = vpop.f32.mrf.mxu0
      %v2124 = vadd.f32 0.0, %v2123
      %2125 = vmatmul.f32.gmra.mxu0 %v2014
      %v2126 = vpop.f32.mrf.mxu0
      %v2127 = vadd.f32 0.0, %v2126
      %2128 = vmatmul.f32.gmra.mxu0 %v2017
      %v2129 = vpop.f32.mrf.mxu0
      %v2130 = vadd.f32 0.0, %v2129
      %2131 = vmatmul.f32.gmra.mxu0 %v2020
      %v2132 = vpop.f32.mrf.mxu0
      %v2133 = vadd.f32 0.0, %v2132
      %2134 = vdwg.mxu0
      %2135 = vst.msk [vmem:[%s258] sm:$0xff] %vm470, %v2040
      %2136 = vst.msk [vmem:[%s258 + $0x8] sm:$0xff] %vm470, %v2043
      %2137 = vst.msk [vmem:[%s258 + $0x10] sm:$0xff] %vm470, %v2046
      %2138 = vst.msk [vmem:[%s258 + $0x18] sm:$0xff] %vm470, %v2049
      %2139 = vst.msk [vmem:[%s258 + $0x20] sm:$0xff] %vm470, %v2052
      %2140 = vst.msk [vmem:[%s258 + $0x28] sm:$0xff] %vm470, %v2055
      %2141 = vst.msk [vmem:[%s258 + $0x30] sm:$0xff] %vm470, %v2058
      %2142 = vst.msk [vmem:[%s258 + $0x38] sm:$0xff] %vm470, %v2061
      %2143 = vst.msk [vmem:[%s258 + $0x40] sm:$0xff] %vm470, %v2064
      %2144 = vst.msk [vmem:[%s258 + $0x48] sm:$0xff] %vm470, %v2067
      %2145 = vst.msk [vmem:[%s258 + $0x50] sm:$0xff] %vm470, %v2070
      %2146 = vst.msk [vmem:[%s258 + $0x58] sm:$0xff] %vm470, %v2073
      %2147 = vst.msk [vmem:[%s258 + $0x60] sm:$0xff] %vm470, %v2076
      %2148 = vst.msk [vmem:[%s258 + $0x68] sm:$0xff] %vm470, %v2079
      %2149 = vst.msk [vmem:[%s258 + $0x70] sm:$0xff] %vm470, %v2082
      %2150 = vst.msk [vmem:[%s258 + $0x78] sm:$0xff] %vm470, %v2085
      %2151 = vst.msk [vmem:[%s258 + $0x80] sm:$0xff] %vm470, %v2088
      %2152 = vst.msk [vmem:[%s258 + $0x88] sm:$0xff] %vm470, %v2091
      %2153 = vst.msk [vmem:[%s258 + $0x90] sm:$0xff] %vm470, %v2094
      %2154 = vst.msk [vmem:[%s258 + $0x98] sm:$0xff] %vm470, %v2097
      %2155 = vst.msk [vmem:[%s258 + $0xa0] sm:$0xff] %vm470, %v2100
      %2156 = vst.msk [vmem:[%s258 + $0xa8] sm:$0xff] %vm470, %v2103
      %2157 = vst.msk [vmem:[%s258 + $0xb0] sm:$0xff] %vm470, %v2106
      %2158 = vst.msk [vmem:[%s258 + $0xb8] sm:$0xff] %vm470, %v2109
      %2159 = vst.msk [vmem:[%s258 + $0xc0] sm:$0xff] %vm470, %v2112
      %2160 = vst.msk [vmem:[%s258 + $0xc8] sm:$0xff] %vm470, %v2115
      %2161 = vst.msk [vmem:[%s258 + $0xd0] sm:$0xff] %vm470, %v2118
      %2162 = vst.msk [vmem:[%s258 + $0xd8] sm:$0xff] %vm470, %v2121
      %2163 = vst.msk [vmem:[%s258 + $0xe0] sm:$0xff] %vm470, %v2124
      %2164 = vst.msk [vmem:[%s258 + $0xe8] sm:$0xff] %vm470, %v2127
      %2165 = vst.msk [vmem:[%s258 + $0xf0] sm:$0xff] %vm470, %v2130
      %2166 = vst.msk [vmem:[%s258 + $0xf8] sm:$0xff] %vm470, %v2133
      %v2167 = vsel %vm470, %v2040, 0.0
      %v2168 = vsel %vm470, %v2043, 0.0
      %v2169 = vadd.f32 %v2167, %v2168
      %v2170 = vsel %vm470, %v2046, 0.0
      %v2171 = vadd.f32 %v2169, %v2170
      %v2172 = vsel %vm470, %v2049, 0.0
      %v2173 = vadd.f32 %v2171, %v2172
      %v2174 = vsel %vm470, %v2052, 0.0
      %v2175 = vadd.f32 %v2173, %v2174
      %v2176 = vsel %vm470, %v2055, 0.0
      %v2177 = vadd.f32 %v2175, %v2176
      %v2178 = vsel %vm470, %v2058, 0.0
      %v2179 = vadd.f32 %v2177, %v2178
      %v2180 = vsel %vm470, %v2061, 0.0
      %v2181 = vadd.f32 %v2179, %v2180
      %v2182 = vsel %vm470, %v2064, 0.0
      %v2183 = vadd.f32 %v2181, %v2182
      %v2184 = vsel %vm470, %v2067, 0.0
      %v2185 = vadd.f32 %v2183, %v2184
      %v2186 = vsel %vm470, %v2070, 0.0
      %v2187 = vadd.f32 %v2185, %v2186
      %v2188 = vsel %vm470, %v2073, 0.0
      %v2189 = vadd.f32 %v2187, %v2188
      %v2190 = vsel %vm470, %v2076, 0.0
      %v2191 = vadd.f32 %v2189, %v2190
      %v2192 = vsel %vm470, %v2079, 0.0
      %v2193 = vadd.f32 %v2191, %v2192
      %v2194 = vsel %vm470, %v2082, 0.0
      %v2195 = vadd.f32 %v2193, %v2194
      %v2196 = vsel %vm470, %v2085, 0.0
      %v2197 = vadd.f32 %v2195, %v2196
      %v2198 = vsel %vm470, %v2088, 0.0
      %v2199 = vadd.f32 %v2197, %v2198
      %v2200 = vsel %vm470, %v2091, 0.0
      %v2201 = vadd.f32 %v2199, %v2200
      %v2202 = vsel %vm470, %v2094, 0.0
      %v2203 = vadd.f32 %v2201, %v2202
      %v2204 = vsel %vm470, %v2097, 0.0
      %v2205 = vadd.f32 %v2203, %v2204
      %v2206 = vsel %vm470, %v2100, 0.0
      %v2207 = vadd.f32 %v2205, %v2206
      %v2208 = vsel %vm470, %v2103, 0.0
      %v2209 = vadd.f32 %v2207, %v2208
      %v2210 = vsel %vm470, %v2106, 0.0
      %v2211 = vadd.f32 %v2209, %v2210
      %v2212 = vsel %vm470, %v2109, 0.0
      %v2213 = vadd.f32 %v2211, %v2212
      %v2214 = vsel %vm470, %v2112, 0.0
      %v2215 = vadd.f32 %v2213, %v2214
      %v2216 = vsel %vm470, %v2115, 0.0
      %v2217 = vadd.f32 %v2215, %v2216
      %v2218 = vsel %vm470, %v2118, 0.0
      %v2219 = vadd.f32 %v2217, %v2218
      %v2220 = vsel %vm470, %v2121, 0.0
      %v2221 = vadd.f32 %v2219, %v2220
      %v2222 = vsel %vm470, %v2124, 0.0
      %v2223 = vadd.f32 %v2221, %v2222
      %v2224 = vsel %vm470, %v2127, 0.0
      %v2225 = vadd.f32 %v2223, %v2224
      %v2226 = vsel %vm470, %v2130, 0.0
      %v2227 = vadd.f32 %v2225, %v2226
      %v2228 = vsel %vm470, %v2133, 0.0
      %v2229 = vadd.f32 %v2227, %v2228
      %v2230 = vrot.slane %v2229, 4
      %v2231 = vadd.f32 %v2229, %v2230
      %v2232 = vrot.slane %v2231, 2
      %v2233 = vadd.f32 %v2231, %v2232
      %v2234 = vrot.slane %v2233, 1
      %v2235 = vadd.f32 %v2233, %v2234
      %2236 = vst.msk [vmem:[%s264] sm:$0x1] %vm503, %v2235
      %v2237 = vmul.f32 %v2040, %v2040
      %v2238 = vmul.f32 %v2043, %v2043
      %v2239 = vmul.f32 %v2046, %v2046
      %v2240 = vmul.f32 %v2049, %v2049
      %v2241 = vmul.f32 %v2052, %v2052
      %v2242 = vmul.f32 %v2055, %v2055
      %v2243 = vmul.f32 %v2058, %v2058
      %v2244 = vmul.f32 %v2061, %v2061
      %v2245 = vmul.f32 %v2064, %v2064
      %v2246 = vmul.f32 %v2067, %v2067
      %v2247 = vmul.f32 %v2070, %v2070
      %v2248 = vmul.f32 %v2073, %v2073
      %v2249 = vmul.f32 %v2076, %v2076
      %v2250 = vmul.f32 %v2079, %v2079
      %v2251 = vmul.f32 %v2082, %v2082
      %v2252 = vmul.f32 %v2085, %v2085
      %v2253 = vmul.f32 %v2088, %v2088
      %v2254 = vmul.f32 %v2091, %v2091
      %v2255 = vmul.f32 %v2094, %v2094
      %v2256 = vmul.f32 %v2097, %v2097
      %v2257 = vmul.f32 %v2100, %v2100
      %v2258 = vmul.f32 %v2103, %v2103
      %v2259 = vmul.f32 %v2106, %v2106
      %v2260 = vmul.f32 %v2109, %v2109
      %v2261 = vmul.f32 %v2112, %v2112
      %v2262 = vmul.f32 %v2115, %v2115
      %v2263 = vmul.f32 %v2118, %v2118
      %v2264 = vmul.f32 %v2121, %v2121
      %v2265 = vmul.f32 %v2124, %v2124
      %v2266 = vmul.f32 %v2127, %v2127
      %v2267 = vmul.f32 %v2130, %v2130
      %v2268 = vmul.f32 %v2133, %v2133
      %v2269 = vsel %vm470, %v2237, 0.0
      %v2270 = vsel %vm470, %v2238, 0.0
      %v2271 = vadd.f32 %v2269, %v2270
      %v2272 = vsel %vm470, %v2239, 0.0
      %v2273 = vadd.f32 %v2271, %v2272
      %v2274 = vsel %vm470, %v2240, 0.0
      %v2275 = vadd.f32 %v2273, %v2274
      %v2276 = vsel %vm470, %v2241, 0.0
      %v2277 = vadd.f32 %v2275, %v2276
      %v2278 = vsel %vm470, %v2242, 0.0
      %v2279 = vadd.f32 %v2277, %v2278
      %v2280 = vsel %vm470, %v2243, 0.0
      %v2281 = vadd.f32 %v2279, %v2280
      %v2282 = vsel %vm470, %v2244, 0.0
      %v2283 = vadd.f32 %v2281, %v2282
      %v2284 = vsel %vm470, %v2245, 0.0
      %v2285 = vadd.f32 %v2283, %v2284
      %v2286 = vsel %vm470, %v2246, 0.0
      %v2287 = vadd.f32 %v2285, %v2286
      %v2288 = vsel %vm470, %v2247, 0.0
      %v2289 = vadd.f32 %v2287, %v2288
      %v2290 = vsel %vm470, %v2248, 0.0
      %v2291 = vadd.f32 %v2289, %v2290
      %v2292 = vsel %vm470, %v2249, 0.0
      %v2293 = vadd.f32 %v2291, %v2292
      %v2294 = vsel %vm470, %v2250, 0.0
      %v2295 = vadd.f32 %v2293, %v2294
      %v2296 = vsel %vm470, %v2251, 0.0
      %v2297 = vadd.f32 %v2295, %v2296
      %v2298 = vsel %vm470, %v2252, 0.0
      %v2299 = vadd.f32 %v2297, %v2298
      %v2300 = vsel %vm470, %v2253, 0.0
      %v2301 = vadd.f32 %v2299, %v2300
      %v2302 = vsel %vm470, %v2254, 0.0
      %v2303 = vadd.f32 %v2301, %v2302
      %v2304 = vsel %vm470, %v2255, 0.0
      %v2305 = vadd.f32 %v2303, %v2304
      %v2306 = vsel %vm470, %v2256, 0.0
      %v2307 = vadd.f32 %v2305, %v2306
      %v2308 = vsel %vm470, %v2257, 0.0
      %v2309 = vadd.f32 %v2307, %v2308
      %v2310 = vsel %vm470, %v2258, 0.0
      %v2311 = vadd.f32 %v2309, %v2310
      %v2312 = vsel %vm470, %v2259, 0.0
      %v2313 = vadd.f32 %v2311, %v2312
      %v2314 = vsel %vm470, %v2260, 0.0
      %v2315 = vadd.f32 %v2313, %v2314
      %v2316 = vsel %vm470, %v2261, 0.0
      %v2317 = vadd.f32 %v2315, %v2316
      %v2318 = vsel %vm470, %v2262, 0.0
      %v2319 = vadd.f32 %v2317, %v2318
      %v2320 = vsel %vm470, %v2263, 0.0
      %v2321 = vadd.f32 %v2319, %v2320
      %v2322 = vsel %vm470, %v2264, 0.0
      %v2323 = vadd.f32 %v2321, %v2322
      %v2324 = vsel %vm470, %v2265, 0.0
      %v2325 = vadd.f32 %v2323, %v2324
      %v2326 = vsel %vm470, %v2266, 0.0
      %v2327 = vadd.f32 %v2325, %v2326
      %v2328 = vsel %vm470, %v2267, 0.0
      %v2329 = vadd.f32 %v2327, %v2328
      %v2330 = vsel %vm470, %v2268, 0.0
      %v2331 = vadd.f32 %v2329, %v2330
      %v2332 = vrot.slane %v2331, 4
      %v2333 = vadd.f32 %v2331, %v2332
      %v2334 = vrot.slane %v2333, 2
      %v2335 = vadd.f32 %v2333, %v2334
      %v2336 = vrot.slane %v2335, 1
      %v2337 = vadd.f32 %v2335, %v2336
      %2338 = vst.msk [vmem:[%s264 + $0x1] sm:$0x1] %vm503, %v2337
      %s2339 = smul.u32 16, %s22
      %p2340 = scmp.lt.s32.totalorder %s21, 1
      %s2341 = scalar_select %p2340, %s21, 1
      %p2342 = scmp.lt.s32.totalorder %s2339, 15
      %s2343 = scalar_select %p2342, %s2339, 15
      %s2344 = smul.addr %s2343, 2
      %s2345 = smul.addr %s2341, 32
      %s2346 = sadd.s32 %s2344, %s2345
      %s2347 = smul.addr %s2346, 8
      %s2348 = scalar_lea.vmem %s4, %s2347
      %s2349 = sadd.s32 %s21, %s22
      %p2350 = scmp.lt.s32.totalorder %s2349, 1
      %s2351 = scalar_select %p2350, %s2349, 1
      %s2352 = smul.addr %s2351, 2
      %s2353 = scalar_lea.vmem %s5, %s2352
      // Predicated region
      $region53: #{bottleneck_forward.5} parent=35 // pred_check
        %p2354 = pneg %p138
      $region54: #{bottleneck_forward.5} parent=35 // pred_check_branch
        %2356 = sbr.rel (%p2354) target = $region56
      $region55: #{bottleneck_forward.5} parent=35 // pred_region
        %s2357 = smul.u32 16, %s22
      $region56: #{bottleneck_forward.5} parent=35 // pred_fallthru
        _
      // Predicated region
      $region57: #{bottleneck_forward.5} parent=35 // pred_check
        %p2358 = pneg %p166
      $region58: #{bottleneck_forward.5} parent=35 // pred_check_branch
        %2360 = sbr.rel (%p2358) target = $region60
      $region59: #{bottleneck_forward.5} parent=35 // pred_region
        %s2361 = sadd.s32 %s21, %s22
      $region60: #{bottleneck_forward.5} parent=35 // pred_fallthru
        _
    $region36: #{bottleneck_forward.5} parent=5 // pred_fallthru
      _
    %p2362 = scmp.le.s32.totalorder 2, %s12
    // Predicated region
    $region61: #{bottleneck_forward.5} parent=5 // pred_check
      %p2363 = pneg %p2362
    $region62: #{bottleneck_forward.5} parent=5 // pred_check_branch
      %2365 = sbr.rel (%p2363) target = $region64
    $region63: #{bottleneck_forward.5} parent=5 // pred_region
      %s2366 = ssub.s32 %s12, 2
      // Predicated region
      $region65: #{bottleneck_forward.5} parent=63 // pred_check
        %p2367 = pneg %p144
      $region66: #{bottleneck_forward.5} parent=63 // pred_check_branch
        %2369 = sbr.rel (%p2367) target = $region68
      $region67: #{bottleneck_forward.5} parent=63 // pred_region
        %s2370 = smul.u32 16, %s24
        %p2371 = scmp.lt.s32.totalorder %s23, 1
        %s2372 = scalar_select %p2371, %s23, 1
        %p2373 = scmp.lt.s32.totalorder %s2370, 15
        %s2374 = scalar_select %p2373, %s2370, 15
        %s2375 = smul.addr %s2374, 2
        %s2376 = smul.addr %s2372, 32
        %s2377 = sadd.s32 %s2375, %s2376
        %s2378 = smul.addr %s2377, 8
        %s2379 = scalar_lea.vmem %s4, %s2378
      $region68: #{bottleneck_forward.5} parent=63 // pred_fallthru
        _
      // Predicated region
      $region69: #{bottleneck_forward.5} parent=63 // pred_check
        %p2380 = pneg %p172
      $region70: #{bottleneck_forward.5} parent=63 // pred_check_branch
        %2382 = sbr.rel (%p2380) target = $region72
      $region71: #{bottleneck_forward.5} parent=63 // pred_region
        %s2383 = sadd.s32 %s23, %s24
        %p2384 = scmp.lt.s32.totalorder %s2383, 1
        %s2385 = scalar_select %p2384, %s2383, 1
        %s2386 = smul.addr %s2385, 2
        %s2387 = scalar_lea.vmem %s5, %s2386
      $region72: #{bottleneck_forward.5} parent=63 // pred_fallthru
        _
    $region64: #{bottleneck_forward.5} parent=5 // pred_fallthru
      _
  $region6: #{bottleneck_forward.5} parent=0 // loop_footer
    %s16 = sadd.s32 1, %s12
  $region7: #{bottleneck_forward.5} parent=0 // loop_footer_branch
    %11 = sbr.rel target = $region3
  $region8: #{bottleneck_forward.5} parent=0 // loop_exit
    _

</llo_original>
